<compile_context>
chip_gen: v6e
topology: v6e:2x2x1
jax: 0.10.0
libtpu: 0.0.40
codegen_flags: <defaults>
</compile_context>

<pallas_src>
import functools

import jax
import jax.numpy as jnp
from jax.experimental import pallas as pl
from jax.experimental.pallas import tpu as pltpu


def _make_banded_weights(weight, W, n_out, dtype):
    """(Cout, Cin, 3, 3, 3) -> (9, (W+2)*Cin, n_out) banded matrices.

    Band t = kd*3 + kh maps lane-folded, W-padded input column (w_in*Cin + ci)
    to output column (w_out*Cout + co) with value weight[co, ci, kd, kh, kw]
    where kw = w_in - w_out when 0 <= kw <= 2, else 0: the kw tap loop is
    folded into the matmul contraction.  Columns [W*Cout : n_out) are zero
    padding that makes the output lane dim a multiple of 128.

    TODO(synk): K = (W+2)*Cin inflates the MXU contraction by (W+2)/3 vs the
    true 3*Cin tap and the banded tensor scales O(W^2*Cin*Cout); once
    (W+2)*Cin exceeds the MXU K tile (128 on v5e, 256 on v6e/v7x) switch to
    K=3*Cin per-kw shifted views (and D-tile the grid for v7x's 64 MiB VMEM).
    """
    Cout, Cin, kD, kH, kW = weight.shape
    Wp = W + 2
    WCout = W * Cout
    wt = jnp.transpose(weight, (2, 3, 4, 1, 0))            # (kD, kH, kW, Cin, Cout)
    w_idx = jnp.arange(W)
    bands = []
    for kd in range(kD):
        for kh in range(kH):
            band = jnp.zeros((Wp, W, Cin, Cout), weight.dtype)
            for kw in range(kW):
                # rows w_out + kw, cols w_out get the (Cin, Cout) tap matrix.
                band = band.at[w_idx + kw, w_idx].set(wt[kd, kh, kw])
            bands.append(band.transpose(0, 2, 1, 3).reshape(Wp * Cin, WCout))
    w_band = jnp.stack(bands, axis=0)
    if n_out > WCout:
        w_band = jnp.pad(w_band, ((0, 0), (0, 0), (0, n_out - WCout)))
    return w_band.astype(dtype)


def _preact_conv3d_kernel(x_ref, w_ref, b_ref, o_ref, slab0, slab1, slab2, *,
                          D, H, WpCin, NOUT, nb, compute_dtype):
    # x_ref:  (nb, D, H, Wp*Cin)   unpadded in D/H, W halo included, lane-folded C
    # w_ref:  (9, Wp*Cin, NOUT)    banded weights, one per (kd, kh) tap
    # b_ref:  (1, NOUT)            bias tiled along W (zero in padded columns)
    # o_ref:  (nb, D*H, NOUT)      lane-dense output slab (NOUT % 128 == 0)
    # slab*:  (nb, D+2, H, Wp*Cin) kh-shifted, zero-haloed relu(x) scratch
    Dp = D + 2
    M = nb * D * H

    zrow = jnp.zeros((nb, 1, H, WpCin), compute_dtype)     # one D-halo slice
    zcol = jnp.zeros((nb, D, 1, WpCin), compute_dtype)     # one H-halo strip

    def relu(v):
        return jnp.maximum(v, 0.0).astype(compute_dtype)

    # Build the three kh-shifted, zero-haloed slabs: slab_kh[:, dd, hh, :] is
    # the zero-padded pre-activation at (d = dd-1, h = kh+hh-1); relu(0) == 0,
    # so zero padding commutes with the activation.  Every element of every
    # slab is rewritten each step on purpose: with a "parallel" batch axis
    # each TensorCore owns its own scratch, so a program_id==0-only init would
    # be wrong under v7x megacore sharding.
    for s in (slab0, slab1, slab2):
        s[:, 0:1, :, :] = zrow
        s[:, Dp - 1:Dp, :, :] = zrow
    slab1[:, 1:D + 1, :, :] = relu(x_ref[...])
    slab0[:, 1:D + 1, 1:H, :] = relu(x_ref[:, :, 0:H - 1, :])
    slab0[:, 1:D + 1, 0:1, :] = zcol
    slab2[:, 1:D + 1, 0:H - 1, :] = relu(x_ref[:, :, 1:H, :])
    slab2[:, 1:D + 1, H - 1:H, :] = zcol

    slabs = (slab0, slab1, slab2)

    def tap(kd, kh):
        # Tile-aligned view when H % 8 == 0: no slice/reshape copy per tap.
        lhs = slabs[kh][:, kd:kd + D].reshape(M, WpCin)
        return jnp.dot(lhs, w_ref[kd * 3 + kh],
                       preferred_element_type=jnp.float32)

    # 9 (kd, kh) taps; the kw tap is folded into the contraction by the banded
    # weights, so each tap is one MXU matmul with K = (W+2)*Cin.  Tap 0
    # initializes the accumulator (no explicit fill); bias is added once.
    acc = tap(0, 0)
    for t in range(1, 9):
        kd, kh = divmod(t, 3)
        acc = acc + tap(kd, kh)
    acc = acc + b_ref[...]

    o_ref[...] = acc.astype(o_ref.dtype).reshape(nb, D * H, NOUT)


def preact_conv3d_no_bn(x_ncdhw, weight, bias, *, compute_dtype=jnp.float32,
                        batch_block=None):
    """x: (N, Cin, D, H, W); weight: (Cout, Cin, 3, 3, 3); bias: (Cout,).

    compute_dtype=jnp.bfloat16 enables the native bf16 MXU input rate on
    v6e/v7x (accumulation stays f32); default f32 matches PyTorch numerics.
    """
    N, Cin, D, H, W = x_ncdhw.shape
    Cout = weight.shape[0]
    Wp = W + 2
    WpCin = Wp * Cin
    WCout = W * Cout

    # Lane-dense output: pad the output-column dim up to a multiple of 128 so
    # the kernel's store is an unmasked vst (biggest measured lever).  Skip
    # the padding only if it would more than double the output volume.
    n_out = pl.cdiv(WCout, 128) * 128
    if n_out > 2 * WCout:
        n_out = WCout            # rare awkward shapes: accept masked stores

    # Batch elements per block: fatten the MXU M dim when D*H is small, but
    # keep >= 2 grid iterations so both v7x TensorCores get work.
    if batch_block is None:
        batch_block = 1
        if D * H < 128:
            for cand in (4, 2):
                if N % cand == 0 and N // cand >= 2:
                    batch_block = cand
                    break
    nb = batch_block
    assert N % nb == 0, "batch_block must divide N"

    # One fused layout copy: NCDHW -> channels-last, W halo, fold C into lanes.
    # TODO(synk): keep activations channels-last between layers to avoid this
    # extra HBM round trip when chaining blocks.
    x = jnp.transpose(x_ncdhw, (0, 2, 3, 4, 1))                  # (N, D, H, W, Cin)
    x = jnp.pad(x, ((0, 0), (0, 0), (0, 0), (1, 1), (0, 0)))     # W halo only
    x = x.reshape(N, D, H, WpCin)

    w_band = _make_banded_weights(weight, W, n_out, compute_dtype)
    b_row = jnp.tile(bias.astype(jnp.float32), (W,))
    if n_out > WCout:
        b_row = jnp.pad(b_row, (0, n_out - WCout))
    b_row = b_row.reshape(1, n_out)

    kernel = functools.partial(
        _preact_conv3d_kernel,
        D=D, H=H, WpCin=WpCin, NOUT=n_out, nb=nb, compute_dtype=compute_dtype)

    # Per-generation VMEM budget instead of a hard-coded constant.
    try:
        vmem_cap = int(pltpu.get_tpu_info().vmem_capacity_bytes)
    except Exception:  # pragma: no cover - emulator / older jax
        vmem_cap = 64 * 1024 * 1024
    if vmem_cap >= 128 * 1024 * 1024:        # v5e / v6e
        vmem_limit = 100 * 1024 * 1024
    else:                                    # v7x (64 MiB per TensorCore)
        vmem_limit = min(56 * 1024 * 1024, vmem_cap - 8 * 1024 * 1024)

    # TODO(synk): for volumes whose single-sample working set no longer fits
    # (v7x, large D*H*W*Cin), add a D-tiled grid axis with a 1-slice halo via
    # manual make_async_copy double-buffering into the slab scratch.

    def call(invariant_kwargs):
        return pl.pallas_call(
            kernel,
            out_shape=jax.ShapeDtypeStruct((N, D * H, n_out), x_ncdhw.dtype),
            grid_spec=pltpu.PrefetchScalarGridSpec(
                num_scalar_prefetch=0,
                grid=(N // nb,),
                in_specs=[
                    pl.BlockSpec((nb, D, H, WpCin), lambda n: (n, 0, 0, 0)),
                    # Grid-invariant operands: single-buffer to halve their
                    # VMEM footprint (v7x headroom).
                    pl.BlockSpec((9, WpCin, n_out), lambda n: (0, 0, 0),
                                 **invariant_kwargs),
                    pl.BlockSpec((1, n_out), lambda n: (0, 0),
                                 **invariant_kwargs),
                ],
                out_specs=pl.BlockSpec((nb, D * H, n_out), lambda n: (n, 0, 0)),
                scratch_shapes=[pltpu.VMEM((nb, D + 2, H, WpCin), compute_dtype)
                                for _ in range(3)],
            ),
            compiler_params=pltpu.CompilerParams(
                dimension_semantics=("parallel",),
                vmem_limit_bytes=vmem_limit,
            ),
        )(x, w_band, b_row)

    try:
        out = call(dict(pipeline_mode=pl.Buffered(1)))
    except Exception:  # pragma: no cover - jax builds without pipeline_mode
        out = call({})

    # Drop the lane padding and go back to PyTorch NCDHW layout (the slice
    # fuses into the same transpose copy the wrapper already performs).
    out = out[..., :WCout].reshape(N, D, H, W, Cout)
    return jnp.transpose(out, (0, 4, 1, 2, 3))


def _reference(x_ncdhw, weight, bias):
    """Pure-JAX reference: conv3d(relu(x)) in NCDHW, matching PyTorch."""
    xr = jnp.maximum(x_ncdhw, 0.0)
    y = jax.lax.conv_general_dilated(
        xr, weight,
        window_strides=(1, 1, 1),
        padding=((1, 1), (1, 1), (1, 1)),
        dimension_numbers=("NCDHW", "OIDHW", "NCDHW"),
    )
    return y + bias.reshape(1, -1, 1, 1, 1)


if __name__ == "__main__":
    N, Cin, Cout = 2, 4, 8
    D = H = W = 8

    key = jax.random.PRNGKey(0)
    kx, kwt, kb = jax.random.split(key, 3)

    x = jax.random.normal(kx, (N, Cin, D, H, W), dtype=jnp.float32)
    fan_in = Cin * 3 * 3 * 3
    bound = 1.0 / (fan_in ** 0.5)
    weight = jax.random.uniform(kwt, (Cout, Cin, 3, 3, 3),
                                minval=-bound, maxval=bound, dtype=jnp.float32)
    bias = jax.random.uniform(kb, (Cout,), minval=-bound, maxval=bound,
                              dtype=jnp.float32)

    y = preact_conv3d_no_bn(x, weight, bias)
    y = jax.block_until_ready(y)

    y_ref = _reference(x, weight, bias)
    assert y.shape == (N, Cout, D, H, W)
    assert jnp.allclose(y, y_ref, atol=1e-4, rtol=1e-4), "mismatch vs reference"

    print("KERNEL_OK")
</pallas_src>

<mosaic_0001>
module attributes {stable_mosaic.version = 11 : i64} {
  func.func @_preact_conv3d_kernel(%arg0: i32, %arg1: memref<1x8x8x40xf32, #tpu.memory_space<vmem>>, %arg2: memref<9x40x128xf32, #tpu.memory_space<vmem>>, %arg3: memref<1x128xf32, #tpu.memory_space<vmem>>, %arg4: memref<1x64x128xf32, #tpu.memory_space<vmem>>, %arg5: memref<1x10x8x40xf32, #tpu.memory_space<vmem>>, %arg6: memref<1x10x8x40xf32, #tpu.memory_space<vmem>>, %arg7: memref<1x10x8x40xf32, #tpu.memory_space<vmem>>) attributes {dimension_semantics = [#tpu.dimension_semantics<parallel>], iteration_bounds = array<i64: 2>, scalar_prefetch = 0 : i64, scratch_operands = 3 : i64, tpu.core_type = #tpu.core_type<tc>, window_params = [{transform_indices = @transform_0, window_bounds = array<i64: 1, 8, 8, 40>}, {pipeline_mode = #tpu.pipeline_mode<synchronous>, transform_indices = @transform_1, window_bounds = array<i64: 9, 40, 128>}, {pipeline_mode = #tpu.pipeline_mode<synchronous>, transform_indices = @transform_2, window_bounds = array<i64: 1, 128>}, {transform_indices = @transform_3, window_bounds = array<i64: 1, 64, 128>}]} {
    %cst = arith.constant 0.000000e+00 : f32
    %0 = vector.broadcast %cst : f32 to vector<1x1x8x40xf32>
    %cst_0 = arith.constant 0.000000e+00 : f32
    %1 = vector.broadcast %cst_0 : f32 to vector<1x8x1x40xf32>
    %c0 = arith.constant 0 : index
    %c0_1 = arith.constant 0 : index
    %c0_2 = arith.constant 0 : index
    %c0_3 = arith.constant 0 : index
    %2 = vector.load %arg5[%c0, %c0_1, %c0_2, %c0_3] : memref<1x10x8x40xf32, #tpu.memory_space<vmem>>, vector<1x1x8x40xf32>
    tpu.vector_store %arg5[%c0, %c0_1, %c0_2, %c0_3], %0 {strides = array<i32>} : memref<1x10x8x40xf32, #tpu.memory_space<vmem>>, vector<1x1x8x40xf32>,
    %c0_4 = arith.constant 0 : index
    %c9 = arith.constant 9 : index
    %c0_5 = arith.constant 0 : index
    %c0_6 = arith.constant 0 : index
    %3 = vector.load %arg5[%c0_4, %c9, %c0_5, %c0_6] : memref<1x10x8x40xf32, #tpu.memory_space<vmem>>, vector<1x1x8x40xf32>
    tpu.vector_store %arg5[%c0_4, %c9, %c0_5, %c0_6], %0 {strides = array<i32>} : memref<1x10x8x40xf32, #tpu.memory_space<vmem>>, vector<1x1x8x40xf32>,
    %c0_7 = arith.constant 0 : index
    %c0_8 = arith.constant 0 : index
    %c0_9 = arith.constant 0 : index
    %c0_10 = arith.constant 0 : index
    %4 = vector.load %arg6[%c0_7, %c0_8, %c0_9, %c0_10] : memref<1x10x8x40xf32, #tpu.memory_space<vmem>>, vector<1x1x8x40xf32>
    tpu.vector_store %arg6[%c0_7, %c0_8, %c0_9, %c0_10], %0 {strides = array<i32>} : memref<1x10x8x40xf32, #tpu.memory_space<vmem>>, vector<1x1x8x40xf32>,
    %c0_11 = arith.constant 0 : index
    %c9_12 = arith.constant 9 : index
    %c0_13 = arith.constant 0 : index
    %c0_14 = arith.constant 0 : index
    %5 = vector.load %arg6[%c0_11, %c9_12, %c0_13, %c0_14] : memref<1x10x8x40xf32, #tpu.memory_space<vmem>>, vector<1x1x8x40xf32>
    tpu.vector_store %arg6[%c0_11, %c9_12, %c0_13, %c0_14], %0 {strides = array<i32>} : memref<1x10x8x40xf32, #tpu.memory_space<vmem>>, vector<1x1x8x40xf32>,
    %c0_15 = arith.constant 0 : index
    %c0_16 = arith.constant 0 : index
    %c0_17 = arith.constant 0 : index
    %c0_18 = arith.constant 0 : index
    %6 = vector.load %arg7[%c0_15, %c0_16, %c0_17, %c0_18] : memref<1x10x8x40xf32, #tpu.memory_space<vmem>>, vector<1x1x8x40xf32>
    tpu.vector_store %arg7[%c0_15, %c0_16, %c0_17, %c0_18], %0 {strides = array<i32>} : memref<1x10x8x40xf32, #tpu.memory_space<vmem>>, vector<1x1x8x40xf32>,
    %c0_19 = arith.constant 0 : index
    %c9_20 = arith.constant 9 : index
    %c0_21 = arith.constant 0 : index
    %c0_22 = arith.constant 0 : index
    %7 = vector.load %arg7[%c0_19, %c9_20, %c0_21, %c0_22] : memref<1x10x8x40xf32, #tpu.memory_space<vmem>>, vector<1x1x8x40xf32>
    tpu.vector_store %arg7[%c0_19, %c9_20, %c0_21, %c0_22], %0 {strides = array<i32>} : memref<1x10x8x40xf32, #tpu.memory_space<vmem>>, vector<1x1x8x40xf32>,
    %c0_23 = arith.constant 0 : index
    %c0_24 = arith.constant 0 : index
    %c0_25 = arith.constant 0 : index
    %c0_26 = arith.constant 0 : index
    %8 = vector.load %arg1[%c0_23, %c0_24, %c0_25, %c0_26] : memref<1x8x8x40xf32, #tpu.memory_space<vmem>>, vector<1x8x8x40xf32>
    %cst_27 = arith.constant 0.000000e+00 : f32
    %9 = vector.broadcast %cst_27 : f32 to vector<1x8x8x40xf32>
    %10 = arith.maximumf %8, %9 : vector<1x8x8x40xf32>
    %c0_28 = arith.constant 0 : index
    %c1 = arith.constant 1 : index
    %c0_29 = arith.constant 0 : index
    %c0_30 = arith.constant 0 : index
    %11 = vector.load %arg6[%c0_28, %c1, %c0_29, %c0_30] : memref<1x10x8x40xf32, #tpu.memory_space<vmem>>, vector<1x8x8x40xf32>
    tpu.vector_store %arg6[%c0_28, %c1, %c0_29, %c0_30], %10 {strides = array<i32>} : memref<1x10x8x40xf32, #tpu.memory_space<vmem>>, vector<1x8x8x40xf32>,
    %c0_31 = arith.constant 0 : index
    %c0_32 = arith.constant 0 : index
    %c0_33 = arith.constant 0 : index
    %c0_34 = arith.constant 0 : index
    %12 = vector.load %arg1[%c0_31, %c0_32, %c0_33, %c0_34] : memref<1x8x8x40xf32, #tpu.memory_space<vmem>>, vector<1x8x7x40xf32>
    %cst_35 = arith.constant 0.000000e+00 : f32
    %13 = vector.broadcast %cst_35 : f32 to vector<1x8x7x40xf32>
    %14 = arith.maximumf %12, %13 : vector<1x8x7x40xf32>
    %c0_36 = arith.constant 0 : index
    %c1_37 = arith.constant 1 : index
    %c1_38 = arith.constant 1 : index
    %c0_39 = arith.constant 0 : index
    %15 = vector.load %arg5[%c0_36, %c1_37, %c1_38, %c0_39] : memref<1x10x8x40xf32, #tpu.memory_space<vmem>>, vector<1x8x7x40xf32>
    tpu.vector_store %arg5[%c0_36, %c1_37, %c1_38, %c0_39], %14 {strides = array<i32>} : memref<1x10x8x40xf32, #tpu.memory_space<vmem>>, vector<1x8x7x40xf32>,
    %c0_40 = arith.constant 0 : index
    %c1_41 = arith.constant 1 : index
    %c0_42 = arith.constant 0 : index
    %c0_43 = arith.constant 0 : index
    %16 = vector.load %arg5[%c0_40, %c1_41, %c0_42, %c0_43] : memref<1x10x8x40xf32, #tpu.memory_space<vmem>>, vector<1x8x1x40xf32>
    tpu.vector_store %arg5[%c0_40, %c1_41, %c0_42, %c0_43], %1 {strides = array<i32>} : memref<1x10x8x40xf32, #tpu.memory_space<vmem>>, vector<1x8x1x40xf32>,
    %c0_44 = arith.constant 0 : index
    %c0_45 = arith.constant 0 : index
    %c1_46 = arith.constant 1 : index
    %c0_47 = arith.constant 0 : index
    %17 = vector.load %arg1[%c0_44, %c0_45, %c1_46, %c0_47] : memref<1x8x8x40xf32, #tpu.memory_space<vmem>>, vector<1x8x7x40xf32>
    %cst_48 = arith.constant 0.000000e+00 : f32
    %18 = vector.broadcast %cst_48 : f32 to vector<1x8x7x40xf32>
    %19 = arith.maximumf %17, %18 : vector<1x8x7x40xf32>
    %c0_49 = arith.constant 0 : index
    %c1_50 = arith.constant 1 : index
    %c0_51 = arith.constant 0 : index
    %c0_52 = arith.constant 0 : index
    %20 = vector.load %arg7[%c0_49, %c1_50, %c0_51, %c0_52] : memref<1x10x8x40xf32, #tpu.memory_space<vmem>>, vector<1x8x7x40xf32>
    tpu.vector_store %arg7[%c0_49, %c1_50, %c0_51, %c0_52], %19 {strides = array<i32>} : memref<1x10x8x40xf32, #tpu.memory_space<vmem>>, vector<1x8x7x40xf32>,
    %c0_53 = arith.constant 0 : index
    %c1_54 = arith.constant 1 : index
    %c7 = arith.constant 7 : index
    %c0_55 = arith.constant 0 : index
    %21 = vector.load %arg7[%c0_53, %c1_54, %c7, %c0_55] : memref<1x10x8x40xf32, #tpu.memory_space<vmem>>, vector<1x8x1x40xf32>
    tpu.vector_store %arg7[%c0_53, %c1_54, %c7, %c0_55], %1 {strides = array<i32>} : memref<1x10x8x40xf32, #tpu.memory_space<vmem>>, vector<1x8x1x40xf32>,
    %c0_56 = arith.constant 0 : index
    %c0_57 = arith.constant 0 : index
    %c0_58 = arith.constant 0 : index
    %c0_59 = arith.constant 0 : index
    %22 = vector.load %arg5[%c0_56, %c0_57, %c0_58, %c0_59] : memref<1x10x8x40xf32, #tpu.memory_space<vmem>>, vector<1x8x8x40xf32>
    %23 = vector.shape_cast %22 : vector<1x8x8x40xf32> to vector<64x40xf32>
    %c0_60 = arith.constant 0 : index
    %c0_61 = arith.constant 0 : index
    %c0_62 = arith.constant 0 : index
    %24 = vector.load %arg2[%c0_60, %c0_61, %c0_62] : memref<9x40x128xf32, #tpu.memory_space<vmem>>, vector<1x40x128xf32>
    %25 = vector.shape_cast %24 : vector<1x40x128xf32> to vector<40x128xf32>
    %cst_63 = arith.constant dense<0.000000e+00> : vector<64x128xf32>
    %26 = tpu.matmul %23, %25, %cst_63 {dimension_numbers = #tpu.dot_dimension_numbers<[1], [0], [0], [1], [0, 0, 1, 1], [], []>} : vector<64x40xf32>, vector<40x128xf32>, vector<64x128xf32> -> vector<64x128xf32>
    %c0_64 = arith.constant 0 : index
    %c0_65 = arith.constant 0 : index
    %c0_66 = arith.constant 0 : index
    %c0_67 = arith.constant 0 : index
    %27 = vector.load %arg6[%c0_64, %c0_65, %c0_66, %c0_67] : memref<1x10x8x40xf32, #tpu.memory_space<vmem>>, vector<1x8x8x40xf32>
    %28 = vector.shape_cast %27 : vector<1x8x8x40xf32> to vector<64x40xf32>
    %c1_68 = arith.constant 1 : index
    %c0_69 = arith.constant 0 : index
    %c0_70 = arith.constant 0 : index
    %29 = vector.load %arg2[%c1_68, %c0_69, %c0_70] : memref<9x40x128xf32, #tpu.memory_space<vmem>>, vector<1x40x128xf32>
    %30 = vector.shape_cast %29 : vector<1x40x128xf32> to vector<40x128xf32>
    %cst_71 = arith.constant dense<0.000000e+00> : vector<64x128xf32>
    %31 = tpu.matmul %28, %30, %cst_71 {dimension_numbers = #tpu.dot_dimension_numbers<[1], [0], [0], [1], [0, 0, 1, 1], [], []>} : vector<64x40xf32>, vector<40x128xf32>, vector<64x128xf32> -> vector<64x128xf32>
    %32 = arith.addf %26, %31 : vector<64x128xf32>
    %c0_72 = arith.constant 0 : index
    %c0_73 = arith.constant 0 : index
    %c0_74 = arith.constant 0 : index
    %c0_75 = arith.constant 0 : index
    %33 = vector.load %arg7[%c0_72, %c0_73, %c0_74, %c0_75] : memref<1x10x8x40xf32, #tpu.memory_space<vmem>>, vector<1x8x8x40xf32>
    %34 = vector.shape_cast %33 : vector<1x8x8x40xf32> to vector<64x40xf32>
    %c2 = arith.constant 2 : index
    %c0_76 = arith.constant 0 : index
    %c0_77 = arith.constant 0 : index
    %35 = vector.load %arg2[%c2, %c0_76, %c0_77] : memref<9x40x128xf32, #tpu.memory_space<vmem>>, vector<1x40x128xf32>
    %36 = vector.shape_cast %35 : vector<1x40x128xf32> to vector<40x128xf32>
    %cst_78 = arith.constant dense<0.000000e+00> : vector<64x128xf32>
    %37 = tpu.matmul %34, %36, %cst_78 {dimension_numbers = #tpu.dot_dimension_numbers<[1], [0], [0], [1], [0, 0, 1, 1], [], []>} : vector<64x40xf32>, vector<40x128xf32>, vector<64x128xf32> -> vector<64x128xf32>
    %38 = arith.addf %32, %37 : vector<64x128xf32>
    %c0_79 = arith.constant 0 : index
    %c1_80 = arith.constant 1 : index
    %c0_81 = arith.constant 0 : index
    %c0_82 = arith.constant 0 : index
    %39 = vector.load %arg5[%c0_79, %c1_80, %c0_81, %c0_82] : memref<1x10x8x40xf32, #tpu.memory_space<vmem>>, vector<1x8x8x40xf32>
    %40 = vector.shape_cast %39 : vector<1x8x8x40xf32> to vector<64x40xf32>
    %c3 = arith.constant 3 : index
    %c0_83 = arith.constant 0 : index
    %c0_84 = arith.constant 0 : index
    %41 = vector.load %arg2[%c3, %c0_83, %c0_84] : memref<9x40x128xf32, #tpu.memory_space<vmem>>, vector<1x40x128xf32>
    %42 = vector.shape_cast %41 : vector<1x40x128xf32> to vector<40x128xf32>
    %cst_85 = arith.constant dense<0.000000e+00> : vector<64x128xf32>
    %43 = tpu.matmul %40, %42, %cst_85 {dimension_numbers = #tpu.dot_dimension_numbers<[1], [0], [0], [1], [0, 0, 1, 1], [], []>} : vector<64x40xf32>, vector<40x128xf32>, vector<64x128xf32> -> vector<64x128xf32>
    %44 = arith.addf %38, %43 : vector<64x128xf32>
    %c0_86 = arith.constant 0 : index
    %c1_87 = arith.constant 1 : index
    %c0_88 = arith.constant 0 : index
    %c0_89 = arith.constant 0 : index
    %45 = vector.load %arg6[%c0_86, %c1_87, %c0_88, %c0_89] : memref<1x10x8x40xf32, #tpu.memory_space<vmem>>, vector<1x8x8x40xf32>
    %46 = vector.shape_cast %45 : vector<1x8x8x40xf32> to vector<64x40xf32>
    %c4 = arith.constant 4 : index
    %c0_90 = arith.constant 0 : index
    %c0_91 = arith.constant 0 : index
    %47 = vector.load %arg2[%c4, %c0_90, %c0_91] : memref<9x40x128xf32, #tpu.memory_space<vmem>>, vector<1x40x128xf32>
    %48 = vector.shape_cast %47 : vector<1x40x128xf32> to vector<40x128xf32>
    %cst_92 = arith.constant dense<0.000000e+00> : vector<64x128xf32>
    %49 = tpu.matmul %46, %48, %cst_92 {dimension_numbers = #tpu.dot_dimension_numbers<[1], [0], [0], [1], [0, 0, 1, 1], [], []>} : vector<64x40xf32>, vector<40x128xf32>, vector<64x128xf32> -> vector<64x128xf32>
    %50 = arith.addf %44, %49 : vector<64x128xf32>
    %c0_93 = arith.constant 0 : index
    %c1_94 = arith.constant 1 : index
    %c0_95 = arith.constant 0 : index
    %c0_96 = arith.constant 0 : index
    %51 = vector.load %arg7[%c0_93, %c1_94, %c0_95, %c0_96] : memref<1x10x8x40xf32, #tpu.memory_space<vmem>>, vector<1x8x8x40xf32>
    %52 = vector.shape_cast %51 : vector<1x8x8x40xf32> to vector<64x40xf32>
    %c5 = arith.constant 5 : index
    %c0_97 = arith.constant 0 : index
    %c0_98 = arith.constant 0 : index
    %53 = vector.load %arg2[%c5, %c0_97, %c0_98] : memref<9x40x128xf32, #tpu.memory_space<vmem>>, vector<1x40x128xf32>
    %54 = vector.shape_cast %53 : vector<1x40x128xf32> to vector<40x128xf32>
    %cst_99 = arith.constant dense<0.000000e+00> : vector<64x128xf32>
    %55 = tpu.matmul %52, %54, %cst_99 {dimension_numbers = #tpu.dot_dimension_numbers<[1], [0], [0], [1], [0, 0, 1, 1], [], []>} : vector<64x40xf32>, vector<40x128xf32>, vector<64x128xf32> -> vector<64x128xf32>
    %56 = arith.addf %50, %55 : vector<64x128xf32>
    %c0_100 = arith.constant 0 : index
    %c2_101 = arith.constant 2 : index
    %c0_102 = arith.constant 0 : index
    %c0_103 = arith.constant 0 : index
    %57 = vector.load %arg5[%c0_100, %c2_101, %c0_102, %c0_103] : memref<1x10x8x40xf32, #tpu.memory_space<vmem>>, vector<1x8x8x40xf32>
    %58 = vector.shape_cast %57 : vector<1x8x8x40xf32> to vector<64x40xf32>
    %c6 = arith.constant 6 : index
    %c0_104 = arith.constant 0 : index
    %c0_105 = arith.constant 0 : index
    %59 = vector.load %arg2[%c6, %c0_104, %c0_105] : memref<9x40x128xf32, #tpu.memory_space<vmem>>, vector<1x40x128xf32>
    %60 = vector.shape_cast %59 : vector<1x40x128xf32> to vector<40x128xf32>
    %cst_106 = arith.constant dense<0.000000e+00> : vector<64x128xf32>
    %61 = tpu.matmul %58, %60, %cst_106 {dimension_numbers = #tpu.dot_dimension_numbers<[1], [0], [0], [1], [0, 0, 1, 1], [], []>} : vector<64x40xf32>, vector<40x128xf32>, vector<64x128xf32> -> vector<64x128xf32>
    %62 = arith.addf %56, %61 : vector<64x128xf32>
    %c0_107 = arith.constant 0 : index
    %c2_108 = arith.constant 2 : index
    %c0_109 = arith.constant 0 : index
    %c0_110 = arith.constant 0 : index
    %63 = vector.load %arg6[%c0_107, %c2_108, %c0_109, %c0_110] : memref<1x10x8x40xf32, #tpu.memory_space<vmem>>, vector<1x8x8x40xf32>
    %64 = vector.shape_cast %63 : vector<1x8x8x40xf32> to vector<64x40xf32>
    %c7_111 = arith.constant 7 : index
    %c0_112 = arith.constant 0 : index
    %c0_113 = arith.constant 0 : index
    %65 = vector.load %arg2[%c7_111, %c0_112, %c0_113] : memref<9x40x128xf32, #tpu.memory_space<vmem>>, vector<1x40x128xf32>
    %66 = vector.shape_cast %65 : vector<1x40x128xf32> to vector<40x128xf32>
    %cst_114 = arith.constant dense<0.000000e+00> : vector<64x128xf32>
    %67 = tpu.matmul %64, %66, %cst_114 {dimension_numbers = #tpu.dot_dimension_numbers<[1], [0], [0], [1], [0, 0, 1, 1], [], []>} : vector<64x40xf32>, vector<40x128xf32>, vector<64x128xf32> -> vector<64x128xf32>
    %68 = arith.addf %62, %67 : vector<64x128xf32>
    %c0_115 = arith.constant 0 : index
    %c2_116 = arith.constant 2 : index
    %c0_117 = arith.constant 0 : index
    %c0_118 = arith.constant 0 : index
    %69 = vector.load %arg7[%c0_115, %c2_116, %c0_117, %c0_118] : memref<1x10x8x40xf32, #tpu.memory_space<vmem>>, vector<1x8x8x40xf32>
    %70 = vector.shape_cast %69 : vector<1x8x8x40xf32> to vector<64x40xf32>
    %c8 = arith.constant 8 : index
    %c0_119 = arith.constant 0 : index
    %c0_120 = arith.constant 0 : index
    %71 = vector.load %arg2[%c8, %c0_119, %c0_120] : memref<9x40x128xf32, #tpu.memory_space<vmem>>, vector<1x40x128xf32>
    %72 = vector.shape_cast %71 : vector<1x40x128xf32> to vector<40x128xf32>
    %cst_121 = arith.constant dense<0.000000e+00> : vector<64x128xf32>
    %73 = tpu.matmul %70, %72, %cst_121 {dimension_numbers = #tpu.dot_dimension_numbers<[1], [0], [0], [1], [0, 0, 1, 1], [], []>} : vector<64x40xf32>, vector<40x128xf32>, vector<64x128xf32> -> vector<64x128xf32>
    %74 = arith.addf %68, %73 : vector<64x128xf32>
    %c0_122 = arith.constant 0 : index
    %c0_123 = arith.constant 0 : index
    %75 = vector.load %arg3[%c0_122, %c0_123] : memref<1x128xf32, #tpu.memory_space<vmem>>, vector<1x128xf32>
    %76 = vector.broadcast %75 : vector<1x128xf32> to vector<64x128xf32>
    %77 = arith.addf %74, %76 : vector<64x128xf32>
    %78 = vector.shape_cast %77 : vector<64x128xf32> to vector<1x64x128xf32>
    %c0_124 = arith.constant 0 : index
    %c0_125 = arith.constant 0 : index
    %c0_126 = arith.constant 0 : index
    %79 = vector.load %arg4[%c0_124, %c0_125, %c0_126] : memref<1x64x128xf32, #tpu.memory_space<vmem>>, vector<1x64x128xf32>
    tpu.vector_store %arg4[%c0_124, %c0_125, %c0_126], %78 {strides = array<i32>} : memref<1x64x128xf32, #tpu.memory_space<vmem>>, vector<1x64x128xf32>,
    return
  }
  func.func @transform_0(%arg0: i32) -> (i32, i32, i32, i32) {
    %c0_i32 = arith.constant 0 : i32
    %c0_i32_0 = arith.constant 0 : i32
    %c0_i32_1 = arith.constant 0 : i32
    %c0_i32_2 = arith.constant 0 : i32
    return %arg0, %c0_i32, %c0_i32_0, %c0_i32_1 : i32, i32, i32, i32
  }
  func.func @transform_1(%arg0: i32) -> (i32, i32, i32) {
    %c0_i32 = arith.constant 0 : i32
    %c0_i32_0 = arith.constant 0 : i32
    %c0_i32_1 = arith.constant 0 : i32
    %c0_i32_2 = arith.constant 0 : i32
    return %c0_i32, %c0_i32_0, %c0_i32_1 : i32, i32, i32
  }
  func.func @transform_2(%arg0: i32) -> (i32, i32) {
    %c0_i32 = arith.constant 0 : i32
    %c0_i32_0 = arith.constant 0 : i32
    %c0_i32_1 = arith.constant 0 : i32
    return %c0_i32, %c0_i32_0 : i32, i32
  }
  func.func @transform_3(%arg0: i32) -> (i32, i32, i32) {
    %c0_i32 = arith.constant 0 : i32
    %c0_i32_0 = arith.constant 0 : i32
    %c0_i32_1 = arith.constant 0 : i32
    return %arg0, %c0_i32, %c0_i32_0 : i32, i32, i32
  }
}

module attributes {stable_mosaic.version = 11 : i64} {
  func.func @_preact_conv3d_kernel(%arg0: i32, %arg1: memref<1x8x8x40xf32, #tpu.memory_space<vmem>>, %arg2: memref<9x40x128xf32, #tpu.memory_space<vmem>>, %arg3: memref<1x128xf32, #tpu.memory_space<vmem>>, %arg4: memref<1x64x128xf32, #tpu.memory_space<vmem>>, %arg5: memref<1x10x8x40xf32, #tpu.memory_space<vmem>>, %arg6: memref<1x10x8x40xf32, #tpu.memory_space<vmem>>, %arg7: memref<1x10x8x40xf32, #tpu.memory_space<vmem>>) attributes {dimension_semantics = [#tpu.dimension_semantics<parallel>], iteration_bounds = array<i64: 2>, scalar_prefetch = 0 : i64, scratch_operands = 3 : i64, tpu.core_type = #tpu.core_type<tc>, window_params = [{transform_indices = @transform_0, window_bounds = array<i64: 1, 8, 8, 40>}, {pipeline_mode = #tpu.pipeline_mode<synchronous>, transform_indices = @transform_1, window_bounds = array<i64: 9, 40, 128>}, {pipeline_mode = #tpu.pipeline_mode<synchronous>, transform_indices = @transform_2, window_bounds = array<i64: 1, 128>}, {transform_indices = @transform_3, window_bounds = array<i64: 1, 64, 128>}]} {
    %cst = arith.constant 0.000000e+00 : f32
    %0 = vector.broadcast %cst : f32 to vector<1x1x8x40xf32>
    %cst_0 = arith.constant 0.000000e+00 : f32
    %1 = vector.broadcast %cst_0 : f32 to vector<1x8x1x40xf32>
    %c0 = arith.constant 0 : index
    %c0_1 = arith.constant 0 : index
    %c0_2 = arith.constant 0 : index
    %c0_3 = arith.constant 0 : index
    %2 = vector.load %arg5[%c0, %c0_1, %c0_2, %c0_3] : memref<1x10x8x40xf32, #tpu.memory_space<vmem>>, vector<1x1x8x40xf32>
    tpu.vector_store %arg5[%c0, %c0_1, %c0_2, %c0_3], %0 {strides = array<i32>} : memref<1x10x8x40xf32, #tpu.memory_space<vmem>>, vector<1x1x8x40xf32>,
    %c0_4 = arith.constant 0 : index
    %c9 = arith.constant 9 : index
    %c0_5 = arith.constant 0 : index
    %c0_6 = arith.constant 0 : index
    %3 = vector.load %arg5[%c0_4, %c9, %c0_5, %c0_6] : memref<1x10x8x40xf32, #tpu.memory_space<vmem>>, vector<1x1x8x40xf32>
    tpu.vector_store %arg5[%c0_4, %c9, %c0_5, %c0_6], %0 {strides = array<i32>} : memref<1x10x8x40xf32, #tpu.memory_space<vmem>>, vector<1x1x8x40xf32>,
    %c0_7 = arith.constant 0 : index
    %c0_8 = arith.constant 0 : index
    %c0_9 = arith.constant 0 : index
    %c0_10 = arith.constant 0 : index
    %4 = vector.load %arg6[%c0_7, %c0_8, %c0_9, %c0_10] : memref<1x10x8x40xf32, #tpu.memory_space<vmem>>, vector<1x1x8x40xf32>
    tpu.vector_store %arg6[%c0_7, %c0_8, %c0_9, %c0_10], %0 {strides = array<i32>} : memref<1x10x8x40xf32, #tpu.memory_space<vmem>>, vector<1x1x8x40xf32>,
    %c0_11 = arith.constant 0 : index
    %c9_12 = arith.constant 9 : index
    %c0_13 = arith.constant 0 : index
    %c0_14 = arith.constant 0 : index
    %5 = vector.load %arg6[%c0_11, %c9_12, %c0_13, %c0_14] : memref<1x10x8x40xf32, #tpu.memory_space<vmem>>, vector<1x1x8x40xf32>
    tpu.vector_store %arg6[%c0_11, %c9_12, %c0_13, %c0_14], %0 {strides = array<i32>} : memref<1x10x8x40xf32, #tpu.memory_space<vmem>>, vector<1x1x8x40xf32>,
    %c0_15 = arith.constant 0 : index
    %c0_16 = arith.constant 0 : index
    %c0_17 = arith.constant 0 : index
    %c0_18 = arith.constant 0 : index
    %6 = vector.load %arg7[%c0_15, %c0_16, %c0_17, %c0_18] : memref<1x10x8x40xf32, #tpu.memory_space<vmem>>, vector<1x1x8x40xf32>
    tpu.vector_store %arg7[%c0_15, %c0_16, %c0_17, %c0_18], %0 {strides = array<i32>} : memref<1x10x8x40xf32, #tpu.memory_space<vmem>>, vector<1x1x8x40xf32>,
    %c0_19 = arith.constant 0 : index
    %c9_20 = arith.constant 9 : index
    %c0_21 = arith.constant 0 : index
    %c0_22 = arith.constant 0 : index
    %7 = vector.load %arg7[%c0_19, %c9_20, %c0_21, %c0_22] : memref<1x10x8x40xf32, #tpu.memory_space<vmem>>, vector<1x1x8x40xf32>
    tpu.vector_store %arg7[%c0_19, %c9_20, %c0_21, %c0_22], %0 {strides = array<i32>} : memref<1x10x8x40xf32, #tpu.memory_space<vmem>>, vector<1x1x8x40xf32>,
    %c0_23 = arith.constant 0 : index
    %c0_24 = arith.constant 0 : index
    %c0_25 = arith.constant 0 : index
    %c0_26 = arith.constant 0 : index
    %8 = vector.load %arg1[%c0_23, %c0_24, %c0_25, %c0_26] : memref<1x8x8x40xf32, #tpu.memory_space<vmem>>, vector<1x8x8x40xf32>
    %cst_27 = arith.constant 0.000000e+00 : f32
    %9 = vector.broadcast %cst_27 : f32 to vector<1x8x8x40xf32>
    %10 = arith.maximumf %8, %9 : vector<1x8x8x40xf32>
    %c0_28 = arith.constant 0 : index
    %c1 = arith.constant 1 : index
    %c0_29 = arith.constant 0 : index
    %c0_30 = arith.constant 0 : index
    %11 = vector.load %arg6[%c0_28, %c1, %c0_29, %c0_30] : memref<1x10x8x40xf32, #tpu.memory_space<vmem>>, vector<1x8x8x40xf32>
    tpu.vector_store %arg6[%c0_28, %c1, %c0_29, %c0_30], %10 {strides = array<i32>} : memref<1x10x8x40xf32, #tpu.memory_space<vmem>>, vector<1x8x8x40xf32>,
    %c0_31 = arith.constant 0 : index
    %c0_32 = arith.constant 0 : index
    %c0_33 = arith.constant 0 : index
    %c0_34 = arith.constant 0 : index
    %12 = vector.load %arg1[%c0_31, %c0_32, %c0_33, %c0_34] : memref<1x8x8x40xf32, #tpu.memory_space<vmem>>, vector<1x8x7x40xf32>
    %cst_35 = arith.constant 0.000000e+00 : f32
    %13 = vector.broadcast %cst_35 : f32 to vector<1x8x7x40xf32>
    %14 = arith.maximumf %12, %13 : vector<1x8x7x40xf32>
    %c0_36 = arith.constant 0 : index
    %c1_37 = arith.constant 1 : index
    %c1_38 = arith.constant 1 : index
    %c0_39 = arith.constant 0 : index
    %15 = vector.load %arg5[%c0_36, %c1_37, %c1_38, %c0_39] : memref<1x10x8x40xf32, #tpu.memory_space<vmem>>, vector<1x8x7x40xf32>
    tpu.vector_store %arg5[%c0_36, %c1_37, %c1_38, %c0_39], %14 {strides = array<i32>} : memref<1x10x8x40xf32, #tpu.memory_space<vmem>>, vector<1x8x7x40xf32>,
    %c0_40 = arith.constant 0 : index
    %c1_41 = arith.constant 1 : index
    %c0_42 = arith.constant 0 : index
    %c0_43 = arith.constant 0 : index
    %16 = vector.load %arg5[%c0_40, %c1_41, %c0_42, %c0_43] : memref<1x10x8x40xf32, #tpu.memory_space<vmem>>, vector<1x8x1x40xf32>
    tpu.vector_store %arg5[%c0_40, %c1_41, %c0_42, %c0_43], %1 {strides = array<i32>} : memref<1x10x8x40xf32, #tpu.memory_space<vmem>>, vector<1x8x1x40xf32>,
    %c0_44 = arith.constant 0 : index
    %c0_45 = arith.constant 0 : index
    %c1_46 = arith.constant 1 : index
    %c0_47 = arith.constant 0 : index
    %17 = vector.load %arg1[%c0_44, %c0_45, %c1_46, %c0_47] : memref<1x8x8x40xf32, #tpu.memory_space<vmem>>, vector<1x8x7x40xf32>
    %cst_48 = arith.constant 0.000000e+00 : f32
    %18 = vector.broadcast %cst_48 : f32 to vector<1x8x7x40xf32>
    %19 = arith.maximumf %17, %18 : vector<1x8x7x40xf32>
    %c0_49 = arith.constant 0 : index
    %c1_50 = arith.constant 1 : index
    %c0_51 = arith.constant 0 : index
    %c0_52 = arith.constant 0 : index
    %20 = vector.load %arg7[%c0_49, %c1_50, %c0_51, %c0_52] : memref<1x10x8x40xf32, #tpu.memory_space<vmem>>, vector<1x8x7x40xf32>
    tpu.vector_store %arg7[%c0_49, %c1_50, %c0_51, %c0_52], %19 {strides = array<i32>} : memref<1x10x8x40xf32, #tpu.memory_space<vmem>>, vector<1x8x7x40xf32>,
    %c0_53 = arith.constant 0 : index
    %c1_54 = arith.constant 1 : index
    %c7 = arith.constant 7 : index
    %c0_55 = arith.constant 0 : index
    %21 = vector.load %arg7[%c0_53, %c1_54, %c7, %c0_55] : memref<1x10x8x40xf32, #tpu.memory_space<vmem>>, vector<1x8x1x40xf32>
    tpu.vector_store %arg7[%c0_53, %c1_54, %c7, %c0_55], %1 {strides = array<i32>} : memref<1x10x8x40xf32, #tpu.memory_space<vmem>>, vector<1x8x1x40xf32>,
    %c0_56 = arith.constant 0 : index
    %c0_57 = arith.constant 0 : index
    %c0_58 = arith.constant 0 : index
    %c0_59 = arith.constant 0 : index
    %22 = vector.load %arg5[%c0_56, %c0_57, %c0_58, %c0_59] : memref<1x10x8x40xf32, #tpu.memory_space<vmem>>, vector<1x8x8x40xf32>
    %23 = vector.shape_cast %22 : vector<1x8x8x40xf32> to vector<64x40xf32>
    %c0_60 = arith.constant 0 : index
    %c0_61 = arith.constant 0 : index
    %c0_62 = arith.constant 0 : index
    %24 = vector.load %arg2[%c0_60, %c0_61, %c0_62] : memref<9x40x128xf32, #tpu.memory_space<vmem>>, vector<1x40x128xf32>
    %25 = vector.shape_cast %24 : vector<1x40x128xf32> to vector<40x128xf32>
    %cst_63 = arith.constant dense<0.000000e+00> : vector<64x128xf32>
    %26 = tpu.matmul %23, %25, %cst_63 {dimension_numbers = #tpu.dot_dimension_numbers<[1], [0], [0], [1], [0, 0, 1, 1], [], []>} : vector<64x40xf32>, vector<40x128xf32>, vector<64x128xf32> -> vector<64x128xf32>
    %c0_64 = arith.constant 0 : index
    %c0_65 = arith.constant 0 : index
    %c0_66 = arith.constant 0 : index
    %c0_67 = arith.constant 0 : index
    %27 = vector.load %arg6[%c0_64, %c0_65, %c0_66, %c0_67] : memref<1x10x8x40xf32, #tpu.memory_space<vmem>>, vector<1x8x8x40xf32>
    %28 = vector.shape_cast %27 : vector<1x8x8x40xf32> to vector<64x40xf32>
    %c1_68 = arith.constant 1 : index
    %c0_69 = arith.constant 0 : index
    %c0_70 = arith.constant 0 : index
    %29 = vector.load %arg2[%c1_68, %c0_69, %c0_70] : memref<9x40x128xf32, #tpu.memory_space<vmem>>, vector<1x40x128xf32>
    %30 = vector.shape_cast %29 : vector<1x40x128xf32> to vector<40x128xf32>
    %cst_71 = arith.constant dense<0.000000e+00> : vector<64x128xf32>
    %31 = tpu.matmul %28, %30, %cst_71 {dimension_numbers = #tpu.dot_dimension_numbers<[1], [0], [0], [1], [0, 0, 1, 1], [], []>} : vector<64x40xf32>, vector<40x128xf32>, vector<64x128xf32> -> vector<64x128xf32>
    %32 = arith.addf %26, %31 : vector<64x128xf32>
    %c0_72 = arith.constant 0 : index
    %c0_73 = arith.constant 0 : index
    %c0_74 = arith.constant 0 : index
    %c0_75 = arith.constant 0 : index
    %33 = vector.load %arg7[%c0_72, %c0_73, %c0_74, %c0_75] : memref<1x10x8x40xf32, #tpu.memory_space<vmem>>, vector<1x8x8x40xf32>
    %34 = vector.shape_cast %33 : vector<1x8x8x40xf32> to vector<64x40xf32>
    %c2 = arith.constant 2 : index
    %c0_76 = arith.constant 0 : index
    %c0_77 = arith.constant 0 : index
    %35 = vector.load %arg2[%c2, %c0_76, %c0_77] : memref<9x40x128xf32, #tpu.memory_space<vmem>>, vector<1x40x128xf32>
    %36 = vector.shape_cast %35 : vector<1x40x128xf32> to vector<40x128xf32>
    %cst_78 = arith.constant dense<0.000000e+00> : vector<64x128xf32>
    %37 = tpu.matmul %34, %36, %cst_78 {dimension_numbers = #tpu.dot_dimension_numbers<[1], [0], [0], [1], [0, 0, 1, 1], [], []>} : vector<64x40xf32>, vector<40x128xf32>, vector<64x128xf32> -> vector<64x128xf32>
    %38 = arith.addf %32, %37 : vector<64x128xf32>
    %c0_79 = arith.constant 0 : index
    %c1_80 = arith.constant 1 : index
    %c0_81 = arith.constant 0 : index
    %c0_82 = arith.constant 0 : index
    %39 = vector.load %arg5[%c0_79, %c1_80, %c0_81, %c0_82] : memref<1x10x8x40xf32, #tpu.memory_space<vmem>>, vector<1x8x8x40xf32>
    %40 = vector.shape_cast %39 : vector<1x8x8x40xf32> to vector<64x40xf32>
    %c3 = arith.constant 3 : index
    %c0_83 = arith.constant 0 : index
    %c0_84 = arith.constant 0 : index
    %41 = vector.load %arg2[%c3, %c0_83, %c0_84] : memref<9x40x128xf32, #tpu.memory_space<vmem>>, vector<1x40x128xf32>
    %42 = vector.shape_cast %41 : vector<1x40x128xf32> to vector<40x128xf32>
    %cst_85 = arith.constant dense<0.000000e+00> : vector<64x128xf32>
    %43 = tpu.matmul %40, %42, %cst_85 {dimension_numbers = #tpu.dot_dimension_numbers<[1], [0], [0], [1], [0, 0, 1, 1], [], []>} : vector<64x40xf32>, vector<40x128xf32>, vector<64x128xf32> -> vector<64x128xf32>
    %44 = arith.addf %38, %43 : vector<64x128xf32>
    %c0_86 = arith.constant 0 : index
    %c1_87 = arith.constant 1 : index
    %c0_88 = arith.constant 0 : index
    %c0_89 = arith.constant 0 : index
    %45 = vector.load %arg6[%c0_86, %c1_87, %c0_88, %c0_89] : memref<1x10x8x40xf32, #tpu.memory_space<vmem>>, vector<1x8x8x40xf32>
    %46 = vector.shape_cast %45 : vector<1x8x8x40xf32> to vector<64x40xf32>
    %c4 = arith.constant 4 : index
    %c0_90 = arith.constant 0 : index
    %c0_91 = arith.constant 0 : index
    %47 = vector.load %arg2[%c4, %c0_90, %c0_91] : memref<9x40x128xf32, #tpu.memory_space<vmem>>, vector<1x40x128xf32>
    %48 = vector.shape_cast %47 : vector<1x40x128xf32> to vector<40x128xf32>
    %cst_92 = arith.constant dense<0.000000e+00> : vector<64x128xf32>
    %49 = tpu.matmul %46, %48, %cst_92 {dimension_numbers = #tpu.dot_dimension_numbers<[1], [0], [0], [1], [0, 0, 1, 1], [], []>} : vector<64x40xf32>, vector<40x128xf32>, vector<64x128xf32> -> vector<64x128xf32>
    %50 = arith.addf %44, %49 : vector<64x128xf32>
    %c0_93 = arith.constant 0 : index
    %c1_94 = arith.constant 1 : index
    %c0_95 = arith.constant 0 : index
    %c0_96 = arith.constant 0 : index
    %51 = vector.load %arg7[%c0_93, %c1_94, %c0_95, %c0_96] : memref<1x10x8x40xf32, #tpu.memory_space<vmem>>, vector<1x8x8x40xf32>
    %52 = vector.shape_cast %51 : vector<1x8x8x40xf32> to vector<64x40xf32>
    %c5 = arith.constant 5 : index
    %c0_97 = arith.constant 0 : index
    %c0_98 = arith.constant 0 : index
    %53 = vector.load %arg2[%c5, %c0_97, %c0_98] : memref<9x40x128xf32, #tpu.memory_space<vmem>>, vector<1x40x128xf32>
    %54 = vector.shape_cast %53 : vector<1x40x128xf32> to vector<40x128xf32>
    %cst_99 = arith.constant dense<0.000000e+00> : vector<64x128xf32>
    %55 = tpu.matmul %52, %54, %cst_99 {dimension_numbers = #tpu.dot_dimension_numbers<[1], [0], [0], [1], [0, 0, 1, 1], [], []>} : vector<64x40xf32>, vector<40x128xf32>, vector<64x128xf32> -> vector<64x128xf32>
    %56 = arith.addf %50, %55 : vector<64x128xf32>
    %c0_100 = arith.constant 0 : index
    %c2_101 = arith.constant 2 : index
    %c0_102 = arith.constant 0 : index
    %c0_103 = arith.constant 0 : index
    %57 = vector.load %arg5[%c0_100, %c2_101, %c0_102, %c0_103] : memref<1x10x8x40xf32, #tpu.memory_space<vmem>>, vector<1x8x8x40xf32>
    %58 = vector.shape_cast %57 : vector<1x8x8x40xf32> to vector<64x40xf32>
    %c6 = arith.constant 6 : index
    %c0_104 = arith.constant 0 : index
    %c0_105 = arith.constant 0 : index
    %59 = vector.load %arg2[%c6, %c0_104, %c0_105] : memref<9x40x128xf32, #tpu.memory_space<vmem>>, vector<1x40x128xf32>
    %60 = vector.shape_cast %59 : vector<1x40x128xf32> to vector<40x128xf32>
    %cst_106 = arith.constant dense<0.000000e+00> : vector<64x128xf32>
    %61 = tpu.matmul %58, %60, %cst_106 {dimension_numbers = #tpu.dot_dimension_numbers<[1], [0], [0], [1], [0, 0, 1, 1], [], []>} : vector<64x40xf32>, vector<40x128xf32>, vector<64x128xf32> -> vector<64x128xf32>
    %62 = arith.addf %56, %61 : vector<64x128xf32>
    %c0_107 = arith.constant 0 : index
    %c2_108 = arith.constant 2 : index
    %c0_109 = arith.constant 0 : index
    %c0_110 = arith.constant 0 : index
    %63 = vector.load %arg6[%c0_107, %c2_108, %c0_109, %c0_110] : memref<1x10x8x40xf32, #tpu.memory_space<vmem>>, vector<1x8x8x40xf32>
    %64 = vector.shape_cast %63 : vector<1x8x8x40xf32> to vector<64x40xf32>
    %c7_111 = arith.constant 7 : index
    %c0_112 = arith.constant 0 : index
    %c0_113 = arith.constant 0 : index
    %65 = vector.load %arg2[%c7_111, %c0_112, %c0_113] : memref<9x40x128xf32, #tpu.memory_space<vmem>>, vector<1x40x128xf32>
    %66 = vector.shape_cast %65 : vector<1x40x128xf32> to vector<40x128xf32>
    %cst_114 = arith.constant dense<0.000000e+00> : vector<64x128xf32>
    %67 = tpu.matmul %64, %66, %cst_114 {dimension_numbers = #tpu.dot_dimension_numbers<[1], [0], [0], [1], [0, 0, 1, 1], [], []>} : vector<64x40xf32>, vector<40x128xf32>, vector<64x128xf32> -> vector<64x128xf32>
    %68 = arith.addf %62, %67 : vector<64x128xf32>
    %c0_115 = arith.constant 0 : index
    %c2_116 = arith.constant 2 : index
    %c0_117 = arith.constant 0 : index
    %c0_118 = arith.constant 0 : index
    %69 = vector.load %arg7[%c0_115, %c2_116, %c0_117, %c0_118] : memref<1x10x8x40xf32, #tpu.memory_space<vmem>>, vector<1x8x8x40xf32>
    %70 = vector.shape_cast %69 : vector<1x8x8x40xf32> to vector<64x40xf32>
    %c8 = arith.constant 8 : index
    %c0_119 = arith.constant 0 : index
    %c0_120 = arith.constant 0 : index
    %71 = vector.load %arg2[%c8, %c0_119, %c0_120] : memref<9x40x128xf32, #tpu.memory_space<vmem>>, vector<1x40x128xf32>
    %72 = vector.shape_cast %71 : vector<1x40x128xf32> to vector<40x128xf32>
    %cst_121 = arith.constant dense<0.000000e+00> : vector<64x128xf32>
    %73 = tpu.matmul %70, %72, %cst_121 {dimension_numbers = #tpu.dot_dimension_numbers<[1], [0], [0], [1], [0, 0, 1, 1], [], []>} : vector<64x40xf32>, vector<40x128xf32>, vector<64x128xf32> -> vector<64x128xf32>
    %74 = arith.addf %68, %73 : vector<64x128xf32>
    %c0_122 = arith.constant 0 : index
    %c0_123 = arith.constant 0 : index
    %75 = vector.load %arg3[%c0_122, %c0_123] : memref<1x128xf32, #tpu.memory_space<vmem>>, vector<1x128xf32>
    %76 = vector.broadcast %75 : vector<1x128xf32> to vector<64x128xf32>
    %77 = arith.addf %74, %76 : vector<64x128xf32>
    %78 = vector.shape_cast %77 : vector<64x128xf32> to vector<1x64x128xf32>
    %c0_124 = arith.constant 0 : index
    %c0_125 = arith.constant 0 : index
    %c0_126 = arith.constant 0 : index
    %79 = vector.load %arg4[%c0_124, %c0_125, %c0_126] : memref<1x64x128xf32, #tpu.memory_space<vmem>>, vector<1x64x128xf32>
    tpu.vector_store %arg4[%c0_124, %c0_125, %c0_126], %78 {strides = array<i32>} : memref<1x64x128xf32, #tpu.memory_space<vmem>>, vector<1x64x128xf32>,
    return
  }
  func.func @transform_0(%arg0: i32) -> (i32, i32, i32, i32) {
    %c0_i32 = arith.constant 0 : i32
    %c0_i32_0 = arith.constant 0 : i32
    %c0_i32_1 = arith.constant 0 : i32
    %c0_i32_2 = arith.constant 0 : i32
    return %arg0, %c0_i32, %c0_i32_0, %c0_i32_1 : i32, i32, i32, i32
  }
  func.func @transform_1(%arg0: i32) -> (i32, i32, i32) {
    %c0_i32 = arith.constant 0 : i32
    %c0_i32_0 = arith.constant 0 : i32
    %c0_i32_1 = arith.constant 0 : i32
    %c0_i32_2 = arith.constant 0 : i32
    return %c0_i32, %c0_i32_0, %c0_i32_1 : i32, i32, i32
  }
  func.func @transform_2(%arg0: i32) -> (i32, i32) {
    %c0_i32 = arith.constant 0 : i32
    %c0_i32_0 = arith.constant 0 : i32
    %c0_i32_1 = arith.constant 0 : i32
    return %c0_i32, %c0_i32_0 : i32, i32
  }
  func.func @transform_3(%arg0: i32) -> (i32, i32, i32) {
    %c0_i32 = arith.constant 0 : i32
    %c0_i32_0 = arith.constant 0 : i32
    %c0_i32_1 = arith.constant 0 : i32
    return %arg0, %c0_i32, %c0_i32_0 : i32, i32, i32
  }
}

</mosaic_0001>

<llo_original>
// kernel: tpu_custom_call.1
$region0: #{tpu_custom_call.1}
  #allocation0 [shape = 'u32[]', space=smem, size = 0x4, offset = 0x4, fixed_abs, tag = 'smem constant byte address 0x4 - core index']
  #allocation1 [shape = 'u32[144,128]{1,0:T(1,128)}', space=vmem, size = 0x12000, scoped, tag = 'internal scratch']
  #allocation2 [shape = 'f32[1,10,8,40]{3,2,1,0:T(8,128)}', space=vmem, size = 0xa000, scoped, tag = 'scratch operand']
  #allocation3 [shape = 'f32[1,10,8,40]{3,2,1,0:T(8,128)}', space=vmem, size = 0xa000, scoped, tag = 'scratch operand']
  #allocation4 [shape = 'f32[1,10,8,40]{3,2,1,0:T(8,128)}', space=vmem, size = 0xa000, scoped, tag = 'scratch operand']
  %s0 = inlined_call_operand.hbm [shape: f32[2,8,8,40], index: 0, kind: input, shape index: {}]
  %s1 = inlined_call_operand.hbm [shape: f32[9,40,128], index: 1, kind: input, shape index: {}]
  %s2 = inlined_call_operand.vmem [shape: f32[1,128], index: 2, kind: input, shape index: {}]
  %s3 = inlined_call_operand.hbm [shape: f32[2,64,128], index: 3, kind: output, shape index: {}]
  %s4 = sld [smem:[#allocation0]]
  $region53: #{tpu_custom_call.1} parent=0
    _
  %s6 = ssub.s32 1, %s4
  %s7 = scalar_select 0, %s6, %s4
  $region1: #{tpu_custom_call.1} parent=0
    #allocation5 [shape = 'u8[65536]{0}', space=vmem, size = 0x10000, scoped, tag = 'input window, operand 0']
    #allocation6 [shape = 's32[2]{0}', space=sflag, size = 0x8, scoped, tag = 'scoped memory for tpu_custom_call.1']
    #allocation7 [shape = 's32[2]{0}', space=sflag, size = 0x8, scoped, tag = 'scoped memory for tpu_custom_call.1']
    #allocation8 [shape = 'u8[184320]{0}', space=vmem, size = 0x2d000, scoped, tag = 'input window, operand 1, single buffered']
    #allocation9 [shape = 's32[1]{0}', space=sflag, size = 0x4, scoped, tag = 'scoped memory for tpu_custom_call.1']
    #allocation10 [shape = 'u8[65536]{0}', space=vmem, size = 0x10000, scoped, tag = 'output window, operand 0']
    %8 = vsyncpa [#allocation6], 0
    %s9 = scalar_lea.sflag [#allocation6], 1
    %10 = vsyncpa %s9, 0
    %11 = vsyncpa [#allocation9], 0
    %12 = vsyncpa [#allocation7], 0
    %s13 = scalar_lea.sflag [#allocation7], 1
    %14 = vsyncpa %s13, 0
    loop: start=0, step=1, limit=4
    $region2: #{tpu_custom_call.1} parent=1 // loop_pre_header
      _
    $region3: #{tpu_custom_call.1} parent=1 // loop_header
      %s16 = sphi 0, %s20
      %p17 = scmp.ge.s32.totalorder %s16, 4
      %s26 = sphi 0, %s28
      %s29 = sphi 0, %s26
      %s30 = sphi 0, %s29
      %s46 = sphi 0, %s30
      %s50 = sphi 0, %s50
      %s52 = sphi 0, %s50
      %s53 = sphi 0, %s52
      %s67 = sphi 0, %s53
      %s71 = sphi 0, %s71
      %s73 = sphi 0, %s71
      %s74 = sphi 0, %s73
      %s88 = sphi 0, %s74
      %s94 = sphi 0, %s96
      %s97 = sphi 0, %s94
      %s98 = sphi 0, %s97
      %s114 = sphi 0, %s98
    $region4: #{tpu_custom_call.1} parent=1 // loop_header_branch
      %19 = sbr.rel (%p17) target = $region8
    $region5: #{tpu_custom_call.1} parent=1 // loop_body
      %s21 = ssub.s32 %s16, 1
      %s22 = ssub.s32 %s16, 2
      %s23 = sadd.s32 %s16, 1
      %s24 = ssub.s32 %s16, %s23
      %p25 = scmp.eq.s32.totalorder %s24, 0
      %s27 = sadd.s32 %s26, 1
      %s28 = scalar_select %p25, %s26, %s27
      %p31 = pneg %p25
      %p32 = scmp.eq.s32.totalorder %s16, 1
      %p33 = por %p31, %p32
      %p34 = scmp.ne.s32.totalorder %s26, %s29
      %p35 = scmp.eq.s32.totalorder %s16, 0
      %p36 = por %p34, %p35
      %p37 = scmp.ne.s32.totalorder %s26, %s29
      %p38 = scmp.eq.s32.totalorder %s21, 1
      %p39 = por %p37, %p38
      %p40 = scmp.ne.s32.totalorder %s29, %s30
      %p41 = scmp.eq.s32.totalorder %s21, 0
      %p42 = por %p40, %p41
      %p43 = scmp.ne.s32.totalorder %s29, %s30
      %p44 = scmp.eq.s32.totalorder %s22, 1
      %p45 = por %p43, %p44
      %p47 = scmp.ne.s32.totalorder %s30, %s46
      %p48 = scmp.eq.s32.totalorder %s22, 0
      %p49 = por %p47, %p48
      %s51 = sadd.s32 %s50, 1
      %p54 = scmp.eq.s32.totalorder %s16, 1
      %p55 = scmp.ne.s32.totalorder %s50, %s52
      %p56 = scmp.eq.s32.totalorder %s16, 0
      %p57 = por %p55, %p56
      %p58 = scmp.ne.s32.totalorder %s50, %s52
      %p59 = scmp.eq.s32.totalorder %s21, 1
      %p60 = por %p58, %p59
      %p61 = scmp.ne.s32.totalorder %s52, %s53
      %p62 = scmp.eq.s32.totalorder %s21, 0
      %p63 = por %p61, %p62
      %p64 = scmp.ne.s32.totalorder %s52, %s53
      %p65 = scmp.eq.s32.totalorder %s22, 1
      %p66 = por %p64, %p65
      %p68 = scmp.ne.s32.totalorder %s53, %s67
      %p69 = scmp.eq.s32.totalorder %s22, 0
      %p70 = por %p68, %p69
      %s72 = sadd.s32 %s71, 1
      %p75 = scmp.eq.s32.totalorder %s16, 1
      %p76 = scmp.ne.s32.totalorder %s71, %s73
      %p77 = scmp.eq.s32.totalorder %s16, 0
      %p78 = por %p76, %p77
      %p79 = scmp.ne.s32.totalorder %s71, %s73
      %p80 = scmp.eq.s32.totalorder %s21, 1
      %p81 = por %p79, %p80
      %p82 = scmp.ne.s32.totalorder %s73, %s74
      %p83 = scmp.eq.s32.totalorder %s21, 0
      %p84 = por %p82, %p83
      %p85 = scmp.ne.s32.totalorder %s73, %s74
      %p86 = scmp.eq.s32.totalorder %s22, 1
      %p87 = por %p85, %p86
      %p89 = scmp.ne.s32.totalorder %s74, %s88
      %p90 = scmp.eq.s32.totalorder %s22, 0
      %p91 = por %p89, %p90
      %s92 = ssub.s32 %s16, %s23
      %p93 = scmp.eq.s32.totalorder %s92, 0
      %s95 = sadd.s32 %s94, 1
      %s96 = scalar_select %p93, %s94, %s95
      %p99 = pneg %p93
      %p100 = scmp.eq.s32.totalorder %s16, 1
      %p101 = por %p99, %p100
      %p102 = scmp.ne.s32.totalorder %s94, %s97
      %p103 = scmp.eq.s32.totalorder %s16, 0
      %p104 = por %p102, %p103
      %p105 = scmp.ne.s32.totalorder %s94, %s97
      %p106 = scmp.eq.s32.totalorder %s21, 1
      %p107 = por %p105, %p106
      %p108 = scmp.ne.s32.totalorder %s97, %s98
      %p109 = scmp.eq.s32.totalorder %s21, 0
      %p110 = por %p108, %p109
      %p111 = scmp.ne.s32.totalorder %s97, %s98
      %p112 = scmp.eq.s32.totalorder %s22, 1
      %p113 = por %p111, %p112
      %p115 = scmp.ne.s32.totalorder %s98, %s114
      %p116 = scmp.eq.s32.totalorder %s22, 0
      %p117 = por %p115, %p116
      %p118 = scmp.le.s32.totalorder 1, %s16
      %p119 = scmp.lt.s32.totalorder %s16, 3
      %p120 = pnand %p118, %p119
      %p121 = pneg %p120
      // Predicated region
      $region9: #{tpu_custom_call.1} parent=5 // pred_check
        _
      $region10: #{tpu_custom_call.1} parent=5 // pred_check_branch
        %123 = sbr.rel (%p120) target = $region12
      $region11: #{tpu_custom_call.1} parent=5 // pred_region
        %s124 = ssub.s32 %s16, 1
        // Predicated region
        $region13: #{tpu_custom_call.1} parent=11 // pred_check
          %p125 = pneg %p63
        $region14: #{tpu_custom_call.1} parent=11 // pred_check_branch
          %127 = sbr.rel (%p125) target = $region16
        $region15: #{tpu_custom_call.1} parent=11 // pred_region
          %s129 = ssub.s32 5760, 5760
          %130 = vsyncadd [#allocation9], %s129
          %s131 = sshll.u32 [#allocation8], 4
          %s132 = int_to_ptr.vmem [resolvable:$true] %s131
          %137 = dma.hbm_to_vmem [thread:$0]  %s1, 5760, %s132, [#allocation9], 128, 128, 8
        $region16: #{tpu_custom_call.1} parent=11 // pred_fallthru
          _
        // Predicated region
        $region17: #{tpu_custom_call.1} parent=11 // pred_check
          %p138 = pneg %p84
        $region18: #{tpu_custom_call.1} parent=11 // pred_check_branch
          %140 = sbr.rel (%p138) target = $region20
        $region19: #{tpu_custom_call.1} parent=11 // pred_region
          _
        $region20: #{tpu_custom_call.1} parent=11 // pred_fallthru
          _
      $region12: #{tpu_custom_call.1} parent=5 // pred_fallthru
        _
      %p141 = scmp.lt.s32.totalorder %s16, 2
      // Predicated region
      $region21: #{tpu_custom_call.1} parent=5 // pred_check
        %p142 = pneg %p141
      $region22: #{tpu_custom_call.1} parent=5 // pred_check_branch
        %144 = sbr.rel (%p142) target = $region24
      $region23: #{tpu_custom_call.1} parent=5 // pred_region
        // Predicated region
        $region25: #{tpu_custom_call.1} parent=23 // pred_check
          %p145 = pneg %p36
        $region26: #{tpu_custom_call.1} parent=23 // pred_check_branch
          %147 = sbr.rel (%p145) target = $region28
        $region27: #{tpu_custom_call.1} parent=23 // pred_region
          %s148 = sand.u32 %s26, 1
          %s149 = scalar_lea.sflag [#allocation6], %s148
          %s150 = sand.u32 %s26, 1
          %s151 = smul.addr %s150, 64
          %s152 = scalar_lea.vmem [#allocation5], %s151
          %s154 = ssub.s32 1024, 1024
          %155 = vsyncadd %s149, %s154
          %s156 = smul.addr %s16, 8
          %s157 = smul.addr %s156, 128
          %s158 = scalar_lea.hbm %s0, %s157
          %s159 = sshll.u32 %s152, 4
          %s160 = int_to_ptr.vmem [resolvable:$true] %s159
          %165 = dma.hbm_to_vmem [thread:$0]  %s158, 1024, %s160, %s149, 128, 128, 8
        $region28: #{tpu_custom_call.1} parent=23 // pred_fallthru
          _
      $region24: #{tpu_custom_call.1} parent=5 // pred_fallthru
        _
      %p166 = scmp.le.s32.totalorder 1, %s16
      %p167 = scmp.lt.s32.totalorder %s16, 3
      %p168 = pnand %p166, %p167
      %p169 = pneg %p168
      // Predicated region
      $region29: #{tpu_custom_call.1} parent=5 // pred_check
        _
      $region30: #{tpu_custom_call.1} parent=5 // pred_check_branch
        %171 = sbr.rel (%p168) target = $region32
      $region31: #{tpu_custom_call.1} parent=5 // pred_region
        %s172 = ssub.s32 %s16, 1
        %s173 = sand.u32 %s29, 1
        %s174 = scalar_lea.sflag [#allocation6], %s173
        %s175 = sand.u32 %s29, 1
        %s176 = smul.addr %s175, 64
        %s177 = scalar_lea.vmem [#allocation5], %s176
        // Predicated region
        $region33: #{tpu_custom_call.1} parent=31 // pred_check
          %p178 = pneg %p42
        $region34: #{tpu_custom_call.1} parent=31 // pred_check_branch
          %180 = sbr.rel (%p178) target = $region36
        $region35: #{tpu_custom_call.1} parent=31 // pred_region
          %181 = dma.done %s174, 1024
        $region36: #{tpu_custom_call.1} parent=31 // pred_fallthru
          _
        // Predicated region
        $region37: #{tpu_custom_call.1} parent=31 // pred_check
          %p182 = pneg %p63
        $region38: #{tpu_custom_call.1} parent=31 // pred_check_branch
          %184 = sbr.rel (%p182) target = $region40
        $region39: #{tpu_custom_call.1} parent=31 // pred_region
          %185 = dma.done [#allocation9], 5760
        $region40: #{tpu_custom_call.1} parent=31 // pred_fallthru
          _
        %s186 = sand.u32 %s29, 1
        %s187 = scalar_lea.sflag [#allocation6], %s186
        %s188 = sand.u32 %s29, 1
        %s189 = smul.addr %s188, 64
        %s190 = scalar_lea.vmem [#allocation5], %s189
        %p191 = pneg %p42
        %p192 = pneg %p39
        %p193 = pneg %p63
        %p194 = pneg %p60
        %p195 = pneg %p84
        %p196 = pneg %p81
        %p197 = pneg %p110
        %p198 = pneg %p107
        %s199 = sand.u32 %s97, 1
        %s200 = scalar_lea.sflag [#allocation7], %s199
        %s201 = sand.u32 %s97, 1
        %s202 = smul.addr %s201, 64
        %s203 = scalar_lea.vmem [#allocation10], %s202
        %vm204 = vcmask 326656
        %205 = vst.msk [vmem:[#allocation2] sm:$0xff] %vm204, 0.0
        %s206 = scalar_lea.vmem [#allocation2], 72
        %207 = vst.msk [vmem:[%s206] sm:$0xff] %vm204, 0.0
        %208 = vst.msk [vmem:[#allocation3] sm:$0xff] %vm204, 0.0
        %s209 = scalar_lea.vmem [#allocation3], 72
        %210 = vst.msk [vmem:[%s209] sm:$0xff] %vm204, 0.0
        %211 = vst.msk [vmem:[#allocation4] sm:$0xff] %vm204, 0.0
        %s212 = scalar_lea.vmem [#allocation4], 72
        %213 = vst.msk [vmem:[%s212] sm:$0xff] %vm204, 0.0
        %v214 = vld [vmem:[%s177] sm:$0xff]
        %v215 = vld [vmem:[%s177 + $0x8] sm:$0xff]
        %v216 = vld [vmem:[%s177 + $0x10] sm:$0xff]
        %v217 = vld [vmem:[%s177 + $0x18] sm:$0xff]
        %v218 = vld [vmem:[%s177 + $0x20] sm:$0xff]
        %v219 = vld [vmem:[%s177 + $0x28] sm:$0xff]
        %v220 = vld [vmem:[%s177 + $0x30] sm:$0xff]
        %v221 = vld [vmem:[%s177 + $0x38] sm:$0xff]
        %v222 = vmax.f32 %v214, 0.0
        %v223 = vmax.f32 %v215, 0.0
        %v224 = vmax.f32 %v216, 0.0
        %v225 = vmax.f32 %v217, 0.0
        %v226 = vmax.f32 %v218, 0.0
        %v227 = vmax.f32 %v219, 0.0
        %v228 = vmax.f32 %v220, 0.0
        %v229 = vmax.f32 %v221, 0.0
        %s230 = scalar_lea.vmem [#allocation3], 8
        %231 = vst.msk [vmem:[%s230] sm:$0xff] %vm204, %v222
        %232 = vst.msk [vmem:[%s230 + $0x8] sm:$0xff] %vm204, %v223
        %233 = vst.msk [vmem:[%s230 + $0x10] sm:$0xff] %vm204, %v224
        %234 = vst.msk [vmem:[%s230 + $0x18] sm:$0xff] %vm204, %v225
        %235 = vst.msk [vmem:[%s230 + $0x20] sm:$0xff] %vm204, %v226
        %236 = vst.msk [vmem:[%s230 + $0x28] sm:$0xff] %vm204, %v227
        %237 = vst.msk [vmem:[%s230 + $0x30] sm:$0xff] %vm204, %v228
        %238 = vst.msk [vmem:[%s230 + $0x38] sm:$0xff] %vm204, %v229
        %v239 = vld [vmem:[%s177] sm:$0x7f]
        %v240 = vld [vmem:[%s177 + $0x8] sm:$0x7f]
        %v241 = vld [vmem:[%s177 + $0x10] sm:$0x7f]
        %v242 = vld [vmem:[%s177 + $0x18] sm:$0x7f]
        %v243 = vld [vmem:[%s177 + $0x20] sm:$0x7f]
        %v244 = vld [vmem:[%s177 + $0x28] sm:$0x7f]
        %v245 = vld [vmem:[%s177 + $0x30] sm:$0x7f]
        %v246 = vld [vmem:[%s177 + $0x38] sm:$0x7f]
        %v247 = vmax.f32 %v239, 0.0
        %v248 = vmax.f32 %v240, 0.0
        %v249 = vmax.f32 %v241, 0.0
        %v250 = vmax.f32 %v242, 0.0
        %v251 = vmax.f32 %v243, 0.0
        %v252 = vmax.f32 %v244, 0.0
        %v253 = vmax.f32 %v245, 0.0
        %v254 = vmax.f32 %v246, 0.0
        %s255 = scalar_lea.vmem [#allocation2], 8
        %vm256 = vcmask 325632
        %257 = vst.msk [vmem:[%s255 + $0x1] sm:$0x7f] %vm256, %v247
        %258 = vst.msk [vmem:[%s255 + $0x9] sm:$0x7f] %vm256, %v248
        %259 = vst.msk [vmem:[%s255 + $0x11] sm:$0x7f] %vm256, %v249
        %260 = vst.msk [vmem:[%s255 + $0x19] sm:$0x7f] %vm256, %v250
        %261 = vst.msk [vmem:[%s255 + $0x21] sm:$0x7f] %vm256, %v251
        %262 = vst.msk [vmem:[%s255 + $0x29] sm:$0x7f] %vm256, %v252
        %263 = vst.msk [vmem:[%s255 + $0x31] sm:$0x7f] %vm256, %v253
        %264 = vst.msk [vmem:[%s255 + $0x39] sm:$0x7f] %vm256, %v254
        %vm265 = vcmask 319488
        %266 = vst.msk [vmem:[%s255] sm:$0x1] %vm265, 0.0
        %267 = vst.msk [vmem:[%s255 + $0x8] sm:$0x1] %vm265, 0.0
        %268 = vst.msk [vmem:[%s255 + $0x10] sm:$0x1] %vm265, 0.0
        %269 = vst.msk [vmem:[%s255 + $0x18] sm:$0x1] %vm265, 0.0
        %270 = vst.msk [vmem:[%s255 + $0x20] sm:$0x1] %vm265, 0.0
        %271 = vst.msk [vmem:[%s255 + $0x28] sm:$0x1] %vm265, 0.0
        %272 = vst.msk [vmem:[%s255 + $0x30] sm:$0x1] %vm265, 0.0
        %273 = vst.msk [vmem:[%s255 + $0x38] sm:$0x1] %vm265, 0.0
        %v274 = vld [vmem:[%s177 + $0x1] sm:$0x7f]
        %v275 = vld [vmem:[%s177 + $0x9] sm:$0x7f]
        %v276 = vld [vmem:[%s177 + $0x11] sm:$0x7f]
        %v277 = vld [vmem:[%s177 + $0x19] sm:$0x7f]
        %v278 = vld [vmem:[%s177 + $0x21] sm:$0x7f]
        %v279 = vld [vmem:[%s177 + $0x29] sm:$0x7f]
        %v280 = vld [vmem:[%s177 + $0x31] sm:$0x7f]
        %v281 = vld [vmem:[%s177 + $0x39] sm:$0x7f]
        %v282 = vmax.f32 %v274, 0.0
        %v283 = vmax.f32 %v275, 0.0
        %v284 = vmax.f32 %v276, 0.0
        %v285 = vmax.f32 %v277, 0.0
        %v286 = vmax.f32 %v278, 0.0
        %v287 = vmax.f32 %v279, 0.0
        %v288 = vmax.f32 %v280, 0.0
        %v289 = vmax.f32 %v281, 0.0
        %s290 = scalar_lea.vmem [#allocation4], 8
        %291 = vst.msk [vmem:[%s290] sm:$0x7f] %vm256, %v282
        %292 = vst.msk [vmem:[%s290 + $0x8] sm:$0x7f] %vm256, %v283
        %293 = vst.msk [vmem:[%s290 + $0x10] sm:$0x7f] %vm256, %v284
        %294 = vst.msk [vmem:[%s290 + $0x18] sm:$0x7f] %vm256, %v285
        %295 = vst.msk [vmem:[%s290 + $0x20] sm:$0x7f] %vm256, %v286
        %296 = vst.msk [vmem:[%s290 + $0x28] sm:$0x7f] %vm256, %v287
        %297 = vst.msk [vmem:[%s290 + $0x30] sm:$0x7f] %vm256, %v288
        %298 = vst.msk [vmem:[%s290 + $0x38] sm:$0x7f] %vm256, %v289
        %299 = vst.msk [vmem:[%s290 + $0x7] sm:$0x1] %vm265, 0.0
        %300 = vst.msk [vmem:[%s290 + $0xf] sm:$0x1] %vm265, 0.0
        %301 = vst.msk [vmem:[%s290 + $0x17] sm:$0x1] %vm265, 0.0
        %302 = vst.msk [vmem:[%s290 + $0x1f] sm:$0x1] %vm265, 0.0
        %303 = vst.msk [vmem:[%s290 + $0x27] sm:$0x1] %vm265, 0.0
        %304 = vst.msk [vmem:[%s290 + $0x2f] sm:$0x1] %vm265, 0.0
        %305 = vst.msk [vmem:[%s290 + $0x37] sm:$0x1] %vm265, 0.0
        %306 = vst.msk [vmem:[%s290 + $0x3f] sm:$0x1] %vm265, 0.0
        %v307 = vld [vmem:[#allocation2] sm:$0xff]
        %v308 = vld [vmem:[#allocation2 + $0x8] sm:$0xff]
        %v309 = vld [vmem:[#allocation2 + $0x10] sm:$0xff]
        %v310 = vld [vmem:[#allocation2 + $0x18] sm:$0xff]
        %v311 = vld [vmem:[#allocation2 + $0x20] sm:$0xff]
        %v312 = vld [vmem:[#allocation2 + $0x28] sm:$0xff]
        %v313 = vld [vmem:[#allocation2 + $0x30] sm:$0xff]
        %v314 = vld [vmem:[#allocation2 + $0x38] sm:$0xff]
        %v315 = vld [vmem:[#allocation8] sm:$0xff]
        %v316 = vld [vmem:[#allocation8 + $0x8] sm:$0xff]
        %v317 = vld [vmem:[#allocation8 + $0x10] sm:$0xff]
        %v318 = vld [vmem:[#allocation8 + $0x18] sm:$0xff]
        %v319 = vld [vmem:[#allocation8 + $0x20] sm:$0xff]
        %v320 = vld [vmem:[#allocation3] sm:$0xff]
        %v321 = vld [vmem:[#allocation3 + $0x8] sm:$0xff]
        %v322 = vld [vmem:[#allocation3 + $0x10] sm:$0xff]
        %v323 = vld [vmem:[#allocation3 + $0x18] sm:$0xff]
        %v324 = vld [vmem:[#allocation3 + $0x20] sm:$0xff]
        %v325 = vld [vmem:[#allocation3 + $0x28] sm:$0xff]
        %v326 = vld [vmem:[#allocation3 + $0x30] sm:$0xff]
        %v327 = vld [vmem:[#allocation3 + $0x38] sm:$0xff]
        %s328 = scalar_lea.vmem [#allocation8], 40
        %v329 = vld [vmem:[%s328] sm:$0xff]
        %v330 = vld [vmem:[%s328 + $0x8] sm:$0xff]
        %v331 = vld [vmem:[%s328 + $0x10] sm:$0xff]
        %v332 = vld [vmem:[%s328 + $0x18] sm:$0xff]
        %v333 = vld [vmem:[%s328 + $0x20] sm:$0xff]
        %v335 = vsel %vm204, %v320, 0
        %v338 = vsel %vm204, %v321, 0
        %v341 = vsel %vm204, %v322, 0
        %v344 = vsel %vm204, %v323, 0
        %v347 = vsel %vm204, %v324, 0
        %v350 = vsel %vm204, %v325, 0
        %v353 = vsel %vm204, %v326, 0
        %v356 = vsel %vm204, %v327, 0
        %358 = vmatprep.subr.mxu0 0.0
        %359 = vmatpush1.msra.mxu0 0.0
        %360 = vmatprep.subr.mxu0 0.0
        %361 = vmatpush1.msra.mxu0 0.0
        %362 = vmatprep.subr.mxu0 0.0
        %363 = vmatpush1.msra.mxu0 0.0
        %364 = vmatprep.subr.mxu0 0.0
        %365 = vmatpush1.msra.mxu0 0.0
        %366 = vmatprep.subr.mxu0 0.0
        %367 = vmatpush1.msra.mxu0 0.0
        %368 = vmatprep.subr.mxu0 0.0
        %369 = vmatpush1.msra.mxu0 0.0
        %370 = vmatprep.subr.mxu0 0.0
        %371 = vmatpush1.msra.mxu0 0.0
        %372 = vmatprep.subr.mxu0 0.0
        %373 = vmatpush1.msra.mxu0 0.0
        %374 = vmatprep.subr.mxu0 0.0
        %375 = vmatpush1.msra.mxu0 0.0
        %376 = vmatprep.subr.mxu0 0.0
        %377 = vmatpush1.msra.mxu0 0.0
        %378 = vmatprep.subr.mxu0 0.0
        %379 = vmatpush1.msra.mxu0 0.0
        %380 = vmatprep.subr.mxu0 0.0
        %381 = vmatpush1.msra.mxu0 %v333
        %382 = vmatprep.subr.mxu0 0.0
        %383 = vmatpush1.msra.mxu0 %v332
        %384 = vmatprep.subr.mxu0 0.0
        %385 = vmatpush1.msra.mxu0 %v331
        %386 = vmatprep.subr.mxu0 0.0
        %387 = vmatpush1.msra.mxu0 %v330
        %388 = vmatprep.subr.mxu0 0.0
        %389 = vmatpush1.msra.mxu0 %v329
        %390 = vmatprep.subr.mxu0 0.0
        %391 = vmatpush2.msra.mxu0 0.0
        %392 = vmatprep.subr.mxu0 0.0
        %393 = vmatpush2.msra.mxu0 0.0
        %394 = vmatprep.subr.mxu0 0.0
        %395 = vmatpush2.msra.mxu0 0.0
        %396 = vmatprep.subr.mxu0 0.0
        %397 = vmatpush2.msra.mxu0 0.0
        %398 = vmatprep.subr.mxu0 0.0
        %399 = vmatpush2.msra.mxu0 0.0
        %400 = vmatprep.subr.mxu0 0.0
        %401 = vmatpush2.msra.mxu0 0.0
        %402 = vmatprep.subr.mxu0 0.0
        %403 = vmatpush2.msra.mxu0 0.0
        %404 = vmatprep.subr.mxu0 0.0
        %405 = vmatpush2.msra.mxu0 0.0
        %406 = vmatprep.subr.mxu0 0.0
        %407 = vmatpush2.msra.mxu0 0.0
        %408 = vmatprep.subr.mxu0 0.0
        %409 = vmatpush2.msra.mxu0 0.0
        %410 = vmatprep.subr.mxu0 0.0
        %411 = vmatpush2.msra.mxu0 0.0
        %412 = vmatprep.subr.mxu0 0.0
        %413 = vmatpush2.msra.mxu0 0.0
        %414 = vmatprep.subr.mxu0 0.0
        %415 = vmatpush2.msra.mxu0 0.0
        %416 = vmatprep.subr.mxu0 0.0
        %417 = vmatpush2.msra.mxu0 0.0
        %418 = vmatprep.subr.mxu0 0.0
        %419 = vmatpush2.msra.mxu0 0.0
        %420 = vmatprep.subr.mxu0 0.0
        %421 = vmatpush2.msra.mxu0 0.0
        %422 = vmatprep.mubr.f32.mxu0 0.0
        %423 = vmatmul.mubr.f32.gmra.mxu0 %v335
        %v424 = vpop.f32.mrf.mxu0
        %v425 = vadd.f32 0.0, %v424
        %v426 = vpop.f32.mrf.mxu0
        %427 = vmatprep.mubr.f32.mxu0 0.0
        %428 = vmatmul.mubr.f32.gmra.mxu0 %v338
        %v429 = vpop.f32.mrf.mxu0
        %v430 = vadd.f32 0.0, %v429
        %v431 = vpop.f32.mrf.mxu0
        %432 = vmatprep.mubr.f32.mxu0 0.0
        %433 = vmatmul.mubr.f32.gmra.mxu0 %v341
        %v434 = vpop.f32.mrf.mxu0
        %v435 = vadd.f32 0.0, %v434
        %v436 = vpop.f32.mrf.mxu0
        %437 = vmatprep.mubr.f32.mxu0 0.0
        %438 = vmatmul.mubr.f32.gmra.mxu0 %v344
        %v439 = vpop.f32.mrf.mxu0
        %v440 = vadd.f32 0.0, %v439
        %v441 = vpop.f32.mrf.mxu0
        %442 = vmatprep.mubr.f32.mxu0 0.0
        %443 = vmatmul.mubr.f32.gmra.mxu0 %v347
        %v444 = vpop.f32.mrf.mxu0
        %v445 = vadd.f32 0.0, %v444
        %v446 = vpop.f32.mrf.mxu0
        %447 = vmatprep.mubr.f32.mxu0 0.0
        %448 = vmatmul.mubr.f32.gmra.mxu0 %v350
        %v449 = vpop.f32.mrf.mxu0
        %v450 = vadd.f32 0.0, %v449
        %v451 = vpop.f32.mrf.mxu0
        %452 = vmatprep.mubr.f32.mxu0 0.0
        %453 = vmatmul.mubr.f32.gmra.mxu0 %v353
        %v454 = vpop.f32.mrf.mxu0
        %v455 = vadd.f32 0.0, %v454
        %v456 = vpop.f32.mrf.mxu0
        %457 = vmatprep.mubr.f32.mxu0 0.0
        %458 = vmatmul.mubr.f32.gmra.mxu0 %v356
        %v459 = vpop.f32.mrf.mxu0
        %v460 = vadd.f32 0.0, %v459
        %v461 = vpop.f32.mrf.mxu0
        %462 = vdwg.mxu0
        %v464 = vsel %vm204, %v307, 0
        %v467 = vsel %vm204, %v308, 0
        %v470 = vsel %vm204, %v309, 0
        %v473 = vsel %vm204, %v310, 0
        %v476 = vsel %vm204, %v311, 0
        %v479 = vsel %vm204, %v312, 0
        %v482 = vsel %vm204, %v313, 0
        %v485 = vsel %vm204, %v314, 0
        %487 = vmatprep.subr.mxu0 0.0
        %488 = vmatpush1.msra.mxu0 0.0
        %489 = vmatprep.subr.mxu0 0.0
        %490 = vmatpush1.msra.mxu0 0.0
        %491 = vmatprep.subr.mxu0 0.0
        %492 = vmatpush1.msra.mxu0 0.0
        %493 = vmatprep.subr.mxu0 0.0
        %494 = vmatpush1.msra.mxu0 0.0
        %495 = vmatprep.subr.mxu0 0.0
        %496 = vmatpush1.msra.mxu0 0.0
        %497 = vmatprep.subr.mxu0 0.0
        %498 = vmatpush1.msra.mxu0 0.0
        %499 = vmatprep.subr.mxu0 0.0
        %500 = vmatpush1.msra.mxu0 0.0
        %501 = vmatprep.subr.mxu0 0.0
        %502 = vmatpush1.msra.mxu0 0.0
        %503 = vmatprep.subr.mxu0 0.0
        %504 = vmatpush1.msra.mxu0 0.0
        %505 = vmatprep.subr.mxu0 0.0
        %506 = vmatpush1.msra.mxu0 0.0
        %507 = vmatprep.subr.mxu0 0.0
        %508 = vmatpush1.msra.mxu0 0.0
        %509 = vmatprep.subr.mxu0 0.0
        %510 = vmatpush1.msra.mxu0 %v319
        %511 = vmatprep.subr.mxu0 0.0
        %512 = vmatpush1.msra.mxu0 %v318
        %513 = vmatprep.subr.mxu0 0.0
        %514 = vmatpush1.msra.mxu0 %v317
        %515 = vmatprep.subr.mxu0 0.0
        %516 = vmatpush1.msra.mxu0 %v316
        %517 = vmatprep.subr.mxu0 0.0
        %518 = vmatpush1.msra.mxu0 %v315
        %519 = vmatprep.subr.mxu0 0.0
        %520 = vmatpush2.msra.mxu0 0.0
        %521 = vmatprep.subr.mxu0 0.0
        %522 = vmatpush2.msra.mxu0 0.0
        %523 = vmatprep.subr.mxu0 0.0
        %524 = vmatpush2.msra.mxu0 0.0
        %525 = vmatprep.subr.mxu0 0.0
        %526 = vmatpush2.msra.mxu0 0.0
        %527 = vmatprep.subr.mxu0 0.0
        %528 = vmatpush2.msra.mxu0 0.0
        %529 = vmatprep.subr.mxu0 0.0
        %530 = vmatpush2.msra.mxu0 0.0
        %531 = vmatprep.subr.mxu0 0.0
        %532 = vmatpush2.msra.mxu0 0.0
        %533 = vmatprep.subr.mxu0 0.0
        %534 = vmatpush2.msra.mxu0 0.0
        %535 = vmatprep.subr.mxu0 0.0
        %536 = vmatpush2.msra.mxu0 0.0
        %537 = vmatprep.subr.mxu0 0.0
        %538 = vmatpush2.msra.mxu0 0.0
        %539 = vmatprep.subr.mxu0 0.0
        %540 = vmatpush2.msra.mxu0 0.0
        %541 = vmatprep.subr.mxu0 0.0
        %542 = vmatpush2.msra.mxu0 0.0
        %543 = vmatprep.subr.mxu0 0.0
        %544 = vmatpush2.msra.mxu0 0.0
        %545 = vmatprep.subr.mxu0 0.0
        %546 = vmatpush2.msra.mxu0 0.0
        %547 = vmatprep.subr.mxu0 0.0
        %548 = vmatpush2.msra.mxu0 0.0
        %549 = vmatprep.subr.mxu0 0.0
        %550 = vmatpush2.msra.mxu0 0.0
        %551 = vmatprep.mubr.f32.mxu0 0.0
        %552 = vmatmul.mubr.f32.gmra.mxu0 %v464
        %v553 = vpop.f32.mrf.mxu0
        %v554 = vadd.f32 %v425, %v553
        %v555 = vpop.f32.mrf.mxu0
        %556 = vmatprep.mubr.f32.mxu0 0.0
        %557 = vmatmul.mubr.f32.gmra.mxu0 %v467
        %v558 = vpop.f32.mrf.mxu0
        %v559 = vadd.f32 %v430, %v558
        %v560 = vpop.f32.mrf.mxu0
        %561 = vmatprep.mubr.f32.mxu0 0.0
        %562 = vmatmul.mubr.f32.gmra.mxu0 %v470
        %v563 = vpop.f32.mrf.mxu0
        %v564 = vadd.f32 %v435, %v563
        %v565 = vpop.f32.mrf.mxu0
        %566 = vmatprep.mubr.f32.mxu0 0.0
        %567 = vmatmul.mubr.f32.gmra.mxu0 %v473
        %v568 = vpop.f32.mrf.mxu0
        %v569 = vadd.f32 %v440, %v568
        %v570 = vpop.f32.mrf.mxu0
        %571 = vmatprep.mubr.f32.mxu0 0.0
        %572 = vmatmul.mubr.f32.gmra.mxu0 %v476
        %v573 = vpop.f32.mrf.mxu0
        %v574 = vadd.f32 %v445, %v573
        %v575 = vpop.f32.mrf.mxu0
        %576 = vmatprep.mubr.f32.mxu0 0.0
        %577 = vmatmul.mubr.f32.gmra.mxu0 %v479
        %v578 = vpop.f32.mrf.mxu0
        %v579 = vadd.f32 %v450, %v578
        %v580 = vpop.f32.mrf.mxu0
        %581 = vmatprep.mubr.f32.mxu0 0.0
        %582 = vmatmul.mubr.f32.gmra.mxu0 %v482
        %v583 = vpop.f32.mrf.mxu0
        %v584 = vadd.f32 %v455, %v583
        %v585 = vpop.f32.mrf.mxu0
        %586 = vmatprep.mubr.f32.mxu0 0.0
        %587 = vmatmul.mubr.f32.gmra.mxu0 %v485
        %v588 = vpop.f32.mrf.mxu0
        %v589 = vadd.f32 %v460, %v588
        %v590 = vpop.f32.mrf.mxu0
        %591 = vdwg.mxu0
        %v592 = vld [vmem:[#allocation4] sm:$0xff]
        %v593 = vld [vmem:[#allocation4 + $0x8] sm:$0xff]
        %v594 = vld [vmem:[#allocation4 + $0x10] sm:$0xff]
        %v595 = vld [vmem:[#allocation4 + $0x18] sm:$0xff]
        %v596 = vld [vmem:[#allocation4 + $0x20] sm:$0xff]
        %v597 = vld [vmem:[#allocation4 + $0x28] sm:$0xff]
        %v598 = vld [vmem:[#allocation4 + $0x30] sm:$0xff]
        %v599 = vld [vmem:[#allocation4 + $0x38] sm:$0xff]
        %s600 = scalar_lea.vmem [#allocation8], 80
        %v601 = vld [vmem:[%s600] sm:$0xff]
        %v602 = vld [vmem:[%s600 + $0x8] sm:$0xff]
        %v603 = vld [vmem:[%s600 + $0x10] sm:$0xff]
        %v604 = vld [vmem:[%s600 + $0x18] sm:$0xff]
        %v605 = vld [vmem:[%s600 + $0x20] sm:$0xff]
        %v607 = vsel %vm204, %v592, 0
        %v610 = vsel %vm204, %v593, 0
        %v613 = vsel %vm204, %v594, 0
        %v616 = vsel %vm204, %v595, 0
        %v619 = vsel %vm204, %v596, 0
        %v622 = vsel %vm204, %v597, 0
        %v625 = vsel %vm204, %v598, 0
        %v628 = vsel %vm204, %v599, 0
        %630 = vmatprep.subr.mxu0 0.0
        %631 = vmatpush1.msra.mxu0 0.0
        %632 = vmatprep.subr.mxu0 0.0
        %633 = vmatpush1.msra.mxu0 0.0
        %634 = vmatprep.subr.mxu0 0.0
        %635 = vmatpush1.msra.mxu0 0.0
        %636 = vmatprep.subr.mxu0 0.0
        %637 = vmatpush1.msra.mxu0 0.0
        %638 = vmatprep.subr.mxu0 0.0
        %639 = vmatpush1.msra.mxu0 0.0
        %640 = vmatprep.subr.mxu0 0.0
        %641 = vmatpush1.msra.mxu0 0.0
        %642 = vmatprep.subr.mxu0 0.0
        %643 = vmatpush1.msra.mxu0 0.0
        %644 = vmatprep.subr.mxu0 0.0
        %645 = vmatpush1.msra.mxu0 0.0
        %646 = vmatprep.subr.mxu0 0.0
        %647 = vmatpush1.msra.mxu0 0.0
        %648 = vmatprep.subr.mxu0 0.0
        %649 = vmatpush1.msra.mxu0 0.0
        %650 = vmatprep.subr.mxu0 0.0
        %651 = vmatpush1.msra.mxu0 0.0
        %652 = vmatprep.subr.mxu0 0.0
        %653 = vmatpush1.msra.mxu0 %v605
        %654 = vmatprep.subr.mxu0 0.0
        %655 = vmatpush1.msra.mxu0 %v604
        %656 = vmatprep.subr.mxu0 0.0
        %657 = vmatpush1.msra.mxu0 %v603
        %658 = vmatprep.subr.mxu0 0.0
        %659 = vmatpush1.msra.mxu0 %v602
        %660 = vmatprep.subr.mxu0 0.0
        %661 = vmatpush1.msra.mxu0 %v601
        %662 = vmatprep.subr.mxu0 0.0
        %663 = vmatpush2.msra.mxu0 0.0
        %664 = vmatprep.subr.mxu0 0.0
        %665 = vmatpush2.msra.mxu0 0.0
        %666 = vmatprep.subr.mxu0 0.0
        %667 = vmatpush2.msra.mxu0 0.0
        %668 = vmatprep.subr.mxu0 0.0
        %669 = vmatpush2.msra.mxu0 0.0
        %670 = vmatprep.subr.mxu0 0.0
        %671 = vmatpush2.msra.mxu0 0.0
        %672 = vmatprep.subr.mxu0 0.0
        %673 = vmatpush2.msra.mxu0 0.0
        %674 = vmatprep.subr.mxu0 0.0
        %675 = vmatpush2.msra.mxu0 0.0
        %676 = vmatprep.subr.mxu0 0.0
        %677 = vmatpush2.msra.mxu0 0.0
        %678 = vmatprep.subr.mxu0 0.0
        %679 = vmatpush2.msra.mxu0 0.0
        %680 = vmatprep.subr.mxu0 0.0
        %681 = vmatpush2.msra.mxu0 0.0
        %682 = vmatprep.subr.mxu0 0.0
        %683 = vmatpush2.msra.mxu0 0.0
        %684 = vmatprep.subr.mxu0 0.0
        %685 = vmatpush2.msra.mxu0 0.0
        %686 = vmatprep.subr.mxu0 0.0
        %687 = vmatpush2.msra.mxu0 0.0
        %688 = vmatprep.subr.mxu0 0.0
        %689 = vmatpush2.msra.mxu0 0.0
        %690 = vmatprep.subr.mxu0 0.0
        %691 = vmatpush2.msra.mxu0 0.0
        %692 = vmatprep.subr.mxu0 0.0
        %693 = vmatpush2.msra.mxu0 0.0
        %694 = vmatprep.mubr.f32.mxu0 0.0
        %695 = vmatmul.mubr.f32.gmra.mxu0 %v607
        %v696 = vpop.f32.mrf.mxu0
        %v697 = vadd.f32 0.0, %v696
        %v698 = vpop.f32.mrf.mxu0
        %699 = vmatprep.mubr.f32.mxu0 0.0
        %700 = vmatmul.mubr.f32.gmra.mxu0 %v610
        %v701 = vpop.f32.mrf.mxu0
        %v702 = vadd.f32 0.0, %v701
        %v703 = vpop.f32.mrf.mxu0
        %704 = vmatprep.mubr.f32.mxu0 0.0
        %705 = vmatmul.mubr.f32.gmra.mxu0 %v613
        %v706 = vpop.f32.mrf.mxu0
        %v707 = vadd.f32 0.0, %v706
        %v708 = vpop.f32.mrf.mxu0
        %709 = vmatprep.mubr.f32.mxu0 0.0
        %710 = vmatmul.mubr.f32.gmra.mxu0 %v616
        %v711 = vpop.f32.mrf.mxu0
        %v712 = vadd.f32 0.0, %v711
        %v713 = vpop.f32.mrf.mxu0
        %714 = vmatprep.mubr.f32.mxu0 0.0
        %715 = vmatmul.mubr.f32.gmra.mxu0 %v619
        %v716 = vpop.f32.mrf.mxu0
        %v717 = vadd.f32 0.0, %v716
        %v718 = vpop.f32.mrf.mxu0
        %719 = vmatprep.mubr.f32.mxu0 0.0
        %720 = vmatmul.mubr.f32.gmra.mxu0 %v622
        %v721 = vpop.f32.mrf.mxu0
        %v722 = vadd.f32 0.0, %v721
        %v723 = vpop.f32.mrf.mxu0
        %724 = vmatprep.mubr.f32.mxu0 0.0
        %725 = vmatmul.mubr.f32.gmra.mxu0 %v625
        %v726 = vpop.f32.mrf.mxu0
        %v727 = vadd.f32 0.0, %v726
        %v728 = vpop.f32.mrf.mxu0
        %729 = vmatprep.mubr.f32.mxu0 0.0
        %730 = vmatmul.mubr.f32.gmra.mxu0 %v628
        %v731 = vpop.f32.mrf.mxu0
        %v732 = vadd.f32 0.0, %v731
        %v733 = vpop.f32.mrf.mxu0
        %734 = vdwg.mxu0
        %v735 = vadd.f32 %v554, %v697
        %v736 = vadd.f32 %v559, %v702
        %v737 = vadd.f32 %v564, %v707
        %v738 = vadd.f32 %v569, %v712
        %v739 = vadd.f32 %v574, %v717
        %v740 = vadd.f32 %v579, %v722
        %v741 = vadd.f32 %v584, %v727
        %v742 = vadd.f32 %v589, %v732
        %v743 = vld [vmem:[%s255] sm:$0xff]
        %v744 = vld [vmem:[%s255 + $0x8] sm:$0xff]
        %v745 = vld [vmem:[%s255 + $0x10] sm:$0xff]
        %v746 = vld [vmem:[%s255 + $0x18] sm:$0xff]
        %v747 = vld [vmem:[%s255 + $0x20] sm:$0xff]
        %v748 = vld [vmem:[%s255 + $0x28] sm:$0xff]
        %v749 = vld [vmem:[%s255 + $0x30] sm:$0xff]
        %v750 = vld [vmem:[%s255 + $0x38] sm:$0xff]
        %s751 = scalar_lea.vmem [#allocation8], 120
        %v752 = vld [vmem:[%s751] sm:$0xff]
        %v753 = vld [vmem:[%s751 + $0x8] sm:$0xff]
        %v754 = vld [vmem:[%s751 + $0x10] sm:$0xff]
        %v755 = vld [vmem:[%s751 + $0x18] sm:$0xff]
        %v756 = vld [vmem:[%s751 + $0x20] sm:$0xff]
        %v758 = vsel %vm204, %v743, 0
        %v761 = vsel %vm204, %v744, 0
        %v764 = vsel %vm204, %v745, 0
        %v767 = vsel %vm204, %v746, 0
        %v770 = vsel %vm204, %v747, 0
        %v773 = vsel %vm204, %v748, 0
        %v776 = vsel %vm204, %v749, 0
        %v779 = vsel %vm204, %v750, 0
        %781 = vmatprep.subr.mxu0 0.0
        %782 = vmatpush1.msra.mxu0 0.0
        %783 = vmatprep.subr.mxu0 0.0
        %784 = vmatpush1.msra.mxu0 0.0
        %785 = vmatprep.subr.mxu0 0.0
        %786 = vmatpush1.msra.mxu0 0.0
        %787 = vmatprep.subr.mxu0 0.0
        %788 = vmatpush1.msra.mxu0 0.0
        %789 = vmatprep.subr.mxu0 0.0
        %790 = vmatpush1.msra.mxu0 0.0
        %791 = vmatprep.subr.mxu0 0.0
        %792 = vmatpush1.msra.mxu0 0.0
        %793 = vmatprep.subr.mxu0 0.0
        %794 = vmatpush1.msra.mxu0 0.0
        %795 = vmatprep.subr.mxu0 0.0
        %796 = vmatpush1.msra.mxu0 0.0
        %797 = vmatprep.subr.mxu0 0.0
        %798 = vmatpush1.msra.mxu0 0.0
        %799 = vmatprep.subr.mxu0 0.0
        %800 = vmatpush1.msra.mxu0 0.0
        %801 = vmatprep.subr.mxu0 0.0
        %802 = vmatpush1.msra.mxu0 0.0
        %803 = vmatprep.subr.mxu0 0.0
        %804 = vmatpush1.msra.mxu0 %v756
        %805 = vmatprep.subr.mxu0 0.0
        %806 = vmatpush1.msra.mxu0 %v755
        %807 = vmatprep.subr.mxu0 0.0
        %808 = vmatpush1.msra.mxu0 %v754
        %809 = vmatprep.subr.mxu0 0.0
        %810 = vmatpush1.msra.mxu0 %v753
        %811 = vmatprep.subr.mxu0 0.0
        %812 = vmatpush1.msra.mxu0 %v752
        %813 = vmatprep.subr.mxu0 0.0
        %814 = vmatpush2.msra.mxu0 0.0
        %815 = vmatprep.subr.mxu0 0.0
        %816 = vmatpush2.msra.mxu0 0.0
        %817 = vmatprep.subr.mxu0 0.0
        %818 = vmatpush2.msra.mxu0 0.0
        %819 = vmatprep.subr.mxu0 0.0
        %820 = vmatpush2.msra.mxu0 0.0
        %821 = vmatprep.subr.mxu0 0.0
        %822 = vmatpush2.msra.mxu0 0.0
        %823 = vmatprep.subr.mxu0 0.0
        %824 = vmatpush2.msra.mxu0 0.0
        %825 = vmatprep.subr.mxu0 0.0
        %826 = vmatpush2.msra.mxu0 0.0
        %827 = vmatprep.subr.mxu0 0.0
        %828 = vmatpush2.msra.mxu0 0.0
        %829 = vmatprep.subr.mxu0 0.0
        %830 = vmatpush2.msra.mxu0 0.0
        %831 = vmatprep.subr.mxu0 0.0
        %832 = vmatpush2.msra.mxu0 0.0
        %833 = vmatprep.subr.mxu0 0.0
        %834 = vmatpush2.msra.mxu0 0.0
        %835 = vmatprep.subr.mxu0 0.0
        %836 = vmatpush2.msra.mxu0 0.0
        %837 = vmatprep.subr.mxu0 0.0
        %838 = vmatpush2.msra.mxu0 0.0
        %839 = vmatprep.subr.mxu0 0.0
        %840 = vmatpush2.msra.mxu0 0.0
        %841 = vmatprep.subr.mxu0 0.0
        %842 = vmatpush2.msra.mxu0 0.0
        %843 = vmatprep.subr.mxu0 0.0
        %844 = vmatpush2.msra.mxu0 0.0
        %845 = vmatprep.mubr.f32.mxu0 0.0
        %846 = vmatmul.mubr.f32.gmra.mxu0 %v758
        %v847 = vpop.f32.mrf.mxu0
        %v848 = vadd.f32 0.0, %v847
        %v849 = vpop.f32.mrf.mxu0
        %850 = vmatprep.mubr.f32.mxu0 0.0
        %851 = vmatmul.mubr.f32.gmra.mxu0 %v761
        %v852 = vpop.f32.mrf.mxu0
        %v853 = vadd.f32 0.0, %v852
        %v854 = vpop.f32.mrf.mxu0
        %855 = vmatprep.mubr.f32.mxu0 0.0
        %856 = vmatmul.mubr.f32.gmra.mxu0 %v764
        %v857 = vpop.f32.mrf.mxu0
        %v858 = vadd.f32 0.0, %v857
        %v859 = vpop.f32.mrf.mxu0
        %860 = vmatprep.mubr.f32.mxu0 0.0
        %861 = vmatmul.mubr.f32.gmra.mxu0 %v767
        %v862 = vpop.f32.mrf.mxu0
        %v863 = vadd.f32 0.0, %v862
        %v864 = vpop.f32.mrf.mxu0
        %865 = vmatprep.mubr.f32.mxu0 0.0
        %866 = vmatmul.mubr.f32.gmra.mxu0 %v770
        %v867 = vpop.f32.mrf.mxu0
        %v868 = vadd.f32 0.0, %v867
        %v869 = vpop.f32.mrf.mxu0
        %870 = vmatprep.mubr.f32.mxu0 0.0
        %871 = vmatmul.mubr.f32.gmra.mxu0 %v773
        %v872 = vpop.f32.mrf.mxu0
        %v873 = vadd.f32 0.0, %v872
        %v874 = vpop.f32.mrf.mxu0
        %875 = vmatprep.mubr.f32.mxu0 0.0
        %876 = vmatmul.mubr.f32.gmra.mxu0 %v776
        %v877 = vpop.f32.mrf.mxu0
        %v878 = vadd.f32 0.0, %v877
        %v879 = vpop.f32.mrf.mxu0
        %880 = vmatprep.mubr.f32.mxu0 0.0
        %881 = vmatmul.mubr.f32.gmra.mxu0 %v779
        %v882 = vpop.f32.mrf.mxu0
        %v883 = vadd.f32 0.0, %v882
        %v884 = vpop.f32.mrf.mxu0
        %885 = vdwg.mxu0
        %v886 = vadd.f32 %v735, %v848
        %v887 = vadd.f32 %v736, %v853
        %v888 = vadd.f32 %v737, %v858
        %v889 = vadd.f32 %v738, %v863
        %v890 = vadd.f32 %v739, %v868
        %v891 = vadd.f32 %v740, %v873
        %v892 = vadd.f32 %v741, %v878
        %v893 = vadd.f32 %v742, %v883
        %v894 = vld [vmem:[%s230] sm:$0xff]
        %v895 = vld [vmem:[%s230 + $0x8] sm:$0xff]
        %v896 = vld [vmem:[%s230 + $0x10] sm:$0xff]
        %v897 = vld [vmem:[%s230 + $0x18] sm:$0xff]
        %v898 = vld [vmem:[%s230 + $0x20] sm:$0xff]
        %v899 = vld [vmem:[%s230 + $0x28] sm:$0xff]
        %v900 = vld [vmem:[%s230 + $0x30] sm:$0xff]
        %v901 = vld [vmem:[%s230 + $0x38] sm:$0xff]
        %s902 = scalar_lea.vmem [#allocation8], 160
        %v903 = vld [vmem:[%s902] sm:$0xff]
        %v904 = vld [vmem:[%s902 + $0x8] sm:$0xff]
        %v905 = vld [vmem:[%s902 + $0x10] sm:$0xff]
        %v906 = vld [vmem:[%s902 + $0x18] sm:$0xff]
        %v907 = vld [vmem:[%s902 + $0x20] sm:$0xff]
        %v909 = vsel %vm204, %v894, 0
        %v912 = vsel %vm204, %v895, 0
        %v915 = vsel %vm204, %v896, 0
        %v918 = vsel %vm204, %v897, 0
        %v921 = vsel %vm204, %v898, 0
        %v924 = vsel %vm204, %v899, 0
        %v927 = vsel %vm204, %v900, 0
        %v930 = vsel %vm204, %v901, 0
        %932 = vmatprep.subr.mxu0 0.0
        %933 = vmatpush1.msra.mxu0 0.0
        %934 = vmatprep.subr.mxu0 0.0
        %935 = vmatpush1.msra.mxu0 0.0
        %936 = vmatprep.subr.mxu0 0.0
        %937 = vmatpush1.msra.mxu0 0.0
        %938 = vmatprep.subr.mxu0 0.0
        %939 = vmatpush1.msra.mxu0 0.0
        %940 = vmatprep.subr.mxu0 0.0
        %941 = vmatpush1.msra.mxu0 0.0
        %942 = vmatprep.subr.mxu0 0.0
        %943 = vmatpush1.msra.mxu0 0.0
        %944 = vmatprep.subr.mxu0 0.0
        %945 = vmatpush1.msra.mxu0 0.0
        %946 = vmatprep.subr.mxu0 0.0
        %947 = vmatpush1.msra.mxu0 0.0
        %948 = vmatprep.subr.mxu0 0.0
        %949 = vmatpush1.msra.mxu0 0.0
        %950 = vmatprep.subr.mxu0 0.0
        %951 = vmatpush1.msra.mxu0 0.0
        %952 = vmatprep.subr.mxu0 0.0
        %953 = vmatpush1.msra.mxu0 0.0
        %954 = vmatprep.subr.mxu0 0.0
        %955 = vmatpush1.msra.mxu0 %v907
        %956 = vmatprep.subr.mxu0 0.0
        %957 = vmatpush1.msra.mxu0 %v906
        %958 = vmatprep.subr.mxu0 0.0
        %959 = vmatpush1.msra.mxu0 %v905
        %960 = vmatprep.subr.mxu0 0.0
        %961 = vmatpush1.msra.mxu0 %v904
        %962 = vmatprep.subr.mxu0 0.0
        %963 = vmatpush1.msra.mxu0 %v903
        %964 = vmatprep.subr.mxu0 0.0
        %965 = vmatpush2.msra.mxu0 0.0
        %966 = vmatprep.subr.mxu0 0.0
        %967 = vmatpush2.msra.mxu0 0.0
        %968 = vmatprep.subr.mxu0 0.0
        %969 = vmatpush2.msra.mxu0 0.0
        %970 = vmatprep.subr.mxu0 0.0
        %971 = vmatpush2.msra.mxu0 0.0
        %972 = vmatprep.subr.mxu0 0.0
        %973 = vmatpush2.msra.mxu0 0.0
        %974 = vmatprep.subr.mxu0 0.0
        %975 = vmatpush2.msra.mxu0 0.0
        %976 = vmatprep.subr.mxu0 0.0
        %977 = vmatpush2.msra.mxu0 0.0
        %978 = vmatprep.subr.mxu0 0.0
        %979 = vmatpush2.msra.mxu0 0.0
        %980 = vmatprep.subr.mxu0 0.0
        %981 = vmatpush2.msra.mxu0 0.0
        %982 = vmatprep.subr.mxu0 0.0
        %983 = vmatpush2.msra.mxu0 0.0
        %984 = vmatprep.subr.mxu0 0.0
        %985 = vmatpush2.msra.mxu0 0.0
        %986 = vmatprep.subr.mxu0 0.0
        %987 = vmatpush2.msra.mxu0 0.0
        %988 = vmatprep.subr.mxu0 0.0
        %989 = vmatpush2.msra.mxu0 0.0
        %990 = vmatprep.subr.mxu0 0.0
        %991 = vmatpush2.msra.mxu0 0.0
        %992 = vmatprep.subr.mxu0 0.0
        %993 = vmatpush2.msra.mxu0 0.0
        %994 = vmatprep.subr.mxu0 0.0
        %995 = vmatpush2.msra.mxu0 0.0
        %996 = vmatprep.mubr.f32.mxu0 0.0
        %997 = vmatmul.mubr.f32.gmra.mxu0 %v909
        %v998 = vpop.f32.mrf.mxu0
        %v999 = vadd.f32 0.0, %v998
        %v1000 = vpop.f32.mrf.mxu0
        %1001 = vmatprep.mubr.f32.mxu0 0.0
        %1002 = vmatmul.mubr.f32.gmra.mxu0 %v912
        %v1003 = vpop.f32.mrf.mxu0
        %v1004 = vadd.f32 0.0, %v1003
        %v1005 = vpop.f32.mrf.mxu0
        %1006 = vmatprep.mubr.f32.mxu0 0.0
        %1007 = vmatmul.mubr.f32.gmra.mxu0 %v915
        %v1008 = vpop.f32.mrf.mxu0
        %v1009 = vadd.f32 0.0, %v1008
        %v1010 = vpop.f32.mrf.mxu0
        %1011 = vmatprep.mubr.f32.mxu0 0.0
        %1012 = vmatmul.mubr.f32.gmra.mxu0 %v918
        %v1013 = vpop.f32.mrf.mxu0
        %v1014 = vadd.f32 0.0, %v1013
        %v1015 = vpop.f32.mrf.mxu0
        %1016 = vmatprep.mubr.f32.mxu0 0.0
        %1017 = vmatmul.mubr.f32.gmra.mxu0 %v921
        %v1018 = vpop.f32.mrf.mxu0
        %v1019 = vadd.f32 0.0, %v1018
        %v1020 = vpop.f32.mrf.mxu0
        %1021 = vmatprep.mubr.f32.mxu0 0.0
        %1022 = vmatmul.mubr.f32.gmra.mxu0 %v924
        %v1023 = vpop.f32.mrf.mxu0
        %v1024 = vadd.f32 0.0, %v1023
        %v1025 = vpop.f32.mrf.mxu0
        %1026 = vmatprep.mubr.f32.mxu0 0.0
        %1027 = vmatmul.mubr.f32.gmra.mxu0 %v927
        %v1028 = vpop.f32.mrf.mxu0
        %v1029 = vadd.f32 0.0, %v1028
        %v1030 = vpop.f32.mrf.mxu0
        %1031 = vmatprep.mubr.f32.mxu0 0.0
        %1032 = vmatmul.mubr.f32.gmra.mxu0 %v930
        %v1033 = vpop.f32.mrf.mxu0
        %v1034 = vadd.f32 0.0, %v1033
        %v1035 = vpop.f32.mrf.mxu0
        %1036 = vdwg.mxu0
        %v1037 = vadd.f32 %v886, %v999
        %v1038 = vadd.f32 %v887, %v1004
        %v1039 = vadd.f32 %v888, %v1009
        %v1040 = vadd.f32 %v889, %v1014
        %v1041 = vadd.f32 %v890, %v1019
        %v1042 = vadd.f32 %v891, %v1024
        %v1043 = vadd.f32 %v892, %v1029
        %v1044 = vadd.f32 %v893, %v1034
        %v1045 = vld [vmem:[%s290] sm:$0xff]
        %v1046 = vld [vmem:[%s290 + $0x8] sm:$0xff]
        %v1047 = vld [vmem:[%s290 + $0x10] sm:$0xff]
        %v1048 = vld [vmem:[%s290 + $0x18] sm:$0xff]
        %v1049 = vld [vmem:[%s290 + $0x20] sm:$0xff]
        %v1050 = vld [vmem:[%s290 + $0x28] sm:$0xff]
        %v1051 = vld [vmem:[%s290 + $0x30] sm:$0xff]
        %v1052 = vld [vmem:[%s290 + $0x38] sm:$0xff]
        %s1053 = scalar_lea.vmem [#allocation8], 200
        %v1054 = vld [vmem:[%s1053] sm:$0xff]
        %v1055 = vld [vmem:[%s1053 + $0x8] sm:$0xff]
        %v1056 = vld [vmem:[%s1053 + $0x10] sm:$0xff]
        %v1057 = vld [vmem:[%s1053 + $0x18] sm:$0xff]
        %v1058 = vld [vmem:[%s1053 + $0x20] sm:$0xff]
        %v1060 = vsel %vm204, %v1045, 0
        %v1063 = vsel %vm204, %v1046, 0
        %v1066 = vsel %vm204, %v1047, 0
        %v1069 = vsel %vm204, %v1048, 0
        %v1072 = vsel %vm204, %v1049, 0
        %v1075 = vsel %vm204, %v1050, 0
        %v1078 = vsel %vm204, %v1051, 0
        %v1081 = vsel %vm204, %v1052, 0
        %1083 = vmatprep.subr.mxu0 0.0
        %1084 = vmatpush1.msra.mxu0 0.0
        %1085 = vmatprep.subr.mxu0 0.0
        %1086 = vmatpush1.msra.mxu0 0.0
        %1087 = vmatprep.subr.mxu0 0.0
        %1088 = vmatpush1.msra.mxu0 0.0
        %1089 = vmatprep.subr.mxu0 0.0
        %1090 = vmatpush1.msra.mxu0 0.0
        %1091 = vmatprep.subr.mxu0 0.0
        %1092 = vmatpush1.msra.mxu0 0.0
        %1093 = vmatprep.subr.mxu0 0.0
        %1094 = vmatpush1.msra.mxu0 0.0
        %1095 = vmatprep.subr.mxu0 0.0
        %1096 = vmatpush1.msra.mxu0 0.0
        %1097 = vmatprep.subr.mxu0 0.0
        %1098 = vmatpush1.msra.mxu0 0.0
        %1099 = vmatprep.subr.mxu0 0.0
        %1100 = vmatpush1.msra.mxu0 0.0
        %1101 = vmatprep.subr.mxu0 0.0
        %1102 = vmatpush1.msra.mxu0 0.0
        %1103 = vmatprep.subr.mxu0 0.0
        %1104 = vmatpush1.msra.mxu0 0.0
        %1105 = vmatprep.subr.mxu0 0.0
        %1106 = vmatpush1.msra.mxu0 %v1058
        %1107 = vmatprep.subr.mxu0 0.0
        %1108 = vmatpush1.msra.mxu0 %v1057
        %1109 = vmatprep.subr.mxu0 0.0
        %1110 = vmatpush1.msra.mxu0 %v1056
        %1111 = vmatprep.subr.mxu0 0.0
        %1112 = vmatpush1.msra.mxu0 %v1055
        %1113 = vmatprep.subr.mxu0 0.0
        %1114 = vmatpush1.msra.mxu0 %v1054
        %1115 = vmatprep.subr.mxu0 0.0
        %1116 = vmatpush2.msra.mxu0 0.0
        %1117 = vmatprep.subr.mxu0 0.0
        %1118 = vmatpush2.msra.mxu0 0.0
        %1119 = vmatprep.subr.mxu0 0.0
        %1120 = vmatpush2.msra.mxu0 0.0
        %1121 = vmatprep.subr.mxu0 0.0
        %1122 = vmatpush2.msra.mxu0 0.0
        %1123 = vmatprep.subr.mxu0 0.0
        %1124 = vmatpush2.msra.mxu0 0.0
        %1125 = vmatprep.subr.mxu0 0.0
        %1126 = vmatpush2.msra.mxu0 0.0
        %1127 = vmatprep.subr.mxu0 0.0
        %1128 = vmatpush2.msra.mxu0 0.0
        %1129 = vmatprep.subr.mxu0 0.0
        %1130 = vmatpush2.msra.mxu0 0.0
        %1131 = vmatprep.subr.mxu0 0.0
        %1132 = vmatpush2.msra.mxu0 0.0
        %1133 = vmatprep.subr.mxu0 0.0
        %1134 = vmatpush2.msra.mxu0 0.0
        %1135 = vmatprep.subr.mxu0 0.0
        %1136 = vmatpush2.msra.mxu0 0.0
        %1137 = vmatprep.subr.mxu0 0.0
        %1138 = vmatpush2.msra.mxu0 0.0
        %1139 = vmatprep.subr.mxu0 0.0
        %1140 = vmatpush2.msra.mxu0 0.0
        %1141 = vmatprep.subr.mxu0 0.0
        %1142 = vmatpush2.msra.mxu0 0.0
        %1143 = vmatprep.subr.mxu0 0.0
        %1144 = vmatpush2.msra.mxu0 0.0
        %1145 = vmatprep.subr.mxu0 0.0
        %1146 = vmatpush2.msra.mxu0 0.0
        %1147 = vmatprep.mubr.f32.mxu0 0.0
        %1148 = vmatmul.mubr.f32.gmra.mxu0 %v1060
        %v1149 = vpop.f32.mrf.mxu0
        %v1150 = vadd.f32 0.0, %v1149
        %v1151 = vpop.f32.mrf.mxu0
        %1152 = vmatprep.mubr.f32.mxu0 0.0
        %1153 = vmatmul.mubr.f32.gmra.mxu0 %v1063
        %v1154 = vpop.f32.mrf.mxu0
        %v1155 = vadd.f32 0.0, %v1154
        %v1156 = vpop.f32.mrf.mxu0
        %1157 = vmatprep.mubr.f32.mxu0 0.0
        %1158 = vmatmul.mubr.f32.gmra.mxu0 %v1066
        %v1159 = vpop.f32.mrf.mxu0
        %v1160 = vadd.f32 0.0, %v1159
        %v1161 = vpop.f32.mrf.mxu0
        %1162 = vmatprep.mubr.f32.mxu0 0.0
        %1163 = vmatmul.mubr.f32.gmra.mxu0 %v1069
        %v1164 = vpop.f32.mrf.mxu0
        %v1165 = vadd.f32 0.0, %v1164
        %v1166 = vpop.f32.mrf.mxu0
        %1167 = vmatprep.mubr.f32.mxu0 0.0
        %1168 = vmatmul.mubr.f32.gmra.mxu0 %v1072
        %v1169 = vpop.f32.mrf.mxu0
        %v1170 = vadd.f32 0.0, %v1169
        %v1171 = vpop.f32.mrf.mxu0
        %1172 = vmatprep.mubr.f32.mxu0 0.0
        %1173 = vmatmul.mubr.f32.gmra.mxu0 %v1075
        %v1174 = vpop.f32.mrf.mxu0
        %v1175 = vadd.f32 0.0, %v1174
        %v1176 = vpop.f32.mrf.mxu0
        %1177 = vmatprep.mubr.f32.mxu0 0.0
        %1178 = vmatmul.mubr.f32.gmra.mxu0 %v1078
        %v1179 = vpop.f32.mrf.mxu0
        %v1180 = vadd.f32 0.0, %v1179
        %v1181 = vpop.f32.mrf.mxu0
        %1182 = vmatprep.mubr.f32.mxu0 0.0
        %1183 = vmatmul.mubr.f32.gmra.mxu0 %v1081
        %v1184 = vpop.f32.mrf.mxu0
        %v1185 = vadd.f32 0.0, %v1184
        %v1186 = vpop.f32.mrf.mxu0
        %1187 = vdwg.mxu0
        %v1188 = vadd.f32 %v1037, %v1150
        %v1189 = vadd.f32 %v1038, %v1155
        %v1190 = vadd.f32 %v1039, %v1160
        %v1191 = vadd.f32 %v1040, %v1165
        %v1192 = vadd.f32 %v1041, %v1170
        %v1193 = vadd.f32 %v1042, %v1175
        %v1194 = vadd.f32 %v1043, %v1180
        %v1195 = vadd.f32 %v1044, %v1185
        %s1196 = scalar_lea.vmem [#allocation2], 16
        %v1197 = vld [vmem:[%s1196] sm:$0xff]
        %v1198 = vld [vmem:[%s1196 + $0x8] sm:$0xff]
        %v1199 = vld [vmem:[%s1196 + $0x10] sm:$0xff]
        %v1200 = vld [vmem:[%s1196 + $0x18] sm:$0xff]
        %v1201 = vld [vmem:[%s1196 + $0x20] sm:$0xff]
        %v1202 = vld [vmem:[%s1196 + $0x28] sm:$0xff]
        %v1203 = vld [vmem:[%s1196 + $0x30] sm:$0xff]
        %v1204 = vld [vmem:[%s1196 + $0x38] sm:$0xff]
        %s1205 = scalar_lea.vmem [#allocation8], 240
        %v1206 = vld [vmem:[%s1205] sm:$0xff]
        %v1207 = vld [vmem:[%s1205 + $0x8] sm:$0xff]
        %v1208 = vld [vmem:[%s1205 + $0x10] sm:$0xff]
        %v1209 = vld [vmem:[%s1205 + $0x18] sm:$0xff]
        %v1210 = vld [vmem:[%s1205 + $0x20] sm:$0xff]
        %v1212 = vsel %vm204, %v1197, 0
        %v1215 = vsel %vm204, %v1198, 0
        %v1218 = vsel %vm204, %v1199, 0
        %v1221 = vsel %vm204, %v1200, 0
        %v1224 = vsel %vm204, %v1201, 0
        %v1227 = vsel %vm204, %v1202, 0
        %v1230 = vsel %vm204, %v1203, 0
        %v1233 = vsel %vm204, %v1204, 0
        %1235 = vmatprep.subr.mxu0 0.0
        %1236 = vmatpush1.msra.mxu0 0.0
        %1237 = vmatprep.subr.mxu0 0.0
        %1238 = vmatpush1.msra.mxu0 0.0
        %1239 = vmatprep.subr.mxu0 0.0
        %1240 = vmatpush1.msra.mxu0 0.0
        %1241 = vmatprep.subr.mxu0 0.0
        %1242 = vmatpush1.msra.mxu0 0.0
        %1243 = vmatprep.subr.mxu0 0.0
        %1244 = vmatpush1.msra.mxu0 0.0
        %1245 = vmatprep.subr.mxu0 0.0
        %1246 = vmatpush1.msra.mxu0 0.0
        %1247 = vmatprep.subr.mxu0 0.0
        %1248 = vmatpush1.msra.mxu0 0.0
        %1249 = vmatprep.subr.mxu0 0.0
        %1250 = vmatpush1.msra.mxu0 0.0
        %1251 = vmatprep.subr.mxu0 0.0
        %1252 = vmatpush1.msra.mxu0 0.0
        %1253 = vmatprep.subr.mxu0 0.0
        %1254 = vmatpush1.msra.mxu0 0.0
        %1255 = vmatprep.subr.mxu0 0.0
        %1256 = vmatpush1.msra.mxu0 0.0
        %1257 = vmatprep.subr.mxu0 0.0
        %1258 = vmatpush1.msra.mxu0 %v1210
        %1259 = vmatprep.subr.mxu0 0.0
        %1260 = vmatpush1.msra.mxu0 %v1209
        %1261 = vmatprep.subr.mxu0 0.0
        %1262 = vmatpush1.msra.mxu0 %v1208
        %1263 = vmatprep.subr.mxu0 0.0
        %1264 = vmatpush1.msra.mxu0 %v1207
        %1265 = vmatprep.subr.mxu0 0.0
        %1266 = vmatpush1.msra.mxu0 %v1206
        %1267 = vmatprep.subr.mxu0 0.0
        %1268 = vmatpush2.msra.mxu0 0.0
        %1269 = vmatprep.subr.mxu0 0.0
        %1270 = vmatpush2.msra.mxu0 0.0
        %1271 = vmatprep.subr.mxu0 0.0
        %1272 = vmatpush2.msra.mxu0 0.0
        %1273 = vmatprep.subr.mxu0 0.0
        %1274 = vmatpush2.msra.mxu0 0.0
        %1275 = vmatprep.subr.mxu0 0.0
        %1276 = vmatpush2.msra.mxu0 0.0
        %1277 = vmatprep.subr.mxu0 0.0
        %1278 = vmatpush2.msra.mxu0 0.0
        %1279 = vmatprep.subr.mxu0 0.0
        %1280 = vmatpush2.msra.mxu0 0.0
        %1281 = vmatprep.subr.mxu0 0.0
        %1282 = vmatpush2.msra.mxu0 0.0
        %1283 = vmatprep.subr.mxu0 0.0
        %1284 = vmatpush2.msra.mxu0 0.0
        %1285 = vmatprep.subr.mxu0 0.0
        %1286 = vmatpush2.msra.mxu0 0.0
        %1287 = vmatprep.subr.mxu0 0.0
        %1288 = vmatpush2.msra.mxu0 0.0
        %1289 = vmatprep.subr.mxu0 0.0
        %1290 = vmatpush2.msra.mxu0 0.0
        %1291 = vmatprep.subr.mxu0 0.0
        %1292 = vmatpush2.msra.mxu0 0.0
        %1293 = vmatprep.subr.mxu0 0.0
        %1294 = vmatpush2.msra.mxu0 0.0
        %1295 = vmatprep.subr.mxu0 0.0
        %1296 = vmatpush2.msra.mxu0 0.0
        %1297 = vmatprep.subr.mxu0 0.0
        %1298 = vmatpush2.msra.mxu0 0.0
        %1299 = vmatprep.mubr.f32.mxu0 0.0
        %1300 = vmatmul.mubr.f32.gmra.mxu0 %v1212
        %v1301 = vpop.f32.mrf.mxu0
        %v1302 = vadd.f32 0.0, %v1301
        %v1303 = vpop.f32.mrf.mxu0
        %1304 = vmatprep.mubr.f32.mxu0 0.0
        %1305 = vmatmul.mubr.f32.gmra.mxu0 %v1215
        %v1306 = vpop.f32.mrf.mxu0
        %v1307 = vadd.f32 0.0, %v1306
        %v1308 = vpop.f32.mrf.mxu0
        %1309 = vmatprep.mubr.f32.mxu0 0.0
        %1310 = vmatmul.mubr.f32.gmra.mxu0 %v1218
        %v1311 = vpop.f32.mrf.mxu0
        %v1312 = vadd.f32 0.0, %v1311
        %v1313 = vpop.f32.mrf.mxu0
        %1314 = vmatprep.mubr.f32.mxu0 0.0
        %1315 = vmatmul.mubr.f32.gmra.mxu0 %v1221
        %v1316 = vpop.f32.mrf.mxu0
        %v1317 = vadd.f32 0.0, %v1316
        %v1318 = vpop.f32.mrf.mxu0
        %1319 = vmatprep.mubr.f32.mxu0 0.0
        %1320 = vmatmul.mubr.f32.gmra.mxu0 %v1224
        %v1321 = vpop.f32.mrf.mxu0
        %v1322 = vadd.f32 0.0, %v1321
        %v1323 = vpop.f32.mrf.mxu0
        %1324 = vmatprep.mubr.f32.mxu0 0.0
        %1325 = vmatmul.mubr.f32.gmra.mxu0 %v1227
        %v1326 = vpop.f32.mrf.mxu0
        %v1327 = vadd.f32 0.0, %v1326
        %v1328 = vpop.f32.mrf.mxu0
        %1329 = vmatprep.mubr.f32.mxu0 0.0
        %1330 = vmatmul.mubr.f32.gmra.mxu0 %v1230
        %v1331 = vpop.f32.mrf.mxu0
        %v1332 = vadd.f32 0.0, %v1331
        %v1333 = vpop.f32.mrf.mxu0
        %1334 = vmatprep.mubr.f32.mxu0 0.0
        %1335 = vmatmul.mubr.f32.gmra.mxu0 %v1233
        %v1336 = vpop.f32.mrf.mxu0
        %v1337 = vadd.f32 0.0, %v1336
        %v1338 = vpop.f32.mrf.mxu0
        %1339 = vdwg.mxu0
        %v1340 = vadd.f32 %v1188, %v1302
        %v1341 = vadd.f32 %v1189, %v1307
        %v1342 = vadd.f32 %v1190, %v1312
        %v1343 = vadd.f32 %v1191, %v1317
        %v1344 = vadd.f32 %v1192, %v1322
        %v1345 = vadd.f32 %v1193, %v1327
        %v1346 = vadd.f32 %v1194, %v1332
        %v1347 = vadd.f32 %v1195, %v1337
        %s1348 = scalar_lea.vmem [#allocation3], 16
        %v1349 = vld [vmem:[%s1348] sm:$0xff]
        %v1350 = vld [vmem:[%s1348 + $0x8] sm:$0xff]
        %v1351 = vld [vmem:[%s1348 + $0x10] sm:$0xff]
        %v1352 = vld [vmem:[%s1348 + $0x18] sm:$0xff]
        %v1353 = vld [vmem:[%s1348 + $0x20] sm:$0xff]
        %v1354 = vld [vmem:[%s1348 + $0x28] sm:$0xff]
        %v1355 = vld [vmem:[%s1348 + $0x30] sm:$0xff]
        %v1356 = vld [vmem:[%s1348 + $0x38] sm:$0xff]
        %s1357 = scalar_lea.vmem [#allocation8], 280
        %v1358 = vld [vmem:[%s1357] sm:$0xff]
        %v1359 = vld [vmem:[%s1357 + $0x8] sm:$0xff]
        %v1360 = vld [vmem:[%s1357 + $0x10] sm:$0xff]
        %v1361 = vld [vmem:[%s1357 + $0x18] sm:$0xff]
        %v1362 = vld [vmem:[%s1357 + $0x20] sm:$0xff]
        %v1364 = vsel %vm204, %v1349, 0
        %v1367 = vsel %vm204, %v1350, 0
        %v1370 = vsel %vm204, %v1351, 0
        %v1373 = vsel %vm204, %v1352, 0
        %v1376 = vsel %vm204, %v1353, 0
        %v1379 = vsel %vm204, %v1354, 0
        %v1382 = vsel %vm204, %v1355, 0
        %v1385 = vsel %vm204, %v1356, 0
        %1387 = vmatprep.subr.mxu0 0.0
        %1388 = vmatpush1.msra.mxu0 0.0
        %1389 = vmatprep.subr.mxu0 0.0
        %1390 = vmatpush1.msra.mxu0 0.0
        %1391 = vmatprep.subr.mxu0 0.0
        %1392 = vmatpush1.msra.mxu0 0.0
        %1393 = vmatprep.subr.mxu0 0.0
        %1394 = vmatpush1.msra.mxu0 0.0
        %1395 = vmatprep.subr.mxu0 0.0
        %1396 = vmatpush1.msra.mxu0 0.0
        %1397 = vmatprep.subr.mxu0 0.0
        %1398 = vmatpush1.msra.mxu0 0.0
        %1399 = vmatprep.subr.mxu0 0.0
        %1400 = vmatpush1.msra.mxu0 0.0
        %1401 = vmatprep.subr.mxu0 0.0
        %1402 = vmatpush1.msra.mxu0 0.0
        %1403 = vmatprep.subr.mxu0 0.0
        %1404 = vmatpush1.msra.mxu0 0.0
        %1405 = vmatprep.subr.mxu0 0.0
        %1406 = vmatpush1.msra.mxu0 0.0
        %1407 = vmatprep.subr.mxu0 0.0
        %1408 = vmatpush1.msra.mxu0 0.0
        %1409 = vmatprep.subr.mxu0 0.0
        %1410 = vmatpush1.msra.mxu0 %v1362
        %1411 = vmatprep.subr.mxu0 0.0
        %1412 = vmatpush1.msra.mxu0 %v1361
        %1413 = vmatprep.subr.mxu0 0.0
        %1414 = vmatpush1.msra.mxu0 %v1360
        %1415 = vmatprep.subr.mxu0 0.0
        %1416 = vmatpush1.msra.mxu0 %v1359
        %1417 = vmatprep.subr.mxu0 0.0
        %1418 = vmatpush1.msra.mxu0 %v1358
        %1419 = vmatprep.subr.mxu0 0.0
        %1420 = vmatpush2.msra.mxu0 0.0
        %1421 = vmatprep.subr.mxu0 0.0
        %1422 = vmatpush2.msra.mxu0 0.0
        %1423 = vmatprep.subr.mxu0 0.0
        %1424 = vmatpush2.msra.mxu0 0.0
        %1425 = vmatprep.subr.mxu0 0.0
        %1426 = vmatpush2.msra.mxu0 0.0
        %1427 = vmatprep.subr.mxu0 0.0
        %1428 = vmatpush2.msra.mxu0 0.0
        %1429 = vmatprep.subr.mxu0 0.0
        %1430 = vmatpush2.msra.mxu0 0.0
        %1431 = vmatprep.subr.mxu0 0.0
        %1432 = vmatpush2.msra.mxu0 0.0
        %1433 = vmatprep.subr.mxu0 0.0
        %1434 = vmatpush2.msra.mxu0 0.0
        %1435 = vmatprep.subr.mxu0 0.0
        %1436 = vmatpush2.msra.mxu0 0.0
        %1437 = vmatprep.subr.mxu0 0.0
        %1438 = vmatpush2.msra.mxu0 0.0
        %1439 = vmatprep.subr.mxu0 0.0
        %1440 = vmatpush2.msra.mxu0 0.0
        %1441 = vmatprep.subr.mxu0 0.0
        %1442 = vmatpush2.msra.mxu0 0.0
        %1443 = vmatprep.subr.mxu0 0.0
        %1444 = vmatpush2.msra.mxu0 0.0
        %1445 = vmatprep.subr.mxu0 0.0
        %1446 = vmatpush2.msra.mxu0 0.0
        %1447 = vmatprep.subr.mxu0 0.0
        %1448 = vmatpush2.msra.mxu0 0.0
        %1449 = vmatprep.subr.mxu0 0.0
        %1450 = vmatpush2.msra.mxu0 0.0
        %1451 = vmatprep.mubr.f32.mxu0 0.0
        %1452 = vmatmul.mubr.f32.gmra.mxu0 %v1364
        %v1453 = vpop.f32.mrf.mxu0
        %v1454 = vadd.f32 0.0, %v1453
        %v1455 = vpop.f32.mrf.mxu0
        %1456 = vmatprep.mubr.f32.mxu0 0.0
        %1457 = vmatmul.mubr.f32.gmra.mxu0 %v1367
        %v1458 = vpop.f32.mrf.mxu0
        %v1459 = vadd.f32 0.0, %v1458
        %v1460 = vpop.f32.mrf.mxu0
        %1461 = vmatprep.mubr.f32.mxu0 0.0
        %1462 = vmatmul.mubr.f32.gmra.mxu0 %v1370
        %v1463 = vpop.f32.mrf.mxu0
        %v1464 = vadd.f32 0.0, %v1463
        %v1465 = vpop.f32.mrf.mxu0
        %1466 = vmatprep.mubr.f32.mxu0 0.0
        %1467 = vmatmul.mubr.f32.gmra.mxu0 %v1373
        %v1468 = vpop.f32.mrf.mxu0
        %v1469 = vadd.f32 0.0, %v1468
        %v1470 = vpop.f32.mrf.mxu0
        %1471 = vmatprep.mubr.f32.mxu0 0.0
        %1472 = vmatmul.mubr.f32.gmra.mxu0 %v1376
        %v1473 = vpop.f32.mrf.mxu0
        %v1474 = vadd.f32 0.0, %v1473
        %v1475 = vpop.f32.mrf.mxu0
        %1476 = vmatprep.mubr.f32.mxu0 0.0
        %1477 = vmatmul.mubr.f32.gmra.mxu0 %v1379
        %v1478 = vpop.f32.mrf.mxu0
        %v1479 = vadd.f32 0.0, %v1478
        %v1480 = vpop.f32.mrf.mxu0
        %1481 = vmatprep.mubr.f32.mxu0 0.0
        %1482 = vmatmul.mubr.f32.gmra.mxu0 %v1382
        %v1483 = vpop.f32.mrf.mxu0
        %v1484 = vadd.f32 0.0, %v1483
        %v1485 = vpop.f32.mrf.mxu0
        %1486 = vmatprep.mubr.f32.mxu0 0.0
        %1487 = vmatmul.mubr.f32.gmra.mxu0 %v1385
        %v1488 = vpop.f32.mrf.mxu0
        %v1489 = vadd.f32 0.0, %v1488
        %v1490 = vpop.f32.mrf.mxu0
        %1491 = vdwg.mxu0
        %v1492 = vadd.f32 %v1340, %v1454
        %v1493 = vadd.f32 %v1341, %v1459
        %v1494 = vadd.f32 %v1342, %v1464
        %v1495 = vadd.f32 %v1343, %v1469
        %v1496 = vadd.f32 %v1344, %v1474
        %v1497 = vadd.f32 %v1345, %v1479
        %v1498 = vadd.f32 %v1346, %v1484
        %v1499 = vadd.f32 %v1347, %v1489
        %s1500 = scalar_lea.vmem [#allocation4], 16
        %v1501 = vld [vmem:[%s1500] sm:$0xff]
        %v1502 = vld [vmem:[%s1500 + $0x8] sm:$0xff]
        %v1503 = vld [vmem:[%s1500 + $0x10] sm:$0xff]
        %v1504 = vld [vmem:[%s1500 + $0x18] sm:$0xff]
        %v1505 = vld [vmem:[%s1500 + $0x20] sm:$0xff]
        %v1506 = vld [vmem:[%s1500 + $0x28] sm:$0xff]
        %v1507 = vld [vmem:[%s1500 + $0x30] sm:$0xff]
        %v1508 = vld [vmem:[%s1500 + $0x38] sm:$0xff]
        %s1509 = scalar_lea.vmem [#allocation8], 320
        %v1510 = vld [vmem:[%s1509] sm:$0xff]
        %v1511 = vld [vmem:[%s1509 + $0x8] sm:$0xff]
        %v1512 = vld [vmem:[%s1509 + $0x10] sm:$0xff]
        %v1513 = vld [vmem:[%s1509 + $0x18] sm:$0xff]
        %v1514 = vld [vmem:[%s1509 + $0x20] sm:$0xff]
        %v1516 = vsel %vm204, %v1501, 0
        %v1519 = vsel %vm204, %v1502, 0
        %v1522 = vsel %vm204, %v1503, 0
        %v1525 = vsel %vm204, %v1504, 0
        %v1528 = vsel %vm204, %v1505, 0
        %v1531 = vsel %vm204, %v1506, 0
        %v1534 = vsel %vm204, %v1507, 0
        %v1537 = vsel %vm204, %v1508, 0
        %1539 = vmatprep.subr.mxu0 0.0
        %1540 = vmatpush1.msra.mxu0 0.0
        %1541 = vmatprep.subr.mxu0 0.0
        %1542 = vmatpush1.msra.mxu0 0.0
        %1543 = vmatprep.subr.mxu0 0.0
        %1544 = vmatpush1.msra.mxu0 0.0
        %1545 = vmatprep.subr.mxu0 0.0
        %1546 = vmatpush1.msra.mxu0 0.0
        %1547 = vmatprep.subr.mxu0 0.0
        %1548 = vmatpush1.msra.mxu0 0.0
        %1549 = vmatprep.subr.mxu0 0.0
        %1550 = vmatpush1.msra.mxu0 0.0
        %1551 = vmatprep.subr.mxu0 0.0
        %1552 = vmatpush1.msra.mxu0 0.0
        %1553 = vmatprep.subr.mxu0 0.0
        %1554 = vmatpush1.msra.mxu0 0.0
        %1555 = vmatprep.subr.mxu0 0.0
        %1556 = vmatpush1.msra.mxu0 0.0
        %1557 = vmatprep.subr.mxu0 0.0
        %1558 = vmatpush1.msra.mxu0 0.0
        %1559 = vmatprep.subr.mxu0 0.0
        %1560 = vmatpush1.msra.mxu0 0.0
        %1561 = vmatprep.subr.mxu0 0.0
        %1562 = vmatpush1.msra.mxu0 %v1514
        %1563 = vmatprep.subr.mxu0 0.0
        %1564 = vmatpush1.msra.mxu0 %v1513
        %1565 = vmatprep.subr.mxu0 0.0
        %1566 = vmatpush1.msra.mxu0 %v1512
        %1567 = vmatprep.subr.mxu0 0.0
        %1568 = vmatpush1.msra.mxu0 %v1511
        %1569 = vmatprep.subr.mxu0 0.0
        %1570 = vmatpush1.msra.mxu0 %v1510
        %1571 = vmatprep.subr.mxu0 0.0
        %1572 = vmatpush2.msra.mxu0 0.0
        %1573 = vmatprep.subr.mxu0 0.0
        %1574 = vmatpush2.msra.mxu0 0.0
        %1575 = vmatprep.subr.mxu0 0.0
        %1576 = vmatpush2.msra.mxu0 0.0
        %1577 = vmatprep.subr.mxu0 0.0
        %1578 = vmatpush2.msra.mxu0 0.0
        %1579 = vmatprep.subr.mxu0 0.0
        %1580 = vmatpush2.msra.mxu0 0.0
        %1581 = vmatprep.subr.mxu0 0.0
        %1582 = vmatpush2.msra.mxu0 0.0
        %1583 = vmatprep.subr.mxu0 0.0
        %1584 = vmatpush2.msra.mxu0 0.0
        %1585 = vmatprep.subr.mxu0 0.0
        %1586 = vmatpush2.msra.mxu0 0.0
        %1587 = vmatprep.subr.mxu0 0.0
        %1588 = vmatpush2.msra.mxu0 0.0
        %1589 = vmatprep.subr.mxu0 0.0
        %1590 = vmatpush2.msra.mxu0 0.0
        %1591 = vmatprep.subr.mxu0 0.0
        %1592 = vmatpush2.msra.mxu0 0.0
        %1593 = vmatprep.subr.mxu0 0.0
        %1594 = vmatpush2.msra.mxu0 0.0
        %1595 = vmatprep.subr.mxu0 0.0
        %1596 = vmatpush2.msra.mxu0 0.0
        %1597 = vmatprep.subr.mxu0 0.0
        %1598 = vmatpush2.msra.mxu0 0.0
        %1599 = vmatprep.subr.mxu0 0.0
        %1600 = vmatpush2.msra.mxu0 0.0
        %1601 = vmatprep.subr.mxu0 0.0
        %1602 = vmatpush2.msra.mxu0 0.0
        %1603 = vmatprep.mubr.f32.mxu0 0.0
        %1604 = vmatmul.mubr.f32.gmra.mxu0 %v1516
        %v1605 = vpop.f32.mrf.mxu0
        %v1606 = vadd.f32 0.0, %v1605
        %v1607 = vpop.f32.mrf.mxu0
        %1608 = vmatprep.mubr.f32.mxu0 0.0
        %1609 = vmatmul.mubr.f32.gmra.mxu0 %v1519
        %v1610 = vpop.f32.mrf.mxu0
        %v1611 = vadd.f32 0.0, %v1610
        %v1612 = vpop.f32.mrf.mxu0
        %1613 = vmatprep.mubr.f32.mxu0 0.0
        %1614 = vmatmul.mubr.f32.gmra.mxu0 %v1522
        %v1615 = vpop.f32.mrf.mxu0
        %v1616 = vadd.f32 0.0, %v1615
        %v1617 = vpop.f32.mrf.mxu0
        %1618 = vmatprep.mubr.f32.mxu0 0.0
        %1619 = vmatmul.mubr.f32.gmra.mxu0 %v1525
        %v1620 = vpop.f32.mrf.mxu0
        %v1621 = vadd.f32 0.0, %v1620
        %v1622 = vpop.f32.mrf.mxu0
        %1623 = vmatprep.mubr.f32.mxu0 0.0
        %1624 = vmatmul.mubr.f32.gmra.mxu0 %v1528
        %v1625 = vpop.f32.mrf.mxu0
        %v1626 = vadd.f32 0.0, %v1625
        %v1627 = vpop.f32.mrf.mxu0
        %1628 = vmatprep.mubr.f32.mxu0 0.0
        %1629 = vmatmul.mubr.f32.gmra.mxu0 %v1531
        %v1630 = vpop.f32.mrf.mxu0
        %v1631 = vadd.f32 0.0, %v1630
        %v1632 = vpop.f32.mrf.mxu0
        %1633 = vmatprep.mubr.f32.mxu0 0.0
        %1634 = vmatmul.mubr.f32.gmra.mxu0 %v1534
        %v1635 = vpop.f32.mrf.mxu0
        %v1636 = vadd.f32 0.0, %v1635
        %v1637 = vpop.f32.mrf.mxu0
        %1638 = vmatprep.mubr.f32.mxu0 0.0
        %1639 = vmatmul.mubr.f32.gmra.mxu0 %v1537
        %v1640 = vpop.f32.mrf.mxu0
        %v1641 = vadd.f32 0.0, %v1640
        %v1642 = vpop.f32.mrf.mxu0
        %1643 = vdwg.mxu0
        %v1644 = vadd.f32 %v1492, %v1606
        %v1645 = vadd.f32 %v1493, %v1611
        %v1646 = vadd.f32 %v1494, %v1616
        %v1647 = vadd.f32 %v1495, %v1621
        %v1648 = vadd.f32 %v1496, %v1626
        %v1649 = vadd.f32 %v1497, %v1631
        %v1650 = vadd.f32 %v1498, %v1636
        %v1651 = vadd.f32 %v1499, %v1641
        %v1652 = vld [vmem:[%s2] sm:$0x1]
        %v1654 = vlaneseq
        %v1655 = vshrl.u32 %v1654, 7
        %v1656 = vsub.s32 0, %v1655
        %v1657 = vrot.slane %v1652, %v1656
        %v1659 = vadd.f32 %v1644, %v1657
        %v1660 = vadd.f32 %v1645, %v1657
        %v1661 = vadd.f32 %v1646, %v1657
        %v1662 = vadd.f32 %v1647, %v1657
        %v1663 = vadd.f32 %v1648, %v1657
        %v1664 = vadd.f32 %v1649, %v1657
        %v1665 = vadd.f32 %v1650, %v1657
        %v1666 = vadd.f32 %v1651, %v1657
        %1667 = vst [vmem:[%s203] sm:$0xff] %v1659
        %1668 = vst [vmem:[%s203 + $0x8] sm:$0xff] %v1660
        %1669 = vst [vmem:[%s203 + $0x10] sm:$0xff] %v1661
        %1670 = vst [vmem:[%s203 + $0x18] sm:$0xff] %v1662
        %1671 = vst [vmem:[%s203 + $0x20] sm:$0xff] %v1663
        %1672 = vst [vmem:[%s203 + $0x28] sm:$0xff] %v1664
        %1673 = vst [vmem:[%s203 + $0x30] sm:$0xff] %v1665
        %1674 = vst [vmem:[%s203 + $0x38] sm:$0xff] %v1666
        %s1675 = sand.u32 %s97, 1
        %s1676 = scalar_lea.sflag [#allocation7], %s1675
        %s1677 = sand.u32 %s97, 1
        %s1678 = smul.addr %s1677, 64
        %s1679 = scalar_lea.vmem [#allocation10], %s1678
        // Predicated region
        $region41: #{tpu_custom_call.1} parent=31 // pred_check
          %p1680 = pneg %p107
        $region42: #{tpu_custom_call.1} parent=31 // pred_check_branch
          %1682 = sbr.rel (%p1680) target = $region44
        $region43: #{tpu_custom_call.1} parent=31 // pred_region
          %s1684 = ssub.s32 1024, 1024
          %1685 = vsyncadd %s1676, %s1684
          %s1686 = smul.addr %s21, 8
          %s1687 = smul.addr %s1686, 128
          %s1688 = scalar_lea.hbm %s3, %s1687
          %s1689 = sshll.u32 %s1679, 4
          %s1690 = int_to_ptr.vmem [resolvable:$true] %s1689
          %1695 = dma.vmem_to_hbm [thread:$0]  %s1690, 1024, %s1688, %s1676, 128, 128, 8
        $region44: #{tpu_custom_call.1} parent=31 // pred_fallthru
          _
      $region32: #{tpu_custom_call.1} parent=5 // pred_fallthru
        _
      %p1696 = scmp.le.s32.totalorder 2, %s16
      // Predicated region
      $region45: #{tpu_custom_call.1} parent=5 // pred_check
        %p1697 = pneg %p1696
      $region46: #{tpu_custom_call.1} parent=5 // pred_check_branch
        %1699 = sbr.rel (%p1697) target = $region48
      $region47: #{tpu_custom_call.1} parent=5 // pred_region
        %s1700 = ssub.s32 %s16, 2
        // Predicated region
        $region49: #{tpu_custom_call.1} parent=47 // pred_check
          %p1701 = pneg %p113
        $region50: #{tpu_custom_call.1} parent=47 // pred_check_branch
          %1703 = sbr.rel (%p1701) target = $region52
        $region51: #{tpu_custom_call.1} parent=47 // pred_region
          %s1704 = sand.u32 %s98, 1
          %s1705 = scalar_lea.sflag [#allocation7], %s1704
          %s1706 = sand.u32 %s98, 1
          %s1707 = smul.addr %s1706, 64
          %s1708 = scalar_lea.vmem [#allocation10], %s1707
          %1709 = dma.done %s1705, 1024
        $region52: #{tpu_custom_call.1} parent=47 // pred_fallthru
          _
      $region48: #{tpu_custom_call.1} parent=5 // pred_fallthru
        _
    $region6: #{tpu_custom_call.1} parent=1 // loop_footer
      %s20 = sadd.s32 1, %s16
    $region7: #{tpu_custom_call.1} parent=1 // loop_footer_branch
      %15 = sbr.rel target = $region3
    $region8: #{tpu_custom_call.1} parent=1 // loop_exit
      _
    %1710 = vsyncpa [#allocation6], 1
    %s1711 = scalar_lea.sflag [#allocation6], 1
    %1712 = vsyncpa %s1711, 1
    %1713 = vsyncpa [#allocation9], 1
    %1714 = vsyncpa [#allocation7], 1
    %s1715 = scalar_lea.sflag [#allocation7], 1
    %1716 = vsyncpa %s1715, 1

// kernel: tpu_custom_call.1
$region0: #{tpu_custom_call.1}
  #allocation0 [shape = 'u32[]', space=smem, size = 0x4, offset = 0x4, fixed_abs, tag = 'smem constant byte address 0x4 - core index']
  #allocation1 [shape = 'u32[144,128]{1,0:T(1,128)}', space=vmem, size = 0x12000, scoped, tag = 'internal scratch']
  #allocation2 [shape = 'f32[1,10,8,40]{3,2,1,0:T(8,128)}', space=vmem, size = 0xa000, scoped, tag = 'scratch operand']
  #allocation3 [shape = 'f32[1,10,8,40]{3,2,1,0:T(8,128)}', space=vmem, size = 0xa000, scoped, tag = 'scratch operand']
  #allocation4 [shape = 'f32[1,10,8,40]{3,2,1,0:T(8,128)}', space=vmem, size = 0xa000, scoped, tag = 'scratch operand']
  %s0 = inlined_call_operand.hbm [shape: f32[2,8,8,40], index: 0, kind: input, shape index: {}]
  %s1 = inlined_call_operand.hbm [shape: f32[9,40,128], index: 1, kind: input, shape index: {}]
  %s2 = inlined_call_operand.vmem [shape: f32[1,128], index: 2, kind: input, shape index: {}]
  %s3 = inlined_call_operand.hbm [shape: f32[2,64,128], index: 3, kind: output, shape index: {}]
  %s4 = sld [smem:[#allocation0]]
  $region53: #{tpu_custom_call.1} parent=0
    _
  %s6 = ssub.s32 1, %s4
  %s7 = scalar_select 0, %s6, %s4
  $region1: #{tpu_custom_call.1} parent=0
    #allocation5 [shape = 'u8[65536]{0}', space=vmem, size = 0x10000, scoped, tag = 'input window, operand 0']
    #allocation6 [shape = 's32[2]{0}', space=sflag, size = 0x8, scoped, tag = 'scoped memory for tpu_custom_call.1']
    #allocation7 [shape = 's32[2]{0}', space=sflag, size = 0x8, scoped, tag = 'scoped memory for tpu_custom_call.1']
    #allocation8 [shape = 'u8[184320]{0}', space=vmem, size = 0x2d000, scoped, tag = 'input window, operand 1, single buffered']
    #allocation9 [shape = 's32[1]{0}', space=sflag, size = 0x4, scoped, tag = 'scoped memory for tpu_custom_call.1']
    #allocation10 [shape = 'u8[65536]{0}', space=vmem, size = 0x10000, scoped, tag = 'output window, operand 0']
    %8 = vsyncpa [#allocation6], 0
    %s9 = scalar_lea.sflag [#allocation6], 1
    %10 = vsyncpa %s9, 0
    %11 = vsyncpa [#allocation9], 0
    %12 = vsyncpa [#allocation7], 0
    %s13 = scalar_lea.sflag [#allocation7], 1
    %14 = vsyncpa %s13, 0
    loop: start=0, step=1, limit=4
    $region2: #{tpu_custom_call.1} parent=1 // loop_pre_header
      _
    $region3: #{tpu_custom_call.1} parent=1 // loop_header
      %s16 = sphi 0, %s20
      %p17 = scmp.ge.s32.totalorder %s16, 4
      %s26 = sphi 0, %s28
      %s29 = sphi 0, %s26
      %s30 = sphi 0, %s29
      %s46 = sphi 0, %s30
      %s50 = sphi 0, %s50
      %s52 = sphi 0, %s50
      %s53 = sphi 0, %s52
      %s67 = sphi 0, %s53
      %s71 = sphi 0, %s71
      %s73 = sphi 0, %s71
      %s74 = sphi 0, %s73
      %s88 = sphi 0, %s74
      %s94 = sphi 0, %s96
      %s97 = sphi 0, %s94
      %s98 = sphi 0, %s97
      %s114 = sphi 0, %s98
    $region4: #{tpu_custom_call.1} parent=1 // loop_header_branch
      %19 = sbr.rel (%p17) target = $region8
    $region5: #{tpu_custom_call.1} parent=1 // loop_body
      %s21 = ssub.s32 %s16, 1
      %s22 = ssub.s32 %s16, 2
      %s23 = sadd.s32 %s16, 1
      %s24 = ssub.s32 %s16, %s23
      %p25 = scmp.eq.s32.totalorder %s24, 0
      %s27 = sadd.s32 %s26, 1
      %s28 = scalar_select %p25, %s26, %s27
      %p31 = pneg %p25
      %p32 = scmp.eq.s32.totalorder %s16, 1
      %p33 = por %p31, %p32
      %p34 = scmp.ne.s32.totalorder %s26, %s29
      %p35 = scmp.eq.s32.totalorder %s16, 0
      %p36 = por %p34, %p35
      %p37 = scmp.ne.s32.totalorder %s26, %s29
      %p38 = scmp.eq.s32.totalorder %s21, 1
      %p39 = por %p37, %p38
      %p40 = scmp.ne.s32.totalorder %s29, %s30
      %p41 = scmp.eq.s32.totalorder %s21, 0
      %p42 = por %p40, %p41
      %p43 = scmp.ne.s32.totalorder %s29, %s30
      %p44 = scmp.eq.s32.totalorder %s22, 1
      %p45 = por %p43, %p44
      %p47 = scmp.ne.s32.totalorder %s30, %s46
      %p48 = scmp.eq.s32.totalorder %s22, 0
      %p49 = por %p47, %p48
      %s51 = sadd.s32 %s50, 1
      %p54 = scmp.eq.s32.totalorder %s16, 1
      %p55 = scmp.ne.s32.totalorder %s50, %s52
      %p56 = scmp.eq.s32.totalorder %s16, 0
      %p57 = por %p55, %p56
      %p58 = scmp.ne.s32.totalorder %s50, %s52
      %p59 = scmp.eq.s32.totalorder %s21, 1
      %p60 = por %p58, %p59
      %p61 = scmp.ne.s32.totalorder %s52, %s53
      %p62 = scmp.eq.s32.totalorder %s21, 0
      %p63 = por %p61, %p62
      %p64 = scmp.ne.s32.totalorder %s52, %s53
      %p65 = scmp.eq.s32.totalorder %s22, 1
      %p66 = por %p64, %p65
      %p68 = scmp.ne.s32.totalorder %s53, %s67
      %p69 = scmp.eq.s32.totalorder %s22, 0
      %p70 = por %p68, %p69
      %s72 = sadd.s32 %s71, 1
      %p75 = scmp.eq.s32.totalorder %s16, 1
      %p76 = scmp.ne.s32.totalorder %s71, %s73
      %p77 = scmp.eq.s32.totalorder %s16, 0
      %p78 = por %p76, %p77
      %p79 = scmp.ne.s32.totalorder %s71, %s73
      %p80 = scmp.eq.s32.totalorder %s21, 1
      %p81 = por %p79, %p80
      %p82 = scmp.ne.s32.totalorder %s73, %s74
      %p83 = scmp.eq.s32.totalorder %s21, 0
      %p84 = por %p82, %p83
      %p85 = scmp.ne.s32.totalorder %s73, %s74
      %p86 = scmp.eq.s32.totalorder %s22, 1
      %p87 = por %p85, %p86
      %p89 = scmp.ne.s32.totalorder %s74, %s88
      %p90 = scmp.eq.s32.totalorder %s22, 0
      %p91 = por %p89, %p90
      %s92 = ssub.s32 %s16, %s23
      %p93 = scmp.eq.s32.totalorder %s92, 0
      %s95 = sadd.s32 %s94, 1
      %s96 = scalar_select %p93, %s94, %s95
      %p99 = pneg %p93
      %p100 = scmp.eq.s32.totalorder %s16, 1
      %p101 = por %p99, %p100
      %p102 = scmp.ne.s32.totalorder %s94, %s97
      %p103 = scmp.eq.s32.totalorder %s16, 0
      %p104 = por %p102, %p103
      %p105 = scmp.ne.s32.totalorder %s94, %s97
      %p106 = scmp.eq.s32.totalorder %s21, 1
      %p107 = por %p105, %p106
      %p108 = scmp.ne.s32.totalorder %s97, %s98
      %p109 = scmp.eq.s32.totalorder %s21, 0
      %p110 = por %p108, %p109
      %p111 = scmp.ne.s32.totalorder %s97, %s98
      %p112 = scmp.eq.s32.totalorder %s22, 1
      %p113 = por %p111, %p112
      %p115 = scmp.ne.s32.totalorder %s98, %s114
      %p116 = scmp.eq.s32.totalorder %s22, 0
      %p117 = por %p115, %p116
      %p118 = scmp.le.s32.totalorder 1, %s16
      %p119 = scmp.lt.s32.totalorder %s16, 3
      %p120 = pnand %p118, %p119
      %p121 = pneg %p120
      // Predicated region
      $region9: #{tpu_custom_call.1} parent=5 // pred_check
        _
      $region10: #{tpu_custom_call.1} parent=5 // pred_check_branch
        %123 = sbr.rel (%p120) target = $region12
      $region11: #{tpu_custom_call.1} parent=5 // pred_region
        %s124 = ssub.s32 %s16, 1
        // Predicated region
        $region13: #{tpu_custom_call.1} parent=11 // pred_check
          %p125 = pneg %p63
        $region14: #{tpu_custom_call.1} parent=11 // pred_check_branch
          %127 = sbr.rel (%p125) target = $region16
        $region15: #{tpu_custom_call.1} parent=11 // pred_region
          %s129 = ssub.s32 5760, 5760
          %130 = vsyncadd [#allocation9], %s129
          %s131 = sshll.u32 [#allocation8], 4
          %s132 = int_to_ptr.vmem [resolvable:$true] %s131
          %137 = dma.hbm_to_vmem [thread:$0]  %s1, 5760, %s132, [#allocation9], 128, 128, 8
        $region16: #{tpu_custom_call.1} parent=11 // pred_fallthru
          _
        // Predicated region
        $region17: #{tpu_custom_call.1} parent=11 // pred_check
          %p138 = pneg %p84
        $region18: #{tpu_custom_call.1} parent=11 // pred_check_branch
          %140 = sbr.rel (%p138) target = $region20
        $region19: #{tpu_custom_call.1} parent=11 // pred_region
          _
        $region20: #{tpu_custom_call.1} parent=11 // pred_fallthru
          _
      $region12: #{tpu_custom_call.1} parent=5 // pred_fallthru
        _
      %p141 = scmp.lt.s32.totalorder %s16, 2
      // Predicated region
      $region21: #{tpu_custom_call.1} parent=5 // pred_check
        %p142 = pneg %p141
      $region22: #{tpu_custom_call.1} parent=5 // pred_check_branch
        %144 = sbr.rel (%p142) target = $region24
      $region23: #{tpu_custom_call.1} parent=5 // pred_region
        // Predicated region
        $region25: #{tpu_custom_call.1} parent=23 // pred_check
          %p145 = pneg %p36
        $region26: #{tpu_custom_call.1} parent=23 // pred_check_branch
          %147 = sbr.rel (%p145) target = $region28
        $region27: #{tpu_custom_call.1} parent=23 // pred_region
          %s148 = sand.u32 %s26, 1
          %s149 = scalar_lea.sflag [#allocation6], %s148
          %s150 = sand.u32 %s26, 1
          %s151 = smul.addr %s150, 64
          %s152 = scalar_lea.vmem [#allocation5], %s151
          %s154 = ssub.s32 1024, 1024
          %155 = vsyncadd %s149, %s154
          %s156 = smul.addr %s16, 8
          %s157 = smul.addr %s156, 128
          %s158 = scalar_lea.hbm %s0, %s157
          %s159 = sshll.u32 %s152, 4
          %s160 = int_to_ptr.vmem [resolvable:$true] %s159
          %165 = dma.hbm_to_vmem [thread:$0]  %s158, 1024, %s160, %s149, 128, 128, 8
        $region28: #{tpu_custom_call.1} parent=23 // pred_fallthru
          _
      $region24: #{tpu_custom_call.1} parent=5 // pred_fallthru
        _
      %p166 = scmp.le.s32.totalorder 1, %s16
      %p167 = scmp.lt.s32.totalorder %s16, 3
      %p168 = pnand %p166, %p167
      %p169 = pneg %p168
      // Predicated region
      $region29: #{tpu_custom_call.1} parent=5 // pred_check
        _
      $region30: #{tpu_custom_call.1} parent=5 // pred_check_branch
        %171 = sbr.rel (%p168) target = $region32
      $region31: #{tpu_custom_call.1} parent=5 // pred_region
        %s172 = ssub.s32 %s16, 1
        %s173 = sand.u32 %s29, 1
        %s174 = scalar_lea.sflag [#allocation6], %s173
        %s175 = sand.u32 %s29, 1
        %s176 = smul.addr %s175, 64
        %s177 = scalar_lea.vmem [#allocation5], %s176
        // Predicated region
        $region33: #{tpu_custom_call.1} parent=31 // pred_check
          %p178 = pneg %p42
        $region34: #{tpu_custom_call.1} parent=31 // pred_check_branch
          %180 = sbr.rel (%p178) target = $region36
        $region35: #{tpu_custom_call.1} parent=31 // pred_region
          %181 = dma.done %s174, 1024
        $region36: #{tpu_custom_call.1} parent=31 // pred_fallthru
          _
        // Predicated region
        $region37: #{tpu_custom_call.1} parent=31 // pred_check
          %p182 = pneg %p63
        $region38: #{tpu_custom_call.1} parent=31 // pred_check_branch
          %184 = sbr.rel (%p182) target = $region40
        $region39: #{tpu_custom_call.1} parent=31 // pred_region
          %185 = dma.done [#allocation9], 5760
        $region40: #{tpu_custom_call.1} parent=31 // pred_fallthru
          _
        %s186 = sand.u32 %s29, 1
        %s187 = scalar_lea.sflag [#allocation6], %s186
        %s188 = sand.u32 %s29, 1
        %s189 = smul.addr %s188, 64
        %s190 = scalar_lea.vmem [#allocation5], %s189
        %p191 = pneg %p42
        %p192 = pneg %p39
        %p193 = pneg %p63
        %p194 = pneg %p60
        %p195 = pneg %p84
        %p196 = pneg %p81
        %p197 = pneg %p110
        %p198 = pneg %p107
        %s199 = sand.u32 %s97, 1
        %s200 = scalar_lea.sflag [#allocation7], %s199
        %s201 = sand.u32 %s97, 1
        %s202 = smul.addr %s201, 64
        %s203 = scalar_lea.vmem [#allocation10], %s202
        %vm204 = vcmask 326656
        %205 = vst.msk [vmem:[#allocation2] sm:$0xff] %vm204, 0.0
        %s206 = scalar_lea.vmem [#allocation2], 72
        %207 = vst.msk [vmem:[%s206] sm:$0xff] %vm204, 0.0
        %208 = vst.msk [vmem:[#allocation3] sm:$0xff] %vm204, 0.0
        %s209 = scalar_lea.vmem [#allocation3], 72
        %210 = vst.msk [vmem:[%s209] sm:$0xff] %vm204, 0.0
        %211 = vst.msk [vmem:[#allocation4] sm:$0xff] %vm204, 0.0
        %s212 = scalar_lea.vmem [#allocation4], 72
        %213 = vst.msk [vmem:[%s212] sm:$0xff] %vm204, 0.0
        %v214 = vld [vmem:[%s177] sm:$0xff]
        %v215 = vld [vmem:[%s177 + $0x8] sm:$0xff]
        %v216 = vld [vmem:[%s177 + $0x10] sm:$0xff]
        %v217 = vld [vmem:[%s177 + $0x18] sm:$0xff]
        %v218 = vld [vmem:[%s177 + $0x20] sm:$0xff]
        %v219 = vld [vmem:[%s177 + $0x28] sm:$0xff]
        %v220 = vld [vmem:[%s177 + $0x30] sm:$0xff]
        %v221 = vld [vmem:[%s177 + $0x38] sm:$0xff]
        %v222 = vmax.f32 %v214, 0.0
        %v223 = vmax.f32 %v215, 0.0
        %v224 = vmax.f32 %v216, 0.0
        %v225 = vmax.f32 %v217, 0.0
        %v226 = vmax.f32 %v218, 0.0
        %v227 = vmax.f32 %v219, 0.0
        %v228 = vmax.f32 %v220, 0.0
        %v229 = vmax.f32 %v221, 0.0
        %s230 = scalar_lea.vmem [#allocation3], 8
        %231 = vst.msk [vmem:[%s230] sm:$0xff] %vm204, %v222
        %232 = vst.msk [vmem:[%s230 + $0x8] sm:$0xff] %vm204, %v223
        %233 = vst.msk [vmem:[%s230 + $0x10] sm:$0xff] %vm204, %v224
        %234 = vst.msk [vmem:[%s230 + $0x18] sm:$0xff] %vm204, %v225
        %235 = vst.msk [vmem:[%s230 + $0x20] sm:$0xff] %vm204, %v226
        %236 = vst.msk [vmem:[%s230 + $0x28] sm:$0xff] %vm204, %v227
        %237 = vst.msk [vmem:[%s230 + $0x30] sm:$0xff] %vm204, %v228
        %238 = vst.msk [vmem:[%s230 + $0x38] sm:$0xff] %vm204, %v229
        %v239 = vld [vmem:[%s177] sm:$0x7f]
        %v240 = vld [vmem:[%s177 + $0x8] sm:$0x7f]
        %v241 = vld [vmem:[%s177 + $0x10] sm:$0x7f]
        %v242 = vld [vmem:[%s177 + $0x18] sm:$0x7f]
        %v243 = vld [vmem:[%s177 + $0x20] sm:$0x7f]
        %v244 = vld [vmem:[%s177 + $0x28] sm:$0x7f]
        %v245 = vld [vmem:[%s177 + $0x30] sm:$0x7f]
        %v246 = vld [vmem:[%s177 + $0x38] sm:$0x7f]
        %v247 = vmax.f32 %v239, 0.0
        %v248 = vmax.f32 %v240, 0.0
        %v249 = vmax.f32 %v241, 0.0
        %v250 = vmax.f32 %v242, 0.0
        %v251 = vmax.f32 %v243, 0.0
        %v252 = vmax.f32 %v244, 0.0
        %v253 = vmax.f32 %v245, 0.0
        %v254 = vmax.f32 %v246, 0.0
        %s255 = scalar_lea.vmem [#allocation2], 8
        %vm256 = vcmask 325632
        %257 = vst.msk [vmem:[%s255 + $0x1] sm:$0x7f] %vm256, %v247
        %258 = vst.msk [vmem:[%s255 + $0x9] sm:$0x7f] %vm256, %v248
        %259 = vst.msk [vmem:[%s255 + $0x11] sm:$0x7f] %vm256, %v249
        %260 = vst.msk [vmem:[%s255 + $0x19] sm:$0x7f] %vm256, %v250
        %261 = vst.msk [vmem:[%s255 + $0x21] sm:$0x7f] %vm256, %v251
        %262 = vst.msk [vmem:[%s255 + $0x29] sm:$0x7f] %vm256, %v252
        %263 = vst.msk [vmem:[%s255 + $0x31] sm:$0x7f] %vm256, %v253
        %264 = vst.msk [vmem:[%s255 + $0x39] sm:$0x7f] %vm256, %v254
        %vm265 = vcmask 319488
        %266 = vst.msk [vmem:[%s255] sm:$0x1] %vm265, 0.0
        %267 = vst.msk [vmem:[%s255 + $0x8] sm:$0x1] %vm265, 0.0
        %268 = vst.msk [vmem:[%s255 + $0x10] sm:$0x1] %vm265, 0.0
        %269 = vst.msk [vmem:[%s255 + $0x18] sm:$0x1] %vm265, 0.0
        %270 = vst.msk [vmem:[%s255 + $0x20] sm:$0x1] %vm265, 0.0
        %271 = vst.msk [vmem:[%s255 + $0x28] sm:$0x1] %vm265, 0.0
        %272 = vst.msk [vmem:[%s255 + $0x30] sm:$0x1] %vm265, 0.0
        %273 = vst.msk [vmem:[%s255 + $0x38] sm:$0x1] %vm265, 0.0
        %v274 = vld [vmem:[%s177 + $0x1] sm:$0x7f]
        %v275 = vld [vmem:[%s177 + $0x9] sm:$0x7f]
        %v276 = vld [vmem:[%s177 + $0x11] sm:$0x7f]
        %v277 = vld [vmem:[%s177 + $0x19] sm:$0x7f]
        %v278 = vld [vmem:[%s177 + $0x21] sm:$0x7f]
        %v279 = vld [vmem:[%s177 + $0x29] sm:$0x7f]
        %v280 = vld [vmem:[%s177 + $0x31] sm:$0x7f]
        %v281 = vld [vmem:[%s177 + $0x39] sm:$0x7f]
        %v282 = vmax.f32 %v274, 0.0
        %v283 = vmax.f32 %v275, 0.0
        %v284 = vmax.f32 %v276, 0.0
        %v285 = vmax.f32 %v277, 0.0
        %v286 = vmax.f32 %v278, 0.0
        %v287 = vmax.f32 %v279, 0.0
        %v288 = vmax.f32 %v280, 0.0
        %v289 = vmax.f32 %v281, 0.0
        %s290 = scalar_lea.vmem [#allocation4], 8
        %291 = vst.msk [vmem:[%s290] sm:$0x7f] %vm256, %v282
        %292 = vst.msk [vmem:[%s290 + $0x8] sm:$0x7f] %vm256, %v283
        %293 = vst.msk [vmem:[%s290 + $0x10] sm:$0x7f] %vm256, %v284
        %294 = vst.msk [vmem:[%s290 + $0x18] sm:$0x7f] %vm256, %v285
        %295 = vst.msk [vmem:[%s290 + $0x20] sm:$0x7f] %vm256, %v286
        %296 = vst.msk [vmem:[%s290 + $0x28] sm:$0x7f] %vm256, %v287
        %297 = vst.msk [vmem:[%s290 + $0x30] sm:$0x7f] %vm256, %v288
        %298 = vst.msk [vmem:[%s290 + $0x38] sm:$0x7f] %vm256, %v289
        %299 = vst.msk [vmem:[%s290 + $0x7] sm:$0x1] %vm265, 0.0
        %300 = vst.msk [vmem:[%s290 + $0xf] sm:$0x1] %vm265, 0.0
        %301 = vst.msk [vmem:[%s290 + $0x17] sm:$0x1] %vm265, 0.0
        %302 = vst.msk [vmem:[%s290 + $0x1f] sm:$0x1] %vm265, 0.0
        %303 = vst.msk [vmem:[%s290 + $0x27] sm:$0x1] %vm265, 0.0
        %304 = vst.msk [vmem:[%s290 + $0x2f] sm:$0x1] %vm265, 0.0
        %305 = vst.msk [vmem:[%s290 + $0x37] sm:$0x1] %vm265, 0.0
        %306 = vst.msk [vmem:[%s290 + $0x3f] sm:$0x1] %vm265, 0.0
        %v307 = vld [vmem:[#allocation2] sm:$0xff]
        %v308 = vld [vmem:[#allocation2 + $0x8] sm:$0xff]
        %v309 = vld [vmem:[#allocation2 + $0x10] sm:$0xff]
        %v310 = vld [vmem:[#allocation2 + $0x18] sm:$0xff]
        %v311 = vld [vmem:[#allocation2 + $0x20] sm:$0xff]
        %v312 = vld [vmem:[#allocation2 + $0x28] sm:$0xff]
        %v313 = vld [vmem:[#allocation2 + $0x30] sm:$0xff]
        %v314 = vld [vmem:[#allocation2 + $0x38] sm:$0xff]
        %v315 = vld [vmem:[#allocation8] sm:$0xff]
        %v316 = vld [vmem:[#allocation8 + $0x8] sm:$0xff]
        %v317 = vld [vmem:[#allocation8 + $0x10] sm:$0xff]
        %v318 = vld [vmem:[#allocation8 + $0x18] sm:$0xff]
        %v319 = vld [vmem:[#allocation8 + $0x20] sm:$0xff]
        %v320 = vld [vmem:[#allocation3] sm:$0xff]
        %v321 = vld [vmem:[#allocation3 + $0x8] sm:$0xff]
        %v322 = vld [vmem:[#allocation3 + $0x10] sm:$0xff]
        %v323 = vld [vmem:[#allocation3 + $0x18] sm:$0xff]
        %v324 = vld [vmem:[#allocation3 + $0x20] sm:$0xff]
        %v325 = vld [vmem:[#allocation3 + $0x28] sm:$0xff]
        %v326 = vld [vmem:[#allocation3 + $0x30] sm:$0xff]
        %v327 = vld [vmem:[#allocation3 + $0x38] sm:$0xff]
        %s328 = scalar_lea.vmem [#allocation8], 40
        %v329 = vld [vmem:[%s328] sm:$0xff]
        %v330 = vld [vmem:[%s328 + $0x8] sm:$0xff]
        %v331 = vld [vmem:[%s328 + $0x10] sm:$0xff]
        %v332 = vld [vmem:[%s328 + $0x18] sm:$0xff]
        %v333 = vld [vmem:[%s328 + $0x20] sm:$0xff]
        %v335 = vsel %vm204, %v320, 0
        %v338 = vsel %vm204, %v321, 0
        %v341 = vsel %vm204, %v322, 0
        %v344 = vsel %vm204, %v323, 0
        %v347 = vsel %vm204, %v324, 0
        %v350 = vsel %vm204, %v325, 0
        %v353 = vsel %vm204, %v326, 0
        %v356 = vsel %vm204, %v327, 0
        %358 = vmatprep.subr.mxu0 0.0
        %359 = vmatpush1.msra.mxu0 0.0
        %360 = vmatprep.subr.mxu0 0.0
        %361 = vmatpush1.msra.mxu0 0.0
        %362 = vmatprep.subr.mxu0 0.0
        %363 = vmatpush1.msra.mxu0 0.0
        %364 = vmatprep.subr.mxu0 0.0
        %365 = vmatpush1.msra.mxu0 0.0
        %366 = vmatprep.subr.mxu0 0.0
        %367 = vmatpush1.msra.mxu0 0.0
        %368 = vmatprep.subr.mxu0 0.0
        %369 = vmatpush1.msra.mxu0 0.0
        %370 = vmatprep.subr.mxu0 0.0
        %371 = vmatpush1.msra.mxu0 0.0
        %372 = vmatprep.subr.mxu0 0.0
        %373 = vmatpush1.msra.mxu0 0.0
        %374 = vmatprep.subr.mxu0 0.0
        %375 = vmatpush1.msra.mxu0 0.0
        %376 = vmatprep.subr.mxu0 0.0
        %377 = vmatpush1.msra.mxu0 0.0
        %378 = vmatprep.subr.mxu0 0.0
        %379 = vmatpush1.msra.mxu0 0.0
        %380 = vmatprep.subr.mxu0 0.0
        %381 = vmatpush1.msra.mxu0 %v333
        %382 = vmatprep.subr.mxu0 0.0
        %383 = vmatpush1.msra.mxu0 %v332
        %384 = vmatprep.subr.mxu0 0.0
        %385 = vmatpush1.msra.mxu0 %v331
        %386 = vmatprep.subr.mxu0 0.0
        %387 = vmatpush1.msra.mxu0 %v330
        %388 = vmatprep.subr.mxu0 0.0
        %389 = vmatpush1.msra.mxu0 %v329
        %390 = vmatprep.subr.mxu0 0.0
        %391 = vmatpush2.msra.mxu0 0.0
        %392 = vmatprep.subr.mxu0 0.0
        %393 = vmatpush2.msra.mxu0 0.0
        %394 = vmatprep.subr.mxu0 0.0
        %395 = vmatpush2.msra.mxu0 0.0
        %396 = vmatprep.subr.mxu0 0.0
        %397 = vmatpush2.msra.mxu0 0.0
        %398 = vmatprep.subr.mxu0 0.0
        %399 = vmatpush2.msra.mxu0 0.0
        %400 = vmatprep.subr.mxu0 0.0
        %401 = vmatpush2.msra.mxu0 0.0
        %402 = vmatprep.subr.mxu0 0.0
        %403 = vmatpush2.msra.mxu0 0.0
        %404 = vmatprep.subr.mxu0 0.0
        %405 = vmatpush2.msra.mxu0 0.0
        %406 = vmatprep.subr.mxu0 0.0
        %407 = vmatpush2.msra.mxu0 0.0
        %408 = vmatprep.subr.mxu0 0.0
        %409 = vmatpush2.msra.mxu0 0.0
        %410 = vmatprep.subr.mxu0 0.0
        %411 = vmatpush2.msra.mxu0 0.0
        %412 = vmatprep.subr.mxu0 0.0
        %413 = vmatpush2.msra.mxu0 0.0
        %414 = vmatprep.subr.mxu0 0.0
        %415 = vmatpush2.msra.mxu0 0.0
        %416 = vmatprep.subr.mxu0 0.0
        %417 = vmatpush2.msra.mxu0 0.0
        %418 = vmatprep.subr.mxu0 0.0
        %419 = vmatpush2.msra.mxu0 0.0
        %420 = vmatprep.subr.mxu0 0.0
        %421 = vmatpush2.msra.mxu0 0.0
        %422 = vmatprep.mubr.f32.mxu0 0.0
        %423 = vmatmul.mubr.f32.gmra.mxu0 %v335
        %v424 = vpop.f32.mrf.mxu0
        %v425 = vadd.f32 0.0, %v424
        %v426 = vpop.f32.mrf.mxu0
        %427 = vmatprep.mubr.f32.mxu0 0.0
        %428 = vmatmul.mubr.f32.gmra.mxu0 %v338
        %v429 = vpop.f32.mrf.mxu0
        %v430 = vadd.f32 0.0, %v429
        %v431 = vpop.f32.mrf.mxu0
        %432 = vmatprep.mubr.f32.mxu0 0.0
        %433 = vmatmul.mubr.f32.gmra.mxu0 %v341
        %v434 = vpop.f32.mrf.mxu0
        %v435 = vadd.f32 0.0, %v434
        %v436 = vpop.f32.mrf.mxu0
        %437 = vmatprep.mubr.f32.mxu0 0.0
        %438 = vmatmul.mubr.f32.gmra.mxu0 %v344
        %v439 = vpop.f32.mrf.mxu0
        %v440 = vadd.f32 0.0, %v439
        %v441 = vpop.f32.mrf.mxu0
        %442 = vmatprep.mubr.f32.mxu0 0.0
        %443 = vmatmul.mubr.f32.gmra.mxu0 %v347
        %v444 = vpop.f32.mrf.mxu0
        %v445 = vadd.f32 0.0, %v444
        %v446 = vpop.f32.mrf.mxu0
        %447 = vmatprep.mubr.f32.mxu0 0.0
        %448 = vmatmul.mubr.f32.gmra.mxu0 %v350
        %v449 = vpop.f32.mrf.mxu0
        %v450 = vadd.f32 0.0, %v449
        %v451 = vpop.f32.mrf.mxu0
        %452 = vmatprep.mubr.f32.mxu0 0.0
        %453 = vmatmul.mubr.f32.gmra.mxu0 %v353
        %v454 = vpop.f32.mrf.mxu0
        %v455 = vadd.f32 0.0, %v454
        %v456 = vpop.f32.mrf.mxu0
        %457 = vmatprep.mubr.f32.mxu0 0.0
        %458 = vmatmul.mubr.f32.gmra.mxu0 %v356
        %v459 = vpop.f32.mrf.mxu0
        %v460 = vadd.f32 0.0, %v459
        %v461 = vpop.f32.mrf.mxu0
        %462 = vdwg.mxu0
        %v464 = vsel %vm204, %v307, 0
        %v467 = vsel %vm204, %v308, 0
        %v470 = vsel %vm204, %v309, 0
        %v473 = vsel %vm204, %v310, 0
        %v476 = vsel %vm204, %v311, 0
        %v479 = vsel %vm204, %v312, 0
        %v482 = vsel %vm204, %v313, 0
        %v485 = vsel %vm204, %v314, 0
        %487 = vmatprep.subr.mxu0 0.0
        %488 = vmatpush1.msra.mxu0 0.0
        %489 = vmatprep.subr.mxu0 0.0
        %490 = vmatpush1.msra.mxu0 0.0
        %491 = vmatprep.subr.mxu0 0.0
        %492 = vmatpush1.msra.mxu0 0.0
        %493 = vmatprep.subr.mxu0 0.0
        %494 = vmatpush1.msra.mxu0 0.0
        %495 = vmatprep.subr.mxu0 0.0
        %496 = vmatpush1.msra.mxu0 0.0
        %497 = vmatprep.subr.mxu0 0.0
        %498 = vmatpush1.msra.mxu0 0.0
        %499 = vmatprep.subr.mxu0 0.0
        %500 = vmatpush1.msra.mxu0 0.0
        %501 = vmatprep.subr.mxu0 0.0
        %502 = vmatpush1.msra.mxu0 0.0
        %503 = vmatprep.subr.mxu0 0.0
        %504 = vmatpush1.msra.mxu0 0.0
        %505 = vmatprep.subr.mxu0 0.0
        %506 = vmatpush1.msra.mxu0 0.0
        %507 = vmatprep.subr.mxu0 0.0
        %508 = vmatpush1.msra.mxu0 0.0
        %509 = vmatprep.subr.mxu0 0.0
        %510 = vmatpush1.msra.mxu0 %v319
        %511 = vmatprep.subr.mxu0 0.0
        %512 = vmatpush1.msra.mxu0 %v318
        %513 = vmatprep.subr.mxu0 0.0
        %514 = vmatpush1.msra.mxu0 %v317
        %515 = vmatprep.subr.mxu0 0.0
        %516 = vmatpush1.msra.mxu0 %v316
        %517 = vmatprep.subr.mxu0 0.0
        %518 = vmatpush1.msra.mxu0 %v315
        %519 = vmatprep.subr.mxu0 0.0
        %520 = vmatpush2.msra.mxu0 0.0
        %521 = vmatprep.subr.mxu0 0.0
        %522 = vmatpush2.msra.mxu0 0.0
        %523 = vmatprep.subr.mxu0 0.0
        %524 = vmatpush2.msra.mxu0 0.0
        %525 = vmatprep.subr.mxu0 0.0
        %526 = vmatpush2.msra.mxu0 0.0
        %527 = vmatprep.subr.mxu0 0.0
        %528 = vmatpush2.msra.mxu0 0.0
        %529 = vmatprep.subr.mxu0 0.0
        %530 = vmatpush2.msra.mxu0 0.0
        %531 = vmatprep.subr.mxu0 0.0
        %532 = vmatpush2.msra.mxu0 0.0
        %533 = vmatprep.subr.mxu0 0.0
        %534 = vmatpush2.msra.mxu0 0.0
        %535 = vmatprep.subr.mxu0 0.0
        %536 = vmatpush2.msra.mxu0 0.0
        %537 = vmatprep.subr.mxu0 0.0
        %538 = vmatpush2.msra.mxu0 0.0
        %539 = vmatprep.subr.mxu0 0.0
        %540 = vmatpush2.msra.mxu0 0.0
        %541 = vmatprep.subr.mxu0 0.0
        %542 = vmatpush2.msra.mxu0 0.0
        %543 = vmatprep.subr.mxu0 0.0
        %544 = vmatpush2.msra.mxu0 0.0
        %545 = vmatprep.subr.mxu0 0.0
        %546 = vmatpush2.msra.mxu0 0.0
        %547 = vmatprep.subr.mxu0 0.0
        %548 = vmatpush2.msra.mxu0 0.0
        %549 = vmatprep.subr.mxu0 0.0
        %550 = vmatpush2.msra.mxu0 0.0
        %551 = vmatprep.mubr.f32.mxu0 0.0
        %552 = vmatmul.mubr.f32.gmra.mxu0 %v464
        %v553 = vpop.f32.mrf.mxu0
        %v554 = vadd.f32 %v425, %v553
        %v555 = vpop.f32.mrf.mxu0
        %556 = vmatprep.mubr.f32.mxu0 0.0
        %557 = vmatmul.mubr.f32.gmra.mxu0 %v467
        %v558 = vpop.f32.mrf.mxu0
        %v559 = vadd.f32 %v430, %v558
        %v560 = vpop.f32.mrf.mxu0
        %561 = vmatprep.mubr.f32.mxu0 0.0
        %562 = vmatmul.mubr.f32.gmra.mxu0 %v470
        %v563 = vpop.f32.mrf.mxu0
        %v564 = vadd.f32 %v435, %v563
        %v565 = vpop.f32.mrf.mxu0
        %566 = vmatprep.mubr.f32.mxu0 0.0
        %567 = vmatmul.mubr.f32.gmra.mxu0 %v473
        %v568 = vpop.f32.mrf.mxu0
        %v569 = vadd.f32 %v440, %v568
        %v570 = vpop.f32.mrf.mxu0
        %571 = vmatprep.mubr.f32.mxu0 0.0
        %572 = vmatmul.mubr.f32.gmra.mxu0 %v476
        %v573 = vpop.f32.mrf.mxu0
        %v574 = vadd.f32 %v445, %v573
        %v575 = vpop.f32.mrf.mxu0
        %576 = vmatprep.mubr.f32.mxu0 0.0
        %577 = vmatmul.mubr.f32.gmra.mxu0 %v479
        %v578 = vpop.f32.mrf.mxu0
        %v579 = vadd.f32 %v450, %v578
        %v580 = vpop.f32.mrf.mxu0
        %581 = vmatprep.mubr.f32.mxu0 0.0
        %582 = vmatmul.mubr.f32.gmra.mxu0 %v482
        %v583 = vpop.f32.mrf.mxu0
        %v584 = vadd.f32 %v455, %v583
        %v585 = vpop.f32.mrf.mxu0
        %586 = vmatprep.mubr.f32.mxu0 0.0
        %587 = vmatmul.mubr.f32.gmra.mxu0 %v485
        %v588 = vpop.f32.mrf.mxu0
        %v589 = vadd.f32 %v460, %v588
        %v590 = vpop.f32.mrf.mxu0
        %591 = vdwg.mxu0
        %v592 = vld [vmem:[#allocation4] sm:$0xff]
        %v593 = vld [vmem:[#allocation4 + $0x8] sm:$0xff]
        %v594 = vld [vmem:[#allocation4 + $0x10] sm:$0xff]
        %v595 = vld [vmem:[#allocation4 + $0x18] sm:$0xff]
        %v596 = vld [vmem:[#allocation4 + $0x20] sm:$0xff]
        %v597 = vld [vmem:[#allocation4 + $0x28] sm:$0xff]
        %v598 = vld [vmem:[#allocation4 + $0x30] sm:$0xff]
        %v599 = vld [vmem:[#allocation4 + $0x38] sm:$0xff]
        %s600 = scalar_lea.vmem [#allocation8], 80
        %v601 = vld [vmem:[%s600] sm:$0xff]
        %v602 = vld [vmem:[%s600 + $0x8] sm:$0xff]
        %v603 = vld [vmem:[%s600 + $0x10] sm:$0xff]
        %v604 = vld [vmem:[%s600 + $0x18] sm:$0xff]
        %v605 = vld [vmem:[%s600 + $0x20] sm:$0xff]
        %v607 = vsel %vm204, %v592, 0
        %v610 = vsel %vm204, %v593, 0
        %v613 = vsel %vm204, %v594, 0
        %v616 = vsel %vm204, %v595, 0
        %v619 = vsel %vm204, %v596, 0
        %v622 = vsel %vm204, %v597, 0
        %v625 = vsel %vm204, %v598, 0
        %v628 = vsel %vm204, %v599, 0
        %630 = vmatprep.subr.mxu0 0.0
        %631 = vmatpush1.msra.mxu0 0.0
        %632 = vmatprep.subr.mxu0 0.0
        %633 = vmatpush1.msra.mxu0 0.0
        %634 = vmatprep.subr.mxu0 0.0
        %635 = vmatpush1.msra.mxu0 0.0
        %636 = vmatprep.subr.mxu0 0.0
        %637 = vmatpush1.msra.mxu0 0.0
        %638 = vmatprep.subr.mxu0 0.0
        %639 = vmatpush1.msra.mxu0 0.0
        %640 = vmatprep.subr.mxu0 0.0
        %641 = vmatpush1.msra.mxu0 0.0
        %642 = vmatprep.subr.mxu0 0.0
        %643 = vmatpush1.msra.mxu0 0.0
        %644 = vmatprep.subr.mxu0 0.0
        %645 = vmatpush1.msra.mxu0 0.0
        %646 = vmatprep.subr.mxu0 0.0
        %647 = vmatpush1.msra.mxu0 0.0
        %648 = vmatprep.subr.mxu0 0.0
        %649 = vmatpush1.msra.mxu0 0.0
        %650 = vmatprep.subr.mxu0 0.0
        %651 = vmatpush1.msra.mxu0 0.0
        %652 = vmatprep.subr.mxu0 0.0
        %653 = vmatpush1.msra.mxu0 %v605
        %654 = vmatprep.subr.mxu0 0.0
        %655 = vmatpush1.msra.mxu0 %v604
        %656 = vmatprep.subr.mxu0 0.0
        %657 = vmatpush1.msra.mxu0 %v603
        %658 = vmatprep.subr.mxu0 0.0
        %659 = vmatpush1.msra.mxu0 %v602
        %660 = vmatprep.subr.mxu0 0.0
        %661 = vmatpush1.msra.mxu0 %v601
        %662 = vmatprep.subr.mxu0 0.0
        %663 = vmatpush2.msra.mxu0 0.0
        %664 = vmatprep.subr.mxu0 0.0
        %665 = vmatpush2.msra.mxu0 0.0
        %666 = vmatprep.subr.mxu0 0.0
        %667 = vmatpush2.msra.mxu0 0.0
        %668 = vmatprep.subr.mxu0 0.0
        %669 = vmatpush2.msra.mxu0 0.0
        %670 = vmatprep.subr.mxu0 0.0
        %671 = vmatpush2.msra.mxu0 0.0
        %672 = vmatprep.subr.mxu0 0.0
        %673 = vmatpush2.msra.mxu0 0.0
        %674 = vmatprep.subr.mxu0 0.0
        %675 = vmatpush2.msra.mxu0 0.0
        %676 = vmatprep.subr.mxu0 0.0
        %677 = vmatpush2.msra.mxu0 0.0
        %678 = vmatprep.subr.mxu0 0.0
        %679 = vmatpush2.msra.mxu0 0.0
        %680 = vmatprep.subr.mxu0 0.0
        %681 = vmatpush2.msra.mxu0 0.0
        %682 = vmatprep.subr.mxu0 0.0
        %683 = vmatpush2.msra.mxu0 0.0
        %684 = vmatprep.subr.mxu0 0.0
        %685 = vmatpush2.msra.mxu0 0.0
        %686 = vmatprep.subr.mxu0 0.0
        %687 = vmatpush2.msra.mxu0 0.0
        %688 = vmatprep.subr.mxu0 0.0
        %689 = vmatpush2.msra.mxu0 0.0
        %690 = vmatprep.subr.mxu0 0.0
        %691 = vmatpush2.msra.mxu0 0.0
        %692 = vmatprep.subr.mxu0 0.0
        %693 = vmatpush2.msra.mxu0 0.0
        %694 = vmatprep.mubr.f32.mxu0 0.0
        %695 = vmatmul.mubr.f32.gmra.mxu0 %v607
        %v696 = vpop.f32.mrf.mxu0
        %v697 = vadd.f32 0.0, %v696
        %v698 = vpop.f32.mrf.mxu0
        %699 = vmatprep.mubr.f32.mxu0 0.0
        %700 = vmatmul.mubr.f32.gmra.mxu0 %v610
        %v701 = vpop.f32.mrf.mxu0
        %v702 = vadd.f32 0.0, %v701
        %v703 = vpop.f32.mrf.mxu0
        %704 = vmatprep.mubr.f32.mxu0 0.0
        %705 = vmatmul.mubr.f32.gmra.mxu0 %v613
        %v706 = vpop.f32.mrf.mxu0
        %v707 = vadd.f32 0.0, %v706
        %v708 = vpop.f32.mrf.mxu0
        %709 = vmatprep.mubr.f32.mxu0 0.0
        %710 = vmatmul.mubr.f32.gmra.mxu0 %v616
        %v711 = vpop.f32.mrf.mxu0
        %v712 = vadd.f32 0.0, %v711
        %v713 = vpop.f32.mrf.mxu0
        %714 = vmatprep.mubr.f32.mxu0 0.0
        %715 = vmatmul.mubr.f32.gmra.mxu0 %v619
        %v716 = vpop.f32.mrf.mxu0
        %v717 = vadd.f32 0.0, %v716
        %v718 = vpop.f32.mrf.mxu0
        %719 = vmatprep.mubr.f32.mxu0 0.0
        %720 = vmatmul.mubr.f32.gmra.mxu0 %v622
        %v721 = vpop.f32.mrf.mxu0
        %v722 = vadd.f32 0.0, %v721
        %v723 = vpop.f32.mrf.mxu0
        %724 = vmatprep.mubr.f32.mxu0 0.0
        %725 = vmatmul.mubr.f32.gmra.mxu0 %v625
        %v726 = vpop.f32.mrf.mxu0
        %v727 = vadd.f32 0.0, %v726
        %v728 = vpop.f32.mrf.mxu0
        %729 = vmatprep.mubr.f32.mxu0 0.0
        %730 = vmatmul.mubr.f32.gmra.mxu0 %v628
        %v731 = vpop.f32.mrf.mxu0
        %v732 = vadd.f32 0.0, %v731
        %v733 = vpop.f32.mrf.mxu0
        %734 = vdwg.mxu0
        %v735 = vadd.f32 %v554, %v697
        %v736 = vadd.f32 %v559, %v702
        %v737 = vadd.f32 %v564, %v707
        %v738 = vadd.f32 %v569, %v712
        %v739 = vadd.f32 %v574, %v717
        %v740 = vadd.f32 %v579, %v722
        %v741 = vadd.f32 %v584, %v727
        %v742 = vadd.f32 %v589, %v732
        %v743 = vld [vmem:[%s255] sm:$0xff]
        %v744 = vld [vmem:[%s255 + $0x8] sm:$0xff]
        %v745 = vld [vmem:[%s255 + $0x10] sm:$0xff]
        %v746 = vld [vmem:[%s255 + $0x18] sm:$0xff]
        %v747 = vld [vmem:[%s255 + $0x20] sm:$0xff]
        %v748 = vld [vmem:[%s255 + $0x28] sm:$0xff]
        %v749 = vld [vmem:[%s255 + $0x30] sm:$0xff]
        %v750 = vld [vmem:[%s255 + $0x38] sm:$0xff]
        %s751 = scalar_lea.vmem [#allocation8], 120
        %v752 = vld [vmem:[%s751] sm:$0xff]
        %v753 = vld [vmem:[%s751 + $0x8] sm:$0xff]
        %v754 = vld [vmem:[%s751 + $0x10] sm:$0xff]
        %v755 = vld [vmem:[%s751 + $0x18] sm:$0xff]
        %v756 = vld [vmem:[%s751 + $0x20] sm:$0xff]
        %v758 = vsel %vm204, %v743, 0
        %v761 = vsel %vm204, %v744, 0
        %v764 = vsel %vm204, %v745, 0
        %v767 = vsel %vm204, %v746, 0
        %v770 = vsel %vm204, %v747, 0
        %v773 = vsel %vm204, %v748, 0
        %v776 = vsel %vm204, %v749, 0
        %v779 = vsel %vm204, %v750, 0
        %781 = vmatprep.subr.mxu0 0.0
        %782 = vmatpush1.msra.mxu0 0.0
        %783 = vmatprep.subr.mxu0 0.0
        %784 = vmatpush1.msra.mxu0 0.0
        %785 = vmatprep.subr.mxu0 0.0
        %786 = vmatpush1.msra.mxu0 0.0
        %787 = vmatprep.subr.mxu0 0.0
        %788 = vmatpush1.msra.mxu0 0.0
        %789 = vmatprep.subr.mxu0 0.0
        %790 = vmatpush1.msra.mxu0 0.0
        %791 = vmatprep.subr.mxu0 0.0
        %792 = vmatpush1.msra.mxu0 0.0
        %793 = vmatprep.subr.mxu0 0.0
        %794 = vmatpush1.msra.mxu0 0.0
        %795 = vmatprep.subr.mxu0 0.0
        %796 = vmatpush1.msra.mxu0 0.0
        %797 = vmatprep.subr.mxu0 0.0
        %798 = vmatpush1.msra.mxu0 0.0
        %799 = vmatprep.subr.mxu0 0.0
        %800 = vmatpush1.msra.mxu0 0.0
        %801 = vmatprep.subr.mxu0 0.0
        %802 = vmatpush1.msra.mxu0 0.0
        %803 = vmatprep.subr.mxu0 0.0
        %804 = vmatpush1.msra.mxu0 %v756
        %805 = vmatprep.subr.mxu0 0.0
        %806 = vmatpush1.msra.mxu0 %v755
        %807 = vmatprep.subr.mxu0 0.0
        %808 = vmatpush1.msra.mxu0 %v754
        %809 = vmatprep.subr.mxu0 0.0
        %810 = vmatpush1.msra.mxu0 %v753
        %811 = vmatprep.subr.mxu0 0.0
        %812 = vmatpush1.msra.mxu0 %v752
        %813 = vmatprep.subr.mxu0 0.0
        %814 = vmatpush2.msra.mxu0 0.0
        %815 = vmatprep.subr.mxu0 0.0
        %816 = vmatpush2.msra.mxu0 0.0
        %817 = vmatprep.subr.mxu0 0.0
        %818 = vmatpush2.msra.mxu0 0.0
        %819 = vmatprep.subr.mxu0 0.0
        %820 = vmatpush2.msra.mxu0 0.0
        %821 = vmatprep.subr.mxu0 0.0
        %822 = vmatpush2.msra.mxu0 0.0
        %823 = vmatprep.subr.mxu0 0.0
        %824 = vmatpush2.msra.mxu0 0.0
        %825 = vmatprep.subr.mxu0 0.0
        %826 = vmatpush2.msra.mxu0 0.0
        %827 = vmatprep.subr.mxu0 0.0
        %828 = vmatpush2.msra.mxu0 0.0
        %829 = vmatprep.subr.mxu0 0.0
        %830 = vmatpush2.msra.mxu0 0.0
        %831 = vmatprep.subr.mxu0 0.0
        %832 = vmatpush2.msra.mxu0 0.0
        %833 = vmatprep.subr.mxu0 0.0
        %834 = vmatpush2.msra.mxu0 0.0
        %835 = vmatprep.subr.mxu0 0.0
        %836 = vmatpush2.msra.mxu0 0.0
        %837 = vmatprep.subr.mxu0 0.0
        %838 = vmatpush2.msra.mxu0 0.0
        %839 = vmatprep.subr.mxu0 0.0
        %840 = vmatpush2.msra.mxu0 0.0
        %841 = vmatprep.subr.mxu0 0.0
        %842 = vmatpush2.msra.mxu0 0.0
        %843 = vmatprep.subr.mxu0 0.0
        %844 = vmatpush2.msra.mxu0 0.0
        %845 = vmatprep.mubr.f32.mxu0 0.0
        %846 = vmatmul.mubr.f32.gmra.mxu0 %v758
        %v847 = vpop.f32.mrf.mxu0
        %v848 = vadd.f32 0.0, %v847
        %v849 = vpop.f32.mrf.mxu0
        %850 = vmatprep.mubr.f32.mxu0 0.0
        %851 = vmatmul.mubr.f32.gmra.mxu0 %v761
        %v852 = vpop.f32.mrf.mxu0
        %v853 = vadd.f32 0.0, %v852
        %v854 = vpop.f32.mrf.mxu0
        %855 = vmatprep.mubr.f32.mxu0 0.0
        %856 = vmatmul.mubr.f32.gmra.mxu0 %v764
        %v857 = vpop.f32.mrf.mxu0
        %v858 = vadd.f32 0.0, %v857
        %v859 = vpop.f32.mrf.mxu0
        %860 = vmatprep.mubr.f32.mxu0 0.0
        %861 = vmatmul.mubr.f32.gmra.mxu0 %v767
        %v862 = vpop.f32.mrf.mxu0
        %v863 = vadd.f32 0.0, %v862
        %v864 = vpop.f32.mrf.mxu0
        %865 = vmatprep.mubr.f32.mxu0 0.0
        %866 = vmatmul.mubr.f32.gmra.mxu0 %v770
        %v867 = vpop.f32.mrf.mxu0
        %v868 = vadd.f32 0.0, %v867
        %v869 = vpop.f32.mrf.mxu0
        %870 = vmatprep.mubr.f32.mxu0 0.0
        %871 = vmatmul.mubr.f32.gmra.mxu0 %v773
        %v872 = vpop.f32.mrf.mxu0
        %v873 = vadd.f32 0.0, %v872
        %v874 = vpop.f32.mrf.mxu0
        %875 = vmatprep.mubr.f32.mxu0 0.0
        %876 = vmatmul.mubr.f32.gmra.mxu0 %v776
        %v877 = vpop.f32.mrf.mxu0
        %v878 = vadd.f32 0.0, %v877
        %v879 = vpop.f32.mrf.mxu0
        %880 = vmatprep.mubr.f32.mxu0 0.0
        %881 = vmatmul.mubr.f32.gmra.mxu0 %v779
        %v882 = vpop.f32.mrf.mxu0
        %v883 = vadd.f32 0.0, %v882
        %v884 = vpop.f32.mrf.mxu0
        %885 = vdwg.mxu0
        %v886 = vadd.f32 %v735, %v848
        %v887 = vadd.f32 %v736, %v853
        %v888 = vadd.f32 %v737, %v858
        %v889 = vadd.f32 %v738, %v863
        %v890 = vadd.f32 %v739, %v868
        %v891 = vadd.f32 %v740, %v873
        %v892 = vadd.f32 %v741, %v878
        %v893 = vadd.f32 %v742, %v883
        %v894 = vld [vmem:[%s230] sm:$0xff]
        %v895 = vld [vmem:[%s230 + $0x8] sm:$0xff]
        %v896 = vld [vmem:[%s230 + $0x10] sm:$0xff]
        %v897 = vld [vmem:[%s230 + $0x18] sm:$0xff]
        %v898 = vld [vmem:[%s230 + $0x20] sm:$0xff]
        %v899 = vld [vmem:[%s230 + $0x28] sm:$0xff]
        %v900 = vld [vmem:[%s230 + $0x30] sm:$0xff]
        %v901 = vld [vmem:[%s230 + $0x38] sm:$0xff]
        %s902 = scalar_lea.vmem [#allocation8], 160
        %v903 = vld [vmem:[%s902] sm:$0xff]
        %v904 = vld [vmem:[%s902 + $0x8] sm:$0xff]
        %v905 = vld [vmem:[%s902 + $0x10] sm:$0xff]
        %v906 = vld [vmem:[%s902 + $0x18] sm:$0xff]
        %v907 = vld [vmem:[%s902 + $0x20] sm:$0xff]
        %v909 = vsel %vm204, %v894, 0
        %v912 = vsel %vm204, %v895, 0
        %v915 = vsel %vm204, %v896, 0
        %v918 = vsel %vm204, %v897, 0
        %v921 = vsel %vm204, %v898, 0
        %v924 = vsel %vm204, %v899, 0
        %v927 = vsel %vm204, %v900, 0
        %v930 = vsel %vm204, %v901, 0
        %932 = vmatprep.subr.mxu0 0.0
        %933 = vmatpush1.msra.mxu0 0.0
        %934 = vmatprep.subr.mxu0 0.0
        %935 = vmatpush1.msra.mxu0 0.0
        %936 = vmatprep.subr.mxu0 0.0
        %937 = vmatpush1.msra.mxu0 0.0
        %938 = vmatprep.subr.mxu0 0.0
        %939 = vmatpush1.msra.mxu0 0.0
        %940 = vmatprep.subr.mxu0 0.0
        %941 = vmatpush1.msra.mxu0 0.0
        %942 = vmatprep.subr.mxu0 0.0
        %943 = vmatpush1.msra.mxu0 0.0
        %944 = vmatprep.subr.mxu0 0.0
        %945 = vmatpush1.msra.mxu0 0.0
        %946 = vmatprep.subr.mxu0 0.0
        %947 = vmatpush1.msra.mxu0 0.0
        %948 = vmatprep.subr.mxu0 0.0
        %949 = vmatpush1.msra.mxu0 0.0
        %950 = vmatprep.subr.mxu0 0.0
        %951 = vmatpush1.msra.mxu0 0.0
        %952 = vmatprep.subr.mxu0 0.0
        %953 = vmatpush1.msra.mxu0 0.0
        %954 = vmatprep.subr.mxu0 0.0
        %955 = vmatpush1.msra.mxu0 %v907
        %956 = vmatprep.subr.mxu0 0.0
        %957 = vmatpush1.msra.mxu0 %v906
        %958 = vmatprep.subr.mxu0 0.0
        %959 = vmatpush1.msra.mxu0 %v905
        %960 = vmatprep.subr.mxu0 0.0
        %961 = vmatpush1.msra.mxu0 %v904
        %962 = vmatprep.subr.mxu0 0.0
        %963 = vmatpush1.msra.mxu0 %v903
        %964 = vmatprep.subr.mxu0 0.0
        %965 = vmatpush2.msra.mxu0 0.0
        %966 = vmatprep.subr.mxu0 0.0
        %967 = vmatpush2.msra.mxu0 0.0
        %968 = vmatprep.subr.mxu0 0.0
        %969 = vmatpush2.msra.mxu0 0.0
        %970 = vmatprep.subr.mxu0 0.0
        %971 = vmatpush2.msra.mxu0 0.0
        %972 = vmatprep.subr.mxu0 0.0
        %973 = vmatpush2.msra.mxu0 0.0
        %974 = vmatprep.subr.mxu0 0.0
        %975 = vmatpush2.msra.mxu0 0.0
        %976 = vmatprep.subr.mxu0 0.0
        %977 = vmatpush2.msra.mxu0 0.0
        %978 = vmatprep.subr.mxu0 0.0
        %979 = vmatpush2.msra.mxu0 0.0
        %980 = vmatprep.subr.mxu0 0.0
        %981 = vmatpush2.msra.mxu0 0.0
        %982 = vmatprep.subr.mxu0 0.0
        %983 = vmatpush2.msra.mxu0 0.0
        %984 = vmatprep.subr.mxu0 0.0
        %985 = vmatpush2.msra.mxu0 0.0
        %986 = vmatprep.subr.mxu0 0.0
        %987 = vmatpush2.msra.mxu0 0.0
        %988 = vmatprep.subr.mxu0 0.0
        %989 = vmatpush2.msra.mxu0 0.0
        %990 = vmatprep.subr.mxu0 0.0
        %991 = vmatpush2.msra.mxu0 0.0
        %992 = vmatprep.subr.mxu0 0.0
        %993 = vmatpush2.msra.mxu0 0.0
        %994 = vmatprep.subr.mxu0 0.0
        %995 = vmatpush2.msra.mxu0 0.0
        %996 = vmatprep.mubr.f32.mxu0 0.0
        %997 = vmatmul.mubr.f32.gmra.mxu0 %v909
        %v998 = vpop.f32.mrf.mxu0
        %v999 = vadd.f32 0.0, %v998
        %v1000 = vpop.f32.mrf.mxu0
        %1001 = vmatprep.mubr.f32.mxu0 0.0
        %1002 = vmatmul.mubr.f32.gmra.mxu0 %v912
        %v1003 = vpop.f32.mrf.mxu0
        %v1004 = vadd.f32 0.0, %v1003
        %v1005 = vpop.f32.mrf.mxu0
        %1006 = vmatprep.mubr.f32.mxu0 0.0
        %1007 = vmatmul.mubr.f32.gmra.mxu0 %v915
        %v1008 = vpop.f32.mrf.mxu0
        %v1009 = vadd.f32 0.0, %v1008
        %v1010 = vpop.f32.mrf.mxu0
        %1011 = vmatprep.mubr.f32.mxu0 0.0
        %1012 = vmatmul.mubr.f32.gmra.mxu0 %v918
        %v1013 = vpop.f32.mrf.mxu0
        %v1014 = vadd.f32 0.0, %v1013
        %v1015 = vpop.f32.mrf.mxu0
        %1016 = vmatprep.mubr.f32.mxu0 0.0
        %1017 = vmatmul.mubr.f32.gmra.mxu0 %v921
        %v1018 = vpop.f32.mrf.mxu0
        %v1019 = vadd.f32 0.0, %v1018
        %v1020 = vpop.f32.mrf.mxu0
        %1021 = vmatprep.mubr.f32.mxu0 0.0
        %1022 = vmatmul.mubr.f32.gmra.mxu0 %v924
        %v1023 = vpop.f32.mrf.mxu0
        %v1024 = vadd.f32 0.0, %v1023
        %v1025 = vpop.f32.mrf.mxu0
        %1026 = vmatprep.mubr.f32.mxu0 0.0
        %1027 = vmatmul.mubr.f32.gmra.mxu0 %v927
        %v1028 = vpop.f32.mrf.mxu0
        %v1029 = vadd.f32 0.0, %v1028
        %v1030 = vpop.f32.mrf.mxu0
        %1031 = vmatprep.mubr.f32.mxu0 0.0
        %1032 = vmatmul.mubr.f32.gmra.mxu0 %v930
        %v1033 = vpop.f32.mrf.mxu0
        %v1034 = vadd.f32 0.0, %v1033
        %v1035 = vpop.f32.mrf.mxu0
        %1036 = vdwg.mxu0
        %v1037 = vadd.f32 %v886, %v999
        %v1038 = vadd.f32 %v887, %v1004
        %v1039 = vadd.f32 %v888, %v1009
        %v1040 = vadd.f32 %v889, %v1014
        %v1041 = vadd.f32 %v890, %v1019
        %v1042 = vadd.f32 %v891, %v1024
        %v1043 = vadd.f32 %v892, %v1029
        %v1044 = vadd.f32 %v893, %v1034
        %v1045 = vld [vmem:[%s290] sm:$0xff]
        %v1046 = vld [vmem:[%s290 + $0x8] sm:$0xff]
        %v1047 = vld [vmem:[%s290 + $0x10] sm:$0xff]
        %v1048 = vld [vmem:[%s290 + $0x18] sm:$0xff]
        %v1049 = vld [vmem:[%s290 + $0x20] sm:$0xff]
        %v1050 = vld [vmem:[%s290 + $0x28] sm:$0xff]
        %v1051 = vld [vmem:[%s290 + $0x30] sm:$0xff]
        %v1052 = vld [vmem:[%s290 + $0x38] sm:$0xff]
        %s1053 = scalar_lea.vmem [#allocation8], 200
        %v1054 = vld [vmem:[%s1053] sm:$0xff]
        %v1055 = vld [vmem:[%s1053 + $0x8] sm:$0xff]
        %v1056 = vld [vmem:[%s1053 + $0x10] sm:$0xff]
        %v1057 = vld [vmem:[%s1053 + $0x18] sm:$0xff]
        %v1058 = vld [vmem:[%s1053 + $0x20] sm:$0xff]
        %v1060 = vsel %vm204, %v1045, 0
        %v1063 = vsel %vm204, %v1046, 0
        %v1066 = vsel %vm204, %v1047, 0
        %v1069 = vsel %vm204, %v1048, 0
        %v1072 = vsel %vm204, %v1049, 0
        %v1075 = vsel %vm204, %v1050, 0
        %v1078 = vsel %vm204, %v1051, 0
        %v1081 = vsel %vm204, %v1052, 0
        %1083 = vmatprep.subr.mxu0 0.0
        %1084 = vmatpush1.msra.mxu0 0.0
        %1085 = vmatprep.subr.mxu0 0.0
        %1086 = vmatpush1.msra.mxu0 0.0
        %1087 = vmatprep.subr.mxu0 0.0
        %1088 = vmatpush1.msra.mxu0 0.0
        %1089 = vmatprep.subr.mxu0 0.0
        %1090 = vmatpush1.msra.mxu0 0.0
        %1091 = vmatprep.subr.mxu0 0.0
        %1092 = vmatpush1.msra.mxu0 0.0
        %1093 = vmatprep.subr.mxu0 0.0
        %1094 = vmatpush1.msra.mxu0 0.0
        %1095 = vmatprep.subr.mxu0 0.0
        %1096 = vmatpush1.msra.mxu0 0.0
        %1097 = vmatprep.subr.mxu0 0.0
        %1098 = vmatpush1.msra.mxu0 0.0
        %1099 = vmatprep.subr.mxu0 0.0
        %1100 = vmatpush1.msra.mxu0 0.0
        %1101 = vmatprep.subr.mxu0 0.0
        %1102 = vmatpush1.msra.mxu0 0.0
        %1103 = vmatprep.subr.mxu0 0.0
        %1104 = vmatpush1.msra.mxu0 0.0
        %1105 = vmatprep.subr.mxu0 0.0
        %1106 = vmatpush1.msra.mxu0 %v1058
        %1107 = vmatprep.subr.mxu0 0.0
        %1108 = vmatpush1.msra.mxu0 %v1057
        %1109 = vmatprep.subr.mxu0 0.0
        %1110 = vmatpush1.msra.mxu0 %v1056
        %1111 = vmatprep.subr.mxu0 0.0
        %1112 = vmatpush1.msra.mxu0 %v1055
        %1113 = vmatprep.subr.mxu0 0.0
        %1114 = vmatpush1.msra.mxu0 %v1054
        %1115 = vmatprep.subr.mxu0 0.0
        %1116 = vmatpush2.msra.mxu0 0.0
        %1117 = vmatprep.subr.mxu0 0.0
        %1118 = vmatpush2.msra.mxu0 0.0
        %1119 = vmatprep.subr.mxu0 0.0
        %1120 = vmatpush2.msra.mxu0 0.0
        %1121 = vmatprep.subr.mxu0 0.0
        %1122 = vmatpush2.msra.mxu0 0.0
        %1123 = vmatprep.subr.mxu0 0.0
        %1124 = vmatpush2.msra.mxu0 0.0
        %1125 = vmatprep.subr.mxu0 0.0
        %1126 = vmatpush2.msra.mxu0 0.0
        %1127 = vmatprep.subr.mxu0 0.0
        %1128 = vmatpush2.msra.mxu0 0.0
        %1129 = vmatprep.subr.mxu0 0.0
        %1130 = vmatpush2.msra.mxu0 0.0
        %1131 = vmatprep.subr.mxu0 0.0
        %1132 = vmatpush2.msra.mxu0 0.0
        %1133 = vmatprep.subr.mxu0 0.0
        %1134 = vmatpush2.msra.mxu0 0.0
        %1135 = vmatprep.subr.mxu0 0.0
        %1136 = vmatpush2.msra.mxu0 0.0
        %1137 = vmatprep.subr.mxu0 0.0
        %1138 = vmatpush2.msra.mxu0 0.0
        %1139 = vmatprep.subr.mxu0 0.0
        %1140 = vmatpush2.msra.mxu0 0.0
        %1141 = vmatprep.subr.mxu0 0.0
        %1142 = vmatpush2.msra.mxu0 0.0
        %1143 = vmatprep.subr.mxu0 0.0
        %1144 = vmatpush2.msra.mxu0 0.0
        %1145 = vmatprep.subr.mxu0 0.0
        %1146 = vmatpush2.msra.mxu0 0.0
        %1147 = vmatprep.mubr.f32.mxu0 0.0
        %1148 = vmatmul.mubr.f32.gmra.mxu0 %v1060
        %v1149 = vpop.f32.mrf.mxu0
        %v1150 = vadd.f32 0.0, %v1149
        %v1151 = vpop.f32.mrf.mxu0
        %1152 = vmatprep.mubr.f32.mxu0 0.0
        %1153 = vmatmul.mubr.f32.gmra.mxu0 %v1063
        %v1154 = vpop.f32.mrf.mxu0
        %v1155 = vadd.f32 0.0, %v1154
        %v1156 = vpop.f32.mrf.mxu0
        %1157 = vmatprep.mubr.f32.mxu0 0.0
        %1158 = vmatmul.mubr.f32.gmra.mxu0 %v1066
        %v1159 = vpop.f32.mrf.mxu0
        %v1160 = vadd.f32 0.0, %v1159
        %v1161 = vpop.f32.mrf.mxu0
        %1162 = vmatprep.mubr.f32.mxu0 0.0
        %1163 = vmatmul.mubr.f32.gmra.mxu0 %v1069
        %v1164 = vpop.f32.mrf.mxu0
        %v1165 = vadd.f32 0.0, %v1164
        %v1166 = vpop.f32.mrf.mxu0
        %1167 = vmatprep.mubr.f32.mxu0 0.0
        %1168 = vmatmul.mubr.f32.gmra.mxu0 %v1072
        %v1169 = vpop.f32.mrf.mxu0
        %v1170 = vadd.f32 0.0, %v1169
        %v1171 = vpop.f32.mrf.mxu0
        %1172 = vmatprep.mubr.f32.mxu0 0.0
        %1173 = vmatmul.mubr.f32.gmra.mxu0 %v1075
        %v1174 = vpop.f32.mrf.mxu0
        %v1175 = vadd.f32 0.0, %v1174
        %v1176 = vpop.f32.mrf.mxu0
        %1177 = vmatprep.mubr.f32.mxu0 0.0
        %1178 = vmatmul.mubr.f32.gmra.mxu0 %v1078
        %v1179 = vpop.f32.mrf.mxu0
        %v1180 = vadd.f32 0.0, %v1179
        %v1181 = vpop.f32.mrf.mxu0
        %1182 = vmatprep.mubr.f32.mxu0 0.0
        %1183 = vmatmul.mubr.f32.gmra.mxu0 %v1081
        %v1184 = vpop.f32.mrf.mxu0
        %v1185 = vadd.f32 0.0, %v1184
        %v1186 = vpop.f32.mrf.mxu0
        %1187 = vdwg.mxu0
        %v1188 = vadd.f32 %v1037, %v1150
        %v1189 = vadd.f32 %v1038, %v1155
        %v1190 = vadd.f32 %v1039, %v1160
        %v1191 = vadd.f32 %v1040, %v1165
        %v1192 = vadd.f32 %v1041, %v1170
        %v1193 = vadd.f32 %v1042, %v1175
        %v1194 = vadd.f32 %v1043, %v1180
        %v1195 = vadd.f32 %v1044, %v1185
        %s1196 = scalar_lea.vmem [#allocation2], 16
        %v1197 = vld [vmem:[%s1196] sm:$0xff]
        %v1198 = vld [vmem:[%s1196 + $0x8] sm:$0xff]
        %v1199 = vld [vmem:[%s1196 + $0x10] sm:$0xff]
        %v1200 = vld [vmem:[%s1196 + $0x18] sm:$0xff]
        %v1201 = vld [vmem:[%s1196 + $0x20] sm:$0xff]
        %v1202 = vld [vmem:[%s1196 + $0x28] sm:$0xff]
        %v1203 = vld [vmem:[%s1196 + $0x30] sm:$0xff]
        %v1204 = vld [vmem:[%s1196 + $0x38] sm:$0xff]
        %s1205 = scalar_lea.vmem [#allocation8], 240
        %v1206 = vld [vmem:[%s1205] sm:$0xff]
        %v1207 = vld [vmem:[%s1205 + $0x8] sm:$0xff]
        %v1208 = vld [vmem:[%s1205 + $0x10] sm:$0xff]
        %v1209 = vld [vmem:[%s1205 + $0x18] sm:$0xff]
        %v1210 = vld [vmem:[%s1205 + $0x20] sm:$0xff]
        %v1212 = vsel %vm204, %v1197, 0
        %v1215 = vsel %vm204, %v1198, 0
        %v1218 = vsel %vm204, %v1199, 0
        %v1221 = vsel %vm204, %v1200, 0
        %v1224 = vsel %vm204, %v1201, 0
        %v1227 = vsel %vm204, %v1202, 0
        %v1230 = vsel %vm204, %v1203, 0
        %v1233 = vsel %vm204, %v1204, 0
        %1235 = vmatprep.subr.mxu0 0.0
        %1236 = vmatpush1.msra.mxu0 0.0
        %1237 = vmatprep.subr.mxu0 0.0
        %1238 = vmatpush1.msra.mxu0 0.0
        %1239 = vmatprep.subr.mxu0 0.0
        %1240 = vmatpush1.msra.mxu0 0.0
        %1241 = vmatprep.subr.mxu0 0.0
        %1242 = vmatpush1.msra.mxu0 0.0
        %1243 = vmatprep.subr.mxu0 0.0
        %1244 = vmatpush1.msra.mxu0 0.0
        %1245 = vmatprep.subr.mxu0 0.0
        %1246 = vmatpush1.msra.mxu0 0.0
        %1247 = vmatprep.subr.mxu0 0.0
        %1248 = vmatpush1.msra.mxu0 0.0
        %1249 = vmatprep.subr.mxu0 0.0
        %1250 = vmatpush1.msra.mxu0 0.0
        %1251 = vmatprep.subr.mxu0 0.0
        %1252 = vmatpush1.msra.mxu0 0.0
        %1253 = vmatprep.subr.mxu0 0.0
        %1254 = vmatpush1.msra.mxu0 0.0
        %1255 = vmatprep.subr.mxu0 0.0
        %1256 = vmatpush1.msra.mxu0 0.0
        %1257 = vmatprep.subr.mxu0 0.0
        %1258 = vmatpush1.msra.mxu0 %v1210
        %1259 = vmatprep.subr.mxu0 0.0
        %1260 = vmatpush1.msra.mxu0 %v1209
        %1261 = vmatprep.subr.mxu0 0.0
        %1262 = vmatpush1.msra.mxu0 %v1208
        %1263 = vmatprep.subr.mxu0 0.0
        %1264 = vmatpush1.msra.mxu0 %v1207
        %1265 = vmatprep.subr.mxu0 0.0
        %1266 = vmatpush1.msra.mxu0 %v1206
        %1267 = vmatprep.subr.mxu0 0.0
        %1268 = vmatpush2.msra.mxu0 0.0
        %1269 = vmatprep.subr.mxu0 0.0
        %1270 = vmatpush2.msra.mxu0 0.0
        %1271 = vmatprep.subr.mxu0 0.0
        %1272 = vmatpush2.msra.mxu0 0.0
        %1273 = vmatprep.subr.mxu0 0.0
        %1274 = vmatpush2.msra.mxu0 0.0
        %1275 = vmatprep.subr.mxu0 0.0
        %1276 = vmatpush2.msra.mxu0 0.0
        %1277 = vmatprep.subr.mxu0 0.0
        %1278 = vmatpush2.msra.mxu0 0.0
        %1279 = vmatprep.subr.mxu0 0.0
        %1280 = vmatpush2.msra.mxu0 0.0
        %1281 = vmatprep.subr.mxu0 0.0
        %1282 = vmatpush2.msra.mxu0 0.0
        %1283 = vmatprep.subr.mxu0 0.0
        %1284 = vmatpush2.msra.mxu0 0.0
        %1285 = vmatprep.subr.mxu0 0.0
        %1286 = vmatpush2.msra.mxu0 0.0
        %1287 = vmatprep.subr.mxu0 0.0
        %1288 = vmatpush2.msra.mxu0 0.0
        %1289 = vmatprep.subr.mxu0 0.0
        %1290 = vmatpush2.msra.mxu0 0.0
        %1291 = vmatprep.subr.mxu0 0.0
        %1292 = vmatpush2.msra.mxu0 0.0
        %1293 = vmatprep.subr.mxu0 0.0
        %1294 = vmatpush2.msra.mxu0 0.0
        %1295 = vmatprep.subr.mxu0 0.0
        %1296 = vmatpush2.msra.mxu0 0.0
        %1297 = vmatprep.subr.mxu0 0.0
        %1298 = vmatpush2.msra.mxu0 0.0
        %1299 = vmatprep.mubr.f32.mxu0 0.0
        %1300 = vmatmul.mubr.f32.gmra.mxu0 %v1212
        %v1301 = vpop.f32.mrf.mxu0
        %v1302 = vadd.f32 0.0, %v1301
        %v1303 = vpop.f32.mrf.mxu0
        %1304 = vmatprep.mubr.f32.mxu0 0.0
        %1305 = vmatmul.mubr.f32.gmra.mxu0 %v1215
        %v1306 = vpop.f32.mrf.mxu0
        %v1307 = vadd.f32 0.0, %v1306
        %v1308 = vpop.f32.mrf.mxu0
        %1309 = vmatprep.mubr.f32.mxu0 0.0
        %1310 = vmatmul.mubr.f32.gmra.mxu0 %v1218
        %v1311 = vpop.f32.mrf.mxu0
        %v1312 = vadd.f32 0.0, %v1311
        %v1313 = vpop.f32.mrf.mxu0
        %1314 = vmatprep.mubr.f32.mxu0 0.0
        %1315 = vmatmul.mubr.f32.gmra.mxu0 %v1221
        %v1316 = vpop.f32.mrf.mxu0
        %v1317 = vadd.f32 0.0, %v1316
        %v1318 = vpop.f32.mrf.mxu0
        %1319 = vmatprep.mubr.f32.mxu0 0.0
        %1320 = vmatmul.mubr.f32.gmra.mxu0 %v1224
        %v1321 = vpop.f32.mrf.mxu0
        %v1322 = vadd.f32 0.0, %v1321
        %v1323 = vpop.f32.mrf.mxu0
        %1324 = vmatprep.mubr.f32.mxu0 0.0
        %1325 = vmatmul.mubr.f32.gmra.mxu0 %v1227
        %v1326 = vpop.f32.mrf.mxu0
        %v1327 = vadd.f32 0.0, %v1326
        %v1328 = vpop.f32.mrf.mxu0
        %1329 = vmatprep.mubr.f32.mxu0 0.0
        %1330 = vmatmul.mubr.f32.gmra.mxu0 %v1230
        %v1331 = vpop.f32.mrf.mxu0
        %v1332 = vadd.f32 0.0, %v1331
        %v1333 = vpop.f32.mrf.mxu0
        %1334 = vmatprep.mubr.f32.mxu0 0.0
        %1335 = vmatmul.mubr.f32.gmra.mxu0 %v1233
        %v1336 = vpop.f32.mrf.mxu0
        %v1337 = vadd.f32 0.0, %v1336
        %v1338 = vpop.f32.mrf.mxu0
        %1339 = vdwg.mxu0
        %v1340 = vadd.f32 %v1188, %v1302
        %v1341 = vadd.f32 %v1189, %v1307
        %v1342 = vadd.f32 %v1190, %v1312
        %v1343 = vadd.f32 %v1191, %v1317
        %v1344 = vadd.f32 %v1192, %v1322
        %v1345 = vadd.f32 %v1193, %v1327
        %v1346 = vadd.f32 %v1194, %v1332
        %v1347 = vadd.f32 %v1195, %v1337
        %s1348 = scalar_lea.vmem [#allocation3], 16
        %v1349 = vld [vmem:[%s1348] sm:$0xff]
        %v1350 = vld [vmem:[%s1348 + $0x8] sm:$0xff]
        %v1351 = vld [vmem:[%s1348 + $0x10] sm:$0xff]
        %v1352 = vld [vmem:[%s1348 + $0x18] sm:$0xff]
        %v1353 = vld [vmem:[%s1348 + $0x20] sm:$0xff]
        %v1354 = vld [vmem:[%s1348 + $0x28] sm:$0xff]
        %v1355 = vld [vmem:[%s1348 + $0x30] sm:$0xff]
        %v1356 = vld [vmem:[%s1348 + $0x38] sm:$0xff]
        %s1357 = scalar_lea.vmem [#allocation8], 280
        %v1358 = vld [vmem:[%s1357] sm:$0xff]
        %v1359 = vld [vmem:[%s1357 + $0x8] sm:$0xff]
        %v1360 = vld [vmem:[%s1357 + $0x10] sm:$0xff]
        %v1361 = vld [vmem:[%s1357 + $0x18] sm:$0xff]
        %v1362 = vld [vmem:[%s1357 + $0x20] sm:$0xff]
        %v1364 = vsel %vm204, %v1349, 0
        %v1367 = vsel %vm204, %v1350, 0
        %v1370 = vsel %vm204, %v1351, 0
        %v1373 = vsel %vm204, %v1352, 0
        %v1376 = vsel %vm204, %v1353, 0
        %v1379 = vsel %vm204, %v1354, 0
        %v1382 = vsel %vm204, %v1355, 0
        %v1385 = vsel %vm204, %v1356, 0
        %1387 = vmatprep.subr.mxu0 0.0
        %1388 = vmatpush1.msra.mxu0 0.0
        %1389 = vmatprep.subr.mxu0 0.0
        %1390 = vmatpush1.msra.mxu0 0.0
        %1391 = vmatprep.subr.mxu0 0.0
        %1392 = vmatpush1.msra.mxu0 0.0
        %1393 = vmatprep.subr.mxu0 0.0
        %1394 = vmatpush1.msra.mxu0 0.0
        %1395 = vmatprep.subr.mxu0 0.0
        %1396 = vmatpush1.msra.mxu0 0.0
        %1397 = vmatprep.subr.mxu0 0.0
        %1398 = vmatpush1.msra.mxu0 0.0
        %1399 = vmatprep.subr.mxu0 0.0
        %1400 = vmatpush1.msra.mxu0 0.0
        %1401 = vmatprep.subr.mxu0 0.0
        %1402 = vmatpush1.msra.mxu0 0.0
        %1403 = vmatprep.subr.mxu0 0.0
        %1404 = vmatpush1.msra.mxu0 0.0
        %1405 = vmatprep.subr.mxu0 0.0
        %1406 = vmatpush1.msra.mxu0 0.0
        %1407 = vmatprep.subr.mxu0 0.0
        %1408 = vmatpush1.msra.mxu0 0.0
        %1409 = vmatprep.subr.mxu0 0.0
        %1410 = vmatpush1.msra.mxu0 %v1362
        %1411 = vmatprep.subr.mxu0 0.0
        %1412 = vmatpush1.msra.mxu0 %v1361
        %1413 = vmatprep.subr.mxu0 0.0
        %1414 = vmatpush1.msra.mxu0 %v1360
        %1415 = vmatprep.subr.mxu0 0.0
        %1416 = vmatpush1.msra.mxu0 %v1359
        %1417 = vmatprep.subr.mxu0 0.0
        %1418 = vmatpush1.msra.mxu0 %v1358
        %1419 = vmatprep.subr.mxu0 0.0
        %1420 = vmatpush2.msra.mxu0 0.0
        %1421 = vmatprep.subr.mxu0 0.0
        %1422 = vmatpush2.msra.mxu0 0.0
        %1423 = vmatprep.subr.mxu0 0.0
        %1424 = vmatpush2.msra.mxu0 0.0
        %1425 = vmatprep.subr.mxu0 0.0
        %1426 = vmatpush2.msra.mxu0 0.0
        %1427 = vmatprep.subr.mxu0 0.0
        %1428 = vmatpush2.msra.mxu0 0.0
        %1429 = vmatprep.subr.mxu0 0.0
        %1430 = vmatpush2.msra.mxu0 0.0
        %1431 = vmatprep.subr.mxu0 0.0
        %1432 = vmatpush2.msra.mxu0 0.0
        %1433 = vmatprep.subr.mxu0 0.0
        %1434 = vmatpush2.msra.mxu0 0.0
        %1435 = vmatprep.subr.mxu0 0.0
        %1436 = vmatpush2.msra.mxu0 0.0
        %1437 = vmatprep.subr.mxu0 0.0
        %1438 = vmatpush2.msra.mxu0 0.0
        %1439 = vmatprep.subr.mxu0 0.0
        %1440 = vmatpush2.msra.mxu0 0.0
        %1441 = vmatprep.subr.mxu0 0.0
        %1442 = vmatpush2.msra.mxu0 0.0
        %1443 = vmatprep.subr.mxu0 0.0
        %1444 = vmatpush2.msra.mxu0 0.0
        %1445 = vmatprep.subr.mxu0 0.0
        %1446 = vmatpush2.msra.mxu0 0.0
        %1447 = vmatprep.subr.mxu0 0.0
        %1448 = vmatpush2.msra.mxu0 0.0
        %1449 = vmatprep.subr.mxu0 0.0
        %1450 = vmatpush2.msra.mxu0 0.0
        %1451 = vmatprep.mubr.f32.mxu0 0.0
        %1452 = vmatmul.mubr.f32.gmra.mxu0 %v1364
        %v1453 = vpop.f32.mrf.mxu0
        %v1454 = vadd.f32 0.0, %v1453
        %v1455 = vpop.f32.mrf.mxu0
        %1456 = vmatprep.mubr.f32.mxu0 0.0
        %1457 = vmatmul.mubr.f32.gmra.mxu0 %v1367
        %v1458 = vpop.f32.mrf.mxu0
        %v1459 = vadd.f32 0.0, %v1458
        %v1460 = vpop.f32.mrf.mxu0
        %1461 = vmatprep.mubr.f32.mxu0 0.0
        %1462 = vmatmul.mubr.f32.gmra.mxu0 %v1370
        %v1463 = vpop.f32.mrf.mxu0
        %v1464 = vadd.f32 0.0, %v1463
        %v1465 = vpop.f32.mrf.mxu0
        %1466 = vmatprep.mubr.f32.mxu0 0.0
        %1467 = vmatmul.mubr.f32.gmra.mxu0 %v1373
        %v1468 = vpop.f32.mrf.mxu0
        %v1469 = vadd.f32 0.0, %v1468
        %v1470 = vpop.f32.mrf.mxu0
        %1471 = vmatprep.mubr.f32.mxu0 0.0
        %1472 = vmatmul.mubr.f32.gmra.mxu0 %v1376
        %v1473 = vpop.f32.mrf.mxu0
        %v1474 = vadd.f32 0.0, %v1473
        %v1475 = vpop.f32.mrf.mxu0
        %1476 = vmatprep.mubr.f32.mxu0 0.0
        %1477 = vmatmul.mubr.f32.gmra.mxu0 %v1379
        %v1478 = vpop.f32.mrf.mxu0
        %v1479 = vadd.f32 0.0, %v1478
        %v1480 = vpop.f32.mrf.mxu0
        %1481 = vmatprep.mubr.f32.mxu0 0.0
        %1482 = vmatmul.mubr.f32.gmra.mxu0 %v1382
        %v1483 = vpop.f32.mrf.mxu0
        %v1484 = vadd.f32 0.0, %v1483
        %v1485 = vpop.f32.mrf.mxu0
        %1486 = vmatprep.mubr.f32.mxu0 0.0
        %1487 = vmatmul.mubr.f32.gmra.mxu0 %v1385
        %v1488 = vpop.f32.mrf.mxu0
        %v1489 = vadd.f32 0.0, %v1488
        %v1490 = vpop.f32.mrf.mxu0
        %1491 = vdwg.mxu0
        %v1492 = vadd.f32 %v1340, %v1454
        %v1493 = vadd.f32 %v1341, %v1459
        %v1494 = vadd.f32 %v1342, %v1464
        %v1495 = vadd.f32 %v1343, %v1469
        %v1496 = vadd.f32 %v1344, %v1474
        %v1497 = vadd.f32 %v1345, %v1479
        %v1498 = vadd.f32 %v1346, %v1484
        %v1499 = vadd.f32 %v1347, %v1489
        %s1500 = scalar_lea.vmem [#allocation4], 16
        %v1501 = vld [vmem:[%s1500] sm:$0xff]
        %v1502 = vld [vmem:[%s1500 + $0x8] sm:$0xff]
        %v1503 = vld [vmem:[%s1500 + $0x10] sm:$0xff]
        %v1504 = vld [vmem:[%s1500 + $0x18] sm:$0xff]
        %v1505 = vld [vmem:[%s1500 + $0x20] sm:$0xff]
        %v1506 = vld [vmem:[%s1500 + $0x28] sm:$0xff]
        %v1507 = vld [vmem:[%s1500 + $0x30] sm:$0xff]
        %v1508 = vld [vmem:[%s1500 + $0x38] sm:$0xff]
        %s1509 = scalar_lea.vmem [#allocation8], 320
        %v1510 = vld [vmem:[%s1509] sm:$0xff]
        %v1511 = vld [vmem:[%s1509 + $0x8] sm:$0xff]
        %v1512 = vld [vmem:[%s1509 + $0x10] sm:$0xff]
        %v1513 = vld [vmem:[%s1509 + $0x18] sm:$0xff]
        %v1514 = vld [vmem:[%s1509 + $0x20] sm:$0xff]
        %v1516 = vsel %vm204, %v1501, 0
        %v1519 = vsel %vm204, %v1502, 0
        %v1522 = vsel %vm204, %v1503, 0
        %v1525 = vsel %vm204, %v1504, 0
        %v1528 = vsel %vm204, %v1505, 0
        %v1531 = vsel %vm204, %v1506, 0
        %v1534 = vsel %vm204, %v1507, 0
        %v1537 = vsel %vm204, %v1508, 0
        %1539 = vmatprep.subr.mxu0 0.0
        %1540 = vmatpush1.msra.mxu0 0.0
        %1541 = vmatprep.subr.mxu0 0.0
        %1542 = vmatpush1.msra.mxu0 0.0
        %1543 = vmatprep.subr.mxu0 0.0
        %1544 = vmatpush1.msra.mxu0 0.0
        %1545 = vmatprep.subr.mxu0 0.0
        %1546 = vmatpush1.msra.mxu0 0.0
        %1547 = vmatprep.subr.mxu0 0.0
        %1548 = vmatpush1.msra.mxu0 0.0
        %1549 = vmatprep.subr.mxu0 0.0
        %1550 = vmatpush1.msra.mxu0 0.0
        %1551 = vmatprep.subr.mxu0 0.0
        %1552 = vmatpush1.msra.mxu0 0.0
        %1553 = vmatprep.subr.mxu0 0.0
        %1554 = vmatpush1.msra.mxu0 0.0
        %1555 = vmatprep.subr.mxu0 0.0
        %1556 = vmatpush1.msra.mxu0 0.0
        %1557 = vmatprep.subr.mxu0 0.0
        %1558 = vmatpush1.msra.mxu0 0.0
        %1559 = vmatprep.subr.mxu0 0.0
        %1560 = vmatpush1.msra.mxu0 0.0
        %1561 = vmatprep.subr.mxu0 0.0
        %1562 = vmatpush1.msra.mxu0 %v1514
        %1563 = vmatprep.subr.mxu0 0.0
        %1564 = vmatpush1.msra.mxu0 %v1513
        %1565 = vmatprep.subr.mxu0 0.0
        %1566 = vmatpush1.msra.mxu0 %v1512
        %1567 = vmatprep.subr.mxu0 0.0
        %1568 = vmatpush1.msra.mxu0 %v1511
        %1569 = vmatprep.subr.mxu0 0.0
        %1570 = vmatpush1.msra.mxu0 %v1510
        %1571 = vmatprep.subr.mxu0 0.0
        %1572 = vmatpush2.msra.mxu0 0.0
        %1573 = vmatprep.subr.mxu0 0.0
        %1574 = vmatpush2.msra.mxu0 0.0
        %1575 = vmatprep.subr.mxu0 0.0
        %1576 = vmatpush2.msra.mxu0 0.0
        %1577 = vmatprep.subr.mxu0 0.0
        %1578 = vmatpush2.msra.mxu0 0.0
        %1579 = vmatprep.subr.mxu0 0.0
        %1580 = vmatpush2.msra.mxu0 0.0
        %1581 = vmatprep.subr.mxu0 0.0
        %1582 = vmatpush2.msra.mxu0 0.0
        %1583 = vmatprep.subr.mxu0 0.0
        %1584 = vmatpush2.msra.mxu0 0.0
        %1585 = vmatprep.subr.mxu0 0.0
        %1586 = vmatpush2.msra.mxu0 0.0
        %1587 = vmatprep.subr.mxu0 0.0
        %1588 = vmatpush2.msra.mxu0 0.0
        %1589 = vmatprep.subr.mxu0 0.0
        %1590 = vmatpush2.msra.mxu0 0.0
        %1591 = vmatprep.subr.mxu0 0.0
        %1592 = vmatpush2.msra.mxu0 0.0
        %1593 = vmatprep.subr.mxu0 0.0
        %1594 = vmatpush2.msra.mxu0 0.0
        %1595 = vmatprep.subr.mxu0 0.0
        %1596 = vmatpush2.msra.mxu0 0.0
        %1597 = vmatprep.subr.mxu0 0.0
        %1598 = vmatpush2.msra.mxu0 0.0
        %1599 = vmatprep.subr.mxu0 0.0
        %1600 = vmatpush2.msra.mxu0 0.0
        %1601 = vmatprep.subr.mxu0 0.0
        %1602 = vmatpush2.msra.mxu0 0.0
        %1603 = vmatprep.mubr.f32.mxu0 0.0
        %1604 = vmatmul.mubr.f32.gmra.mxu0 %v1516
        %v1605 = vpop.f32.mrf.mxu0
        %v1606 = vadd.f32 0.0, %v1605
        %v1607 = vpop.f32.mrf.mxu0
        %1608 = vmatprep.mubr.f32.mxu0 0.0
        %1609 = vmatmul.mubr.f32.gmra.mxu0 %v1519
        %v1610 = vpop.f32.mrf.mxu0
        %v1611 = vadd.f32 0.0, %v1610
        %v1612 = vpop.f32.mrf.mxu0
        %1613 = vmatprep.mubr.f32.mxu0 0.0
        %1614 = vmatmul.mubr.f32.gmra.mxu0 %v1522
        %v1615 = vpop.f32.mrf.mxu0
        %v1616 = vadd.f32 0.0, %v1615
        %v1617 = vpop.f32.mrf.mxu0
        %1618 = vmatprep.mubr.f32.mxu0 0.0
        %1619 = vmatmul.mubr.f32.gmra.mxu0 %v1525
        %v1620 = vpop.f32.mrf.mxu0
        %v1621 = vadd.f32 0.0, %v1620
        %v1622 = vpop.f32.mrf.mxu0
        %1623 = vmatprep.mubr.f32.mxu0 0.0
        %1624 = vmatmul.mubr.f32.gmra.mxu0 %v1528
        %v1625 = vpop.f32.mrf.mxu0
        %v1626 = vadd.f32 0.0, %v1625
        %v1627 = vpop.f32.mrf.mxu0
        %1628 = vmatprep.mubr.f32.mxu0 0.0
        %1629 = vmatmul.mubr.f32.gmra.mxu0 %v1531
        %v1630 = vpop.f32.mrf.mxu0
        %v1631 = vadd.f32 0.0, %v1630
        %v1632 = vpop.f32.mrf.mxu0
        %1633 = vmatprep.mubr.f32.mxu0 0.0
        %1634 = vmatmul.mubr.f32.gmra.mxu0 %v1534
        %v1635 = vpop.f32.mrf.mxu0
        %v1636 = vadd.f32 0.0, %v1635
        %v1637 = vpop.f32.mrf.mxu0
        %1638 = vmatprep.mubr.f32.mxu0 0.0
        %1639 = vmatmul.mubr.f32.gmra.mxu0 %v1537
        %v1640 = vpop.f32.mrf.mxu0
        %v1641 = vadd.f32 0.0, %v1640
        %v1642 = vpop.f32.mrf.mxu0
        %1643 = vdwg.mxu0
        %v1644 = vadd.f32 %v1492, %v1606
        %v1645 = vadd.f32 %v1493, %v1611
        %v1646 = vadd.f32 %v1494, %v1616
        %v1647 = vadd.f32 %v1495, %v1621
        %v1648 = vadd.f32 %v1496, %v1626
        %v1649 = vadd.f32 %v1497, %v1631
        %v1650 = vadd.f32 %v1498, %v1636
        %v1651 = vadd.f32 %v1499, %v1641
        %v1652 = vld [vmem:[%s2] sm:$0x1]
        %v1654 = vlaneseq
        %v1655 = vshrl.u32 %v1654, 7
        %v1656 = vsub.s32 0, %v1655
        %v1657 = vrot.slane %v1652, %v1656
        %v1659 = vadd.f32 %v1644, %v1657
        %v1660 = vadd.f32 %v1645, %v1657
        %v1661 = vadd.f32 %v1646, %v1657
        %v1662 = vadd.f32 %v1647, %v1657
        %v1663 = vadd.f32 %v1648, %v1657
        %v1664 = vadd.f32 %v1649, %v1657
        %v1665 = vadd.f32 %v1650, %v1657
        %v1666 = vadd.f32 %v1651, %v1657
        %1667 = vst [vmem:[%s203] sm:$0xff] %v1659
        %1668 = vst [vmem:[%s203 + $0x8] sm:$0xff] %v1660
        %1669 = vst [vmem:[%s203 + $0x10] sm:$0xff] %v1661
        %1670 = vst [vmem:[%s203 + $0x18] sm:$0xff] %v1662
        %1671 = vst [vmem:[%s203 + $0x20] sm:$0xff] %v1663
        %1672 = vst [vmem:[%s203 + $0x28] sm:$0xff] %v1664
        %1673 = vst [vmem:[%s203 + $0x30] sm:$0xff] %v1665
        %1674 = vst [vmem:[%s203 + $0x38] sm:$0xff] %v1666
        %s1675 = sand.u32 %s97, 1
        %s1676 = scalar_lea.sflag [#allocation7], %s1675
        %s1677 = sand.u32 %s97, 1
        %s1678 = smul.addr %s1677, 64
        %s1679 = scalar_lea.vmem [#allocation10], %s1678
        // Predicated region
        $region41: #{tpu_custom_call.1} parent=31 // pred_check
          %p1680 = pneg %p107
        $region42: #{tpu_custom_call.1} parent=31 // pred_check_branch
          %1682 = sbr.rel (%p1680) target = $region44
        $region43: #{tpu_custom_call.1} parent=31 // pred_region
          %s1684 = ssub.s32 1024, 1024
          %1685 = vsyncadd %s1676, %s1684
          %s1686 = smul.addr %s21, 8
          %s1687 = smul.addr %s1686, 128
          %s1688 = scalar_lea.hbm %s3, %s1687
          %s1689 = sshll.u32 %s1679, 4
          %s1690 = int_to_ptr.vmem [resolvable:$true] %s1689
          %1695 = dma.vmem_to_hbm [thread:$0]  %s1690, 1024, %s1688, %s1676, 128, 128, 8
        $region44: #{tpu_custom_call.1} parent=31 // pred_fallthru
          _
      $region32: #{tpu_custom_call.1} parent=5 // pred_fallthru
        _
      %p1696 = scmp.le.s32.totalorder 2, %s16
      // Predicated region
      $region45: #{tpu_custom_call.1} parent=5 // pred_check
        %p1697 = pneg %p1696
      $region46: #{tpu_custom_call.1} parent=5 // pred_check_branch
        %1699 = sbr.rel (%p1697) target = $region48
      $region47: #{tpu_custom_call.1} parent=5 // pred_region
        %s1700 = ssub.s32 %s16, 2
        // Predicated region
        $region49: #{tpu_custom_call.1} parent=47 // pred_check
          %p1701 = pneg %p113
        $region50: #{tpu_custom_call.1} parent=47 // pred_check_branch
          %1703 = sbr.rel (%p1701) target = $region52
        $region51: #{tpu_custom_call.1} parent=47 // pred_region
          %s1704 = sand.u32 %s98, 1
          %s1705 = scalar_lea.sflag [#allocation7], %s1704
          %s1706 = sand.u32 %s98, 1
          %s1707 = smul.addr %s1706, 64
          %s1708 = scalar_lea.vmem [#allocation10], %s1707
          %1709 = dma.done %s1705, 1024
        $region52: #{tpu_custom_call.1} parent=47 // pred_fallthru
          _
      $region48: #{tpu_custom_call.1} parent=5 // pred_fallthru
        _
    $region6: #{tpu_custom_call.1} parent=1 // loop_footer
      %s20 = sadd.s32 1, %s16
    $region7: #{tpu_custom_call.1} parent=1 // loop_footer_branch
      %15 = sbr.rel target = $region3
    $region8: #{tpu_custom_call.1} parent=1 // loop_exit
      _
    %1710 = vsyncpa [#allocation6], 1
    %s1711 = scalar_lea.sflag [#allocation6], 1
    %1712 = vsyncpa %s1711, 1
    %1713 = vsyncpa [#allocation9], 1
    %1714 = vsyncpa [#allocation7], 1
    %s1715 = scalar_lea.sflag [#allocation7], 1
    %1716 = vsyncpa %s1715, 1

</llo_original>
